<compile_context>
chip_gen: v7x
topology: tpu7x:2x2x1
jax: 0.10.0
libtpu: 0.0.40
codegen_flags: <defaults>
</compile_context>

<pallas_src>
import functools

import jax
import jax.numpy as jnp
import numpy as np
from jax.experimental import pallas as pl
from jax.experimental.pallas import tpu as pltpu

N_BLOCKS = 2   # n_blocks_per_layer (module default)


# ----------------------------------------------------------------------------
# Pallas kernel: one grid step == one batch tile (lanes); ALL layers unrolled.
# ----------------------------------------------------------------------------
def _maf_kernel(z_ref, ctx_ref,
                w_z_ref, b_in_ref, w_c_ref,
                w_b0_ref, b_b0_ref, w_b1_ref, b_b1_ref,
                w_gc_ref, b_gc_ref,
                w_st_ref, b_st_ref,
                z_out_ref, lad_out_ref,
                ctx_proj_ref, gates_ref,
                *, n_layers, n_blocks, n_dim, hidden):
    D, H = n_dim, hidden
    f32 = jnp.float32

    z = z_ref[...]       # (D, TB)  batch on lanes
    ctx = ctx_ref[...]   # (C, TB)

    # --- Hoisted, lane-dense context-only passes (invariant across layers) ---
    # One matmul for every per-layer MADE context projection ...
    ctx_proj_ref[...] = jnp.dot(w_c_ref[...], ctx, preferred_element_type=f32)
    # ... and one matmul + ONE sigmoid pass for every residual-block gate.
    gates_ref[...] = jax.nn.sigmoid(
        jnp.dot(w_gc_ref[...], ctx, preferred_element_type=f32) + b_gc_ref[...])

    log_scale = jnp.zeros_like(z)   # (D, TB) per-element logabsdet accumulator

    # TODO(synk): for n_flow_layers > ~4 switch this static unroll to
    # lax.fori_loop with dynamic leading-axis ref indexing to bound live
    # ranges / code size; at L=3 the unroll is cheaper.
    for l in range(n_layers):
        # MADE initial masked linear + precomputed context projection
        # (input-layer biases pre-summed in pack_params).
        h = (jnp.dot(w_z_ref[l], z, preferred_element_type=f32)
             + ctx_proj_ref[pl.ds(l * H, H), :]
             + b_in_ref[l])

        # Masked residual blocks: relu -> masked linear -> relu -> masked
        # linear -> (precomputed) GLU gate -> residual add.
        for b in range(n_blocks):
            i = l * n_blocks + b
            t = jnp.maximum(h, 0.0)
            t = jnp.dot(w_b0_ref[i], t, preferred_element_type=f32) + b_b0_ref[i]
            t = jnp.maximum(t, 0.0)
            t = jnp.dot(w_b1_ref[i], t, preferred_element_type=f32) + b_b1_ref[i]
            h = h + t * gates_ref[pl.ds(i * H, H), :]

        # Fused scale/shift head: one (2D, H) matmul, then slice.
        head = jnp.dot(w_st_ref[l], h, preferred_element_type=f32) + b_st_ref[l]
        scale = jax.nn.sigmoid(head[:D] + 2.0) + 1e-3     # (D, TB)
        shift = head[D:]                                  # (D, TB)
        log_scale = log_scale + jnp.log(scale)
        z = scale * z + shift

    z_out_ref[...] = z                                            # lane-dense store
    lad_out_ref[...] = jnp.sum(log_scale, axis=0, keepdims=True)  # (1, TB) lane-dense


# ----------------------------------------------------------------------------
# Wrapper
# ----------------------------------------------------------------------------
def conditional_maf_forward(z, context, packed, *, batch_tile=None):
    B, D = z.shape
    _, C = context.shape
    L, H, _ = packed[0].shape                  # w_z: (L, H, D)
    n_blocks = packed[3].shape[0] // L         # w_b0: (L*NB, H, H)

    # Batch-on-lanes tile: multiple of 128 (f32 lane width), capped at 256 to
    # keep live vreg pressure low; >=2 grid steps whenever B > 128 so v7x
    # megacore can shard the batch axis and tiles pipeline.
    if batch_tile is None:
        batch_tile = 128 if B <= 256 else 256
    tb = batch_tile
    assert tb % 128 == 0, "batch tile must be a multiple of 128 lanes"

    # Pad the batch to a tile multiple (zeros) instead of asserting divisibility.
    n_tiles = -(-B // tb)
    b_pad = n_tiles * tb
    z_t = jnp.pad(z.astype(jnp.float32).T, ((0, 0), (0, b_pad - B)))        # (D, Bp)
    ctx_t = jnp.pad(context.astype(jnp.float32).T, ((0, 0), (0, b_pad - B)))  # (C, Bp)

    const = lambda nd: (lambda i: (0,) * nd)   # params: fully resident, fetched once
    in_specs = [
        pl.BlockSpec((D, tb), lambda i: (0, i)),
        pl.BlockSpec((C, tb), lambda i: (0, i)),
    ] + [pl.BlockSpec(a.shape, const(a.ndim)) for a in packed]

    out_specs = [
        pl.BlockSpec((D, tb), lambda i: (0, i)),
        pl.BlockSpec((1, tb), lambda i: (0, i)),
    ]

    # Explicit VMEM budget (lane/sublane padded, params double-buffered by the
    # pipeline).  Raise the scoped limit only if needed; stay under v7x's
    # 64 MiB physical VMEM.
    def padded_bytes(shape):
        s = list(shape)
        s[-1] = -(-s[-1] // 128) * 128
        if len(s) >= 2:
            s[-2] = -(-s[-2] // 8) * 8
        return int(np.prod(s)) * 4

    param_bytes = sum(padded_bytes(a.shape) for a in packed)
    scratch_bytes = padded_bytes((L * H, tb)) + padded_bytes((L * n_blocks * H, tb))
    io_bytes = 2 * (2 * padded_bytes((D, tb)) + padded_bytes((C, tb))
                    + padded_bytes((1, tb)))
    needed = 2 * param_bytes + scratch_bytes + io_bytes + (2 << 20)
    # TODO(synk): if H/L grow so `needed` nears v7x's 64 MiB physical VMEM,
    # single-buffer the constant param specs (pipeline_mode=pl.Buffered(1)) or
    # move the layer loop onto an "arbitrary" grid axis instead.
    vmem_limit = int(min(max(needed, 32 << 20), 56 << 20))

    kernel = functools.partial(_maf_kernel, n_layers=L, n_blocks=n_blocks,
                               n_dim=D, hidden=H)

    z_out, lad = pl.pallas_call(
        kernel,
        out_shape=(
            jax.ShapeDtypeStruct((D, b_pad), jnp.float32),
            jax.ShapeDtypeStruct((1, b_pad), jnp.float32),
        ),
        grid_spec=pltpu.PrefetchScalarGridSpec(
            num_scalar_prefetch=0,
            grid=(n_tiles,),
            in_specs=in_specs,
            out_specs=out_specs,
            scratch_shapes=[
                pltpu.VMEM((L * H, tb), jnp.float32),               # ctx projections
                pltpu.VMEM((L * n_blocks * H, tb), jnp.float32),    # GLU gates
            ],
        ),
        compiler_params=pltpu.CompilerParams(
            dimension_semantics=("parallel",),
            vmem_limit_bytes=vmem_limit),
    )(z_t, ctx_t, *packed)

    return z_out[:, :B].T, lad[0, :B]


# ----------------------------------------------------------------------------
# Deterministic parameter construction (nflows MADE autoregressive masks).
# Weights are stored masked, in natural (out_features, in_features) layout.
# ----------------------------------------------------------------------------
def init_params(key, n_flow_layers, n_dim, c_dim, hidden_units, n_blocks=N_BLOCKS):
    L, D, C, H = n_flow_layers, n_dim, c_dim, hidden_units

    deg_in = jnp.arange(1, D + 1)                                   # input degrees
    deg_h = jnp.arange(H) % max(1, D - 1) + min(1, D - 1)           # hidden degrees
    mask_init = (deg_h[:, None] >= deg_in[None, :]).astype(jnp.float32)   # (H, D)
    mask_hid = (deg_h[:, None] >= deg_h[None, :]).astype(jnp.float32)     # (H, H)
    mask_out = (deg_in[:, None] > deg_h[None, :]).astype(jnp.float32)     # (D, H)

    keys = iter(jax.random.split(key, 64))

    def w(shape, fan_in):
        return jax.random.normal(next(keys), shape, jnp.float32) / np.sqrt(fan_in)

    def b(shape):
        return 0.01 * jax.random.normal(next(keys), shape, jnp.float32)

    p = {}
    p["w_z"] = w((L, H, D), D) * mask_init[None]                    # MADE input (masked)
    p["b_z"] = b((L, H))
    p["w_c"] = w((L, H, C), C)                                      # MADE context linear
    p["b_c"] = b((L, H))
    p["w_b0"] = w((L, n_blocks, H, H), H) * mask_hid[None, None]    # block linear 1 (masked)
    p["b_b0"] = b((L, n_blocks, H))
    # second linear of each block is "zero_initialization": uniform(-1e-3, 1e-3)
    p["w_b1"] = (jax.random.uniform(next(keys), (L, n_blocks, H, H), jnp.float32,
                                    -1e-3, 1e-3) * mask_hid[None, None])
    p["b_b1"] = jax.random.uniform(next(keys), (L, n_blocks, H), jnp.float32, -1e-3, 1e-3)
    p["w_bc"] = w((L, n_blocks, H, C), C)                           # block context (GLU gate)
    p["b_bc"] = b((L, n_blocks, H))
    p["w_s"] = w((L, D, H), H) * mask_out[None]                     # scale head (masked)
    p["b_s"] = b((L, D))
    p["w_t"] = w((L, D, H), H) * mask_out[None]                     # shift head (masked)
    p["b_t"] = b((L, D))
    return p


# ----------------------------------------------------------------------------
# Pack logical params into stacked (out, in) tensors for the kernel:
#   - MADE input-layer biases pre-summed (exact fusion),
#   - all per-layer context weights stacked for one lane-dense matmul,
#   - all gate weights/biases stacked for one matmul + one sigmoid pass,
#   - scale/shift heads concatenated into one (2D, H) weight per layer.
# ----------------------------------------------------------------------------
def pack_params(p):
    L, H, D = p["w_z"].shape
    C = p["w_c"].shape[-1]
    NB = p["w_b0"].shape[1]

    b_in = (p["b_z"] + p["b_c"]).reshape(L, H, 1)
    w_c_all = p["w_c"].reshape(L * H, C)
    w_b0 = p["w_b0"].reshape(L * NB, H, H)
    b_b0 = p["b_b0"].reshape(L * NB, H, 1)
    w_b1 = p["w_b1"].reshape(L * NB, H, H)
    b_b1 = p["b_b1"].reshape(L * NB, H, 1)
    w_gc = p["w_bc"].reshape(L * NB * H, C)
    b_gc = p["b_bc"].reshape(L * NB * H, 1)
    w_st = jnp.concatenate([p["w_s"], p["w_t"]], axis=1)            # (L, 2D, H)
    b_st = jnp.concatenate([p["b_s"], p["b_t"]], axis=1)[..., None]  # (L, 2D, 1)

    return (p["w_z"], b_in, w_c_all,
            w_b0, b_b0, w_b1, b_b1,
            w_gc, b_gc,
            w_st, b_st)


# ----------------------------------------------------------------------------
# Pure-JAX reference (same logical params) for verification.
# ----------------------------------------------------------------------------
def reference_forward(z, ctx, p):
    L, H, D = p["w_z"].shape
    NB = p["w_b0"].shape[1]
    lad = jnp.zeros((z.shape[0],), jnp.float32)
    for l in range(L):
        h = z @ p["w_z"][l].T + p["b_z"][l] + ctx @ p["w_c"][l].T + p["b_c"][l]
        for b in range(NB):
            t = jnp.maximum(h, 0.0) @ p["w_b0"][l, b].T + p["b_b0"][l, b]
            t = jnp.maximum(t, 0.0) @ p["w_b1"][l, b].T + p["b_b1"][l, b]
            gate = jax.nn.sigmoid(ctx @ p["w_bc"][l, b].T + p["b_bc"][l, b])
            h = h + t * gate
        uscale = h @ p["w_s"][l].T + p["b_s"][l]
        shift = h @ p["w_t"][l].T + p["b_t"][l]
        scale = jax.nn.sigmoid(uscale + 2.0) + 1e-3
        lad = lad + jnp.sum(jnp.log(scale), axis=-1)
        z = scale * z + shift
    return z, lad


if __name__ == "__main__":
    # Small shapes consistent with the module: z (B, n_dim), context (B, c_dim)
    n_flow_layers, n_dim, c_dim, hidden_units = 3, 4, 6, 32
    B = 8

    key = jax.random.PRNGKey(0)
    k_z, k_c, k_p = jax.random.split(key, 3)
    z = jax.random.normal(k_z, (B, n_dim), jnp.float32)
    context = jax.random.normal(k_c, (B, c_dim), jnp.float32)

    params = init_params(k_p, n_flow_layers, n_dim, c_dim, hidden_units)
    packed = pack_params(params)

    z_out, logabsdet = conditional_maf_forward(z, context, packed)
    jax.block_until_ready((z_out, logabsdet))

    z_ref, lad_ref = reference_forward(z, context, params)
    assert np.allclose(np.asarray(z_out), np.asarray(z_ref), rtol=1e-5, atol=1e-5)
    assert np.allclose(np.asarray(logabsdet), np.asarray(lad_ref), rtol=1e-5, atol=1e-5)

    print("KERNEL_OK")
</pallas_src>

<mosaic_0001>
module attributes {stable_mosaic.version = 11 : i64} {
  func.func @_maf_kernel(%arg0: i32, %arg1: memref<4x128xf32, #tpu.memory_space<vmem>>, %arg2: memref<6x128xf32, #tpu.memory_space<vmem>>, %arg3: memref<3x32x4xf32, #tpu.memory_space<vmem>>, %arg4: memref<3x32x1xf32, #tpu.memory_space<vmem>>, %arg5: memref<96x6xf32, #tpu.memory_space<vmem>>, %arg6: memref<6x32x32xf32, #tpu.memory_space<vmem>>, %arg7: memref<6x32x1xf32, #tpu.memory_space<vmem>>, %arg8: memref<6x32x32xf32, #tpu.memory_space<vmem>>, %arg9: memref<6x32x1xf32, #tpu.memory_space<vmem>>, %arg10: memref<192x6xf32, #tpu.memory_space<vmem>>, %arg11: memref<192x1xf32, #tpu.memory_space<vmem>>, %arg12: memref<3x8x32xf32, #tpu.memory_space<vmem>>, %arg13: memref<3x8x1xf32, #tpu.memory_space<vmem>>, %arg14: memref<4x128xf32, #tpu.memory_space<vmem>>, %arg15: memref<1x128xf32, #tpu.memory_space<vmem>>, %arg16: memref<96x128xf32, #tpu.memory_space<vmem>>, %arg17: memref<192x128xf32, #tpu.memory_space<vmem>>) attributes {dimension_semantics = [#tpu.dimension_semantics<parallel>], iteration_bounds = array<i64: 1>, scalar_prefetch = 0 : i64, scratch_operands = 2 : i64, tpu.core_type = #tpu.core_type<tc>, window_params = [{transform_indices = @transform_0, window_bounds = array<i64: 4, 128>}, {transform_indices = @transform_1, window_bounds = array<i64: 6, 128>}, {pipeline_mode = #tpu.pipeline_mode<synchronous>, transform_indices = @transform_2, window_bounds = array<i64: 3, 32, 4>}, {pipeline_mode = #tpu.pipeline_mode<synchronous>, transform_indices = @transform_3, window_bounds = array<i64: 3, 32, 1>}, {pipeline_mode = #tpu.pipeline_mode<synchronous>, transform_indices = @transform_4, window_bounds = array<i64: 96, 6>}, {pipeline_mode = #tpu.pipeline_mode<synchronous>, transform_indices = @transform_5, window_bounds = array<i64: 6, 32, 32>}, {pipeline_mode = #tpu.pipeline_mode<synchronous>, transform_indices = @transform_6, window_bounds = array<i64: 6, 32, 1>}, {pipeline_mode = #tpu.pipeline_mode<synchronous>, transform_indices = @transform_7, window_bounds = array<i64: 6, 32, 32>}, {pipeline_mode = #tpu.pipeline_mode<synchronous>, transform_indices = @transform_8, window_bounds = array<i64: 6, 32, 1>}, {pipeline_mode = #tpu.pipeline_mode<synchronous>, transform_indices = @transform_9, window_bounds = array<i64: 192, 6>}, {pipeline_mode = #tpu.pipeline_mode<synchronous>, transform_indices = @transform_10, window_bounds = array<i64: 192, 1>}, {pipeline_mode = #tpu.pipeline_mode<synchronous>, transform_indices = @transform_11, window_bounds = array<i64: 3, 8, 32>}, {pipeline_mode = #tpu.pipeline_mode<synchronous>, transform_indices = @transform_12, window_bounds = array<i64: 3, 8, 1>}, {transform_indices = @transform_13, window_bounds = array<i64: 4, 128>}, {transform_indices = @transform_14, window_bounds = array<i64: 1, 128>}]} {
    %c0 = arith.constant 0 : index
    %c0_0 = arith.constant 0 : index
    %0 = vector.load %arg1[%c0, %c0_0] : memref<4x128xf32, #tpu.memory_space<vmem>>, vector<4x128xf32>
    %c0_1 = arith.constant 0 : index
    %c0_2 = arith.constant 0 : index
    %1 = vector.load %arg2[%c0_1, %c0_2] : memref<6x128xf32, #tpu.memory_space<vmem>>, vector<6x128xf32>
    %c0_3 = arith.constant 0 : index
    %c0_4 = arith.constant 0 : index
    %2 = vector.load %arg5[%c0_3, %c0_4] : memref<96x6xf32, #tpu.memory_space<vmem>>, vector<96x6xf32>
    %cst = arith.constant dense<0.000000e+00> : vector<96x128xf32>
    %3 = tpu.matmul %2, %1, %cst {dimension_numbers = #tpu.dot_dimension_numbers<[1], [0], [0], [1], [0, 0, 1, 1], [], []>} : vector<96x6xf32>, vector<6x128xf32>, vector<96x128xf32> -> vector<96x128xf32>
    %c0_5 = arith.constant 0 : index
    %c0_6 = arith.constant 0 : index
    %4 = vector.load %arg16[%c0_5, %c0_6] : memref<96x128xf32, #tpu.memory_space<vmem>>, vector<96x128xf32>
    tpu.vector_store %arg16[%c0_5, %c0_6], %3 {strides = array<i32>} : memref<96x128xf32, #tpu.memory_space<vmem>>, vector<96x128xf32>,
    %c0_7 = arith.constant 0 : index
    %c0_8 = arith.constant 0 : index
    %5 = vector.load %arg10[%c0_7, %c0_8] : memref<192x6xf32, #tpu.memory_space<vmem>>, vector<192x6xf32>
    %cst_9 = arith.constant dense<0.000000e+00> : vector<192x128xf32>
    %6 = tpu.matmul %5, %1, %cst_9 {dimension_numbers = #tpu.dot_dimension_numbers<[1], [0], [0], [1], [0, 0, 1, 1], [], []>} : vector<192x6xf32>, vector<6x128xf32>, vector<192x128xf32> -> vector<192x128xf32>
    %c0_10 = arith.constant 0 : index
    %c0_11 = arith.constant 0 : index
    %7 = vector.load %arg11[%c0_10, %c0_11] : memref<192x1xf32, #tpu.memory_space<vmem>>, vector<192x1xf32>
    %8 = vector.broadcast %7 : vector<192x1xf32> to vector<192x128xf32>
    %9 = arith.addf %6, %8 : vector<192x128xf32>
    %10 = arith.negf %9 : vector<192x128xf32>
    %11 = math.exp %10 : vector<192x128xf32>
    %cst_12 = arith.constant 1.000000e+00 : f32
    %12 = vector.broadcast %cst_12 : f32 to vector<192x128xf32>
    %13 = arith.addf %12, %11 : vector<192x128xf32>
    %14 = arith.divf %12, %13 : vector<192x128xf32>
    %c0_13 = arith.constant 0 : index
    %c0_14 = arith.constant 0 : index
    %15 = vector.load %arg17[%c0_13, %c0_14] : memref<192x128xf32, #tpu.memory_space<vmem>>, vector<192x128xf32>
    tpu.vector_store %arg17[%c0_13, %c0_14], %14 {strides = array<i32>} : memref<192x128xf32, #tpu.memory_space<vmem>>, vector<192x128xf32>,
    %cst_15 = arith.constant 0.000000e+00 : f32
    %16 = vector.broadcast %cst_15 : f32 to vector<4x128xf32>
    %c0_16 = arith.constant 0 : index
    %c0_17 = arith.constant 0 : index
    %c0_18 = arith.constant 0 : index
    %17 = vector.load %arg3[%c0_16, %c0_17, %c0_18] : memref<3x32x4xf32, #tpu.memory_space<vmem>>, vector<1x32x4xf32>
    %18 = vector.shape_cast %17 : vector<1x32x4xf32> to vector<32x4xf32>
    %cst_19 = arith.constant dense<0.000000e+00> : vector<32x128xf32>
    %19 = tpu.matmul %18, %0, %cst_19 {dimension_numbers = #tpu.dot_dimension_numbers<[1], [0], [0], [1], [0, 0, 1, 1], [], []>} : vector<32x4xf32>, vector<4x128xf32>, vector<32x128xf32> -> vector<32x128xf32>
    %c0_20 = arith.constant 0 : index
    %c0_21 = arith.constant 0 : index
    %20 = vector.load %arg16[%c0_20, %c0_21] : memref<96x128xf32, #tpu.memory_space<vmem>>, vector<32x128xf32>
    %21 = arith.addf %19, %20 : vector<32x128xf32>
    %c0_22 = arith.constant 0 : index
    %c0_23 = arith.constant 0 : index
    %c0_24 = arith.constant 0 : index
    %22 = vector.load %arg4[%c0_22, %c0_23, %c0_24] : memref<3x32x1xf32, #tpu.memory_space<vmem>>, vector<1x32x1xf32>
    %23 = vector.shape_cast %22 : vector<1x32x1xf32> to vector<32x1xf32>
    %24 = vector.broadcast %23 : vector<32x1xf32> to vector<32x128xf32>
    %25 = arith.addf %21, %24 : vector<32x128xf32>
    %cst_25 = arith.constant 0.000000e+00 : f32
    %26 = vector.broadcast %cst_25 : f32 to vector<32x128xf32>
    %27 = arith.maximumf %25, %26 : vector<32x128xf32>
    %c0_26 = arith.constant 0 : index
    %c0_27 = arith.constant 0 : index
    %c0_28 = arith.constant 0 : index
    %28 = vector.load %arg6[%c0_26, %c0_27, %c0_28] : memref<6x32x32xf32, #tpu.memory_space<vmem>>, vector<1x32x32xf32>
    %29 = vector.shape_cast %28 : vector<1x32x32xf32> to vector<32x32xf32>
    %cst_29 = arith.constant dense<0.000000e+00> : vector<32x128xf32>
    %30 = tpu.matmul %29, %27, %cst_29 {dimension_numbers = #tpu.dot_dimension_numbers<[1], [0], [0], [1], [0, 0, 1, 1], [], []>} : vector<32x32xf32>, vector<32x128xf32>, vector<32x128xf32> -> vector<32x128xf32>
    %c0_30 = arith.constant 0 : index
    %c0_31 = arith.constant 0 : index
    %c0_32 = arith.constant 0 : index
    %31 = vector.load %arg7[%c0_30, %c0_31, %c0_32] : memref<6x32x1xf32, #tpu.memory_space<vmem>>, vector<1x32x1xf32>
    %32 = vector.shape_cast %31 : vector<1x32x1xf32> to vector<32x1xf32>
    %33 = vector.broadcast %32 : vector<32x1xf32> to vector<32x128xf32>
    %34 = arith.addf %30, %33 : vector<32x128xf32>
    %cst_33 = arith.constant 0.000000e+00 : f32
    %35 = vector.broadcast %cst_33 : f32 to vector<32x128xf32>
    %36 = arith.maximumf %34, %35 : vector<32x128xf32>
    %c0_34 = arith.constant 0 : index
    %c0_35 = arith.constant 0 : index
    %c0_36 = arith.constant 0 : index
    %37 = vector.load %arg8[%c0_34, %c0_35, %c0_36] : memref<6x32x32xf32, #tpu.memory_space<vmem>>, vector<1x32x32xf32>
    %38 = vector.shape_cast %37 : vector<1x32x32xf32> to vector<32x32xf32>
    %cst_37 = arith.constant dense<0.000000e+00> : vector<32x128xf32>
    %39 = tpu.matmul %38, %36, %cst_37 {dimension_numbers = #tpu.dot_dimension_numbers<[1], [0], [0], [1], [0, 0, 1, 1], [], []>} : vector<32x32xf32>, vector<32x128xf32>, vector<32x128xf32> -> vector<32x128xf32>
    %c0_38 = arith.constant 0 : index
    %c0_39 = arith.constant 0 : index
    %c0_40 = arith.constant 0 : index
    %40 = vector.load %arg9[%c0_38, %c0_39, %c0_40] : memref<6x32x1xf32, #tpu.memory_space<vmem>>, vector<1x32x1xf32>
    %41 = vector.shape_cast %40 : vector<1x32x1xf32> to vector<32x1xf32>
    %42 = vector.broadcast %41 : vector<32x1xf32> to vector<32x128xf32>
    %43 = arith.addf %39, %42 : vector<32x128xf32>
    %c0_41 = arith.constant 0 : index
    %c0_42 = arith.constant 0 : index
    %44 = vector.load %arg17[%c0_41, %c0_42] : memref<192x128xf32, #tpu.memory_space<vmem>>, vector<32x128xf32>
    %45 = arith.mulf %43, %44 : vector<32x128xf32>
    %46 = arith.addf %25, %45 : vector<32x128xf32>
    %cst_43 = arith.constant 0.000000e+00 : f32
    %47 = vector.broadcast %cst_43 : f32 to vector<32x128xf32>
    %48 = arith.maximumf %46, %47 : vector<32x128xf32>
    %c1 = arith.constant 1 : index
    %c0_44 = arith.constant 0 : index
    %c0_45 = arith.constant 0 : index
    %49 = vector.load %arg6[%c1, %c0_44, %c0_45] : memref<6x32x32xf32, #tpu.memory_space<vmem>>, vector<1x32x32xf32>
    %50 = vector.shape_cast %49 : vector<1x32x32xf32> to vector<32x32xf32>
    %cst_46 = arith.constant dense<0.000000e+00> : vector<32x128xf32>
    %51 = tpu.matmul %50, %48, %cst_46 {dimension_numbers = #tpu.dot_dimension_numbers<[1], [0], [0], [1], [0, 0, 1, 1], [], []>} : vector<32x32xf32>, vector<32x128xf32>, vector<32x128xf32> -> vector<32x128xf32>
    %c1_47 = arith.constant 1 : index
    %c0_48 = arith.constant 0 : index
    %c0_49 = arith.constant 0 : index
    %52 = vector.load %arg7[%c1_47, %c0_48, %c0_49] : memref<6x32x1xf32, #tpu.memory_space<vmem>>, vector<1x32x1xf32>
    %53 = vector.shape_cast %52 : vector<1x32x1xf32> to vector<32x1xf32>
    %54 = vector.broadcast %53 : vector<32x1xf32> to vector<32x128xf32>
    %55 = arith.addf %51, %54 : vector<32x128xf32>
    %cst_50 = arith.constant 0.000000e+00 : f32
    %56 = vector.broadcast %cst_50 : f32 to vector<32x128xf32>
    %57 = arith.maximumf %55, %56 : vector<32x128xf32>
    %c1_51 = arith.constant 1 : index
    %c0_52 = arith.constant 0 : index
    %c0_53 = arith.constant 0 : index
    %58 = vector.load %arg8[%c1_51, %c0_52, %c0_53] : memref<6x32x32xf32, #tpu.memory_space<vmem>>, vector<1x32x32xf32>
    %59 = vector.shape_cast %58 : vector<1x32x32xf32> to vector<32x32xf32>
    %cst_54 = arith.constant dense<0.000000e+00> : vector<32x128xf32>
    %60 = tpu.matmul %59, %57, %cst_54 {dimension_numbers = #tpu.dot_dimension_numbers<[1], [0], [0], [1], [0, 0, 1, 1], [], []>} : vector<32x32xf32>, vector<32x128xf32>, vector<32x128xf32> -> vector<32x128xf32>
    %c1_55 = arith.constant 1 : index
    %c0_56 = arith.constant 0 : index
    %c0_57 = arith.constant 0 : index
    %61 = vector.load %arg9[%c1_55, %c0_56, %c0_57] : memref<6x32x1xf32, #tpu.memory_space<vmem>>, vector<1x32x1xf32>
    %62 = vector.shape_cast %61 : vector<1x32x1xf32> to vector<32x1xf32>
    %63 = vector.broadcast %62 : vector<32x1xf32> to vector<32x128xf32>
    %64 = arith.addf %60, %63 : vector<32x128xf32>
    %c32 = arith.constant 32 : index
    %c0_58 = arith.constant 0 : index
    %65 = vector.load %arg17[%c32, %c0_58] : memref<192x128xf32, #tpu.memory_space<vmem>>, vector<32x128xf32>
    %66 = arith.mulf %64, %65 : vector<32x128xf32>
    %67 = arith.addf %46, %66 : vector<32x128xf32>
    %c0_59 = arith.constant 0 : index
    %c0_60 = arith.constant 0 : index
    %c0_61 = arith.constant 0 : index
    %68 = vector.load %arg12[%c0_59, %c0_60, %c0_61] : memref<3x8x32xf32, #tpu.memory_space<vmem>>, vector<1x8x32xf32>
    %69 = vector.shape_cast %68 : vector<1x8x32xf32> to vector<8x32xf32>
    %cst_62 = arith.constant dense<0.000000e+00> : vector<8x128xf32>
    %70 = tpu.matmul %69, %67, %cst_62 {dimension_numbers = #tpu.dot_dimension_numbers<[1], [0], [0], [1], [0, 0, 1, 1], [], []>} : vector<8x32xf32>, vector<32x128xf32>, vector<8x128xf32> -> vector<8x128xf32>
    %c0_63 = arith.constant 0 : index
    %c0_64 = arith.constant 0 : index
    %c0_65 = arith.constant 0 : index
    %71 = vector.load %arg13[%c0_63, %c0_64, %c0_65] : memref<3x8x1xf32, #tpu.memory_space<vmem>>, vector<1x8x1xf32>
    %72 = vector.shape_cast %71 : vector<1x8x1xf32> to vector<8x1xf32>
    %73 = vector.broadcast %72 : vector<8x1xf32> to vector<8x128xf32>
    %74 = arith.addf %70, %73 : vector<8x128xf32>
    %75 = vector.extract_strided_slice %74 {offsets = [0, 0], sizes = [4, 128], strides = [1, 1]} : vector<8x128xf32> to vector<4x128xf32>
    %cst_66 = arith.constant 2.000000e+00 : f32
    %76 = vector.broadcast %cst_66 : f32 to vector<4x128xf32>
    %77 = arith.addf %75, %76 : vector<4x128xf32>
    %78 = arith.negf %77 : vector<4x128xf32>
    %79 = math.exp %78 : vector<4x128xf32>
    %cst_67 = arith.constant 1.000000e+00 : f32
    %80 = vector.broadcast %cst_67 : f32 to vector<4x128xf32>
    %81 = arith.addf %80, %79 : vector<4x128xf32>
    %82 = arith.divf %80, %81 : vector<4x128xf32>
    %cst_68 = arith.constant 1.000000e-03 : f32
    %83 = vector.broadcast %cst_68 : f32 to vector<4x128xf32>
    %84 = arith.addf %82, %83 : vector<4x128xf32>
    %85 = vector.extract_strided_slice %74 {offsets = [4, 0], sizes = [4, 128], strides = [1, 1]} : vector<8x128xf32> to vector<4x128xf32>
    %86 = math.log %84 : vector<4x128xf32>
    %87 = arith.addf %16, %86 : vector<4x128xf32>
    %88 = arith.mulf %84, %0 : vector<4x128xf32>
    %89 = arith.addf %88, %85 : vector<4x128xf32>
    %c1_69 = arith.constant 1 : index
    %c0_70 = arith.constant 0 : index
    %c0_71 = arith.constant 0 : index
    %90 = vector.load %arg3[%c1_69, %c0_70, %c0_71] : memref<3x32x4xf32, #tpu.memory_space<vmem>>, vector<1x32x4xf32>
    %91 = vector.shape_cast %90 : vector<1x32x4xf32> to vector<32x4xf32>
    %cst_72 = arith.constant dense<0.000000e+00> : vector<32x128xf32>
    %92 = tpu.matmul %91, %89, %cst_72 {dimension_numbers = #tpu.dot_dimension_numbers<[1], [0], [0], [1], [0, 0, 1, 1], [], []>} : vector<32x4xf32>, vector<4x128xf32>, vector<32x128xf32> -> vector<32x128xf32>
    %c32_73 = arith.constant 32 : index
    %c0_74 = arith.constant 0 : index
    %93 = vector.load %arg16[%c32_73, %c0_74] : memref<96x128xf32, #tpu.memory_space<vmem>>, vector<32x128xf32>
    %94 = arith.addf %92, %93 : vector<32x128xf32>
    %c1_75 = arith.constant 1 : index
    %c0_76 = arith.constant 0 : index
    %c0_77 = arith.constant 0 : index
    %95 = vector.load %arg4[%c1_75, %c0_76, %c0_77] : memref<3x32x1xf32, #tpu.memory_space<vmem>>, vector<1x32x1xf32>
    %96 = vector.shape_cast %95 : vector<1x32x1xf32> to vector<32x1xf32>
    %97 = vector.broadcast %96 : vector<32x1xf32> to vector<32x128xf32>
    %98 = arith.addf %94, %97 : vector<32x128xf32>
    %cst_78 = arith.constant 0.000000e+00 : f32
    %99 = vector.broadcast %cst_78 : f32 to vector<32x128xf32>
    %100 = arith.maximumf %98, %99 : vector<32x128xf32>
    %c2 = arith.constant 2 : index
    %c0_79 = arith.constant 0 : index
    %c0_80 = arith.constant 0 : index
    %101 = vector.load %arg6[%c2, %c0_79, %c0_80] : memref<6x32x32xf32, #tpu.memory_space<vmem>>, vector<1x32x32xf32>
    %102 = vector.shape_cast %101 : vector<1x32x32xf32> to vector<32x32xf32>
    %cst_81 = arith.constant dense<0.000000e+00> : vector<32x128xf32>
    %103 = tpu.matmul %102, %100, %cst_81 {dimension_numbers = #tpu.dot_dimension_numbers<[1], [0], [0], [1], [0, 0, 1, 1], [], []>} : vector<32x32xf32>, vector<32x128xf32>, vector<32x128xf32> -> vector<32x128xf32>
    %c2_82 = arith.constant 2 : index
    %c0_83 = arith.constant 0 : index
    %c0_84 = arith.constant 0 : index
    %104 = vector.load %arg7[%c2_82, %c0_83, %c0_84] : memref<6x32x1xf32, #tpu.memory_space<vmem>>, vector<1x32x1xf32>
    %105 = vector.shape_cast %104 : vector<1x32x1xf32> to vector<32x1xf32>
    %106 = vector.broadcast %105 : vector<32x1xf32> to vector<32x128xf32>
    %107 = arith.addf %103, %106 : vector<32x128xf32>
    %cst_85 = arith.constant 0.000000e+00 : f32
    %108 = vector.broadcast %cst_85 : f32 to vector<32x128xf32>
    %109 = arith.maximumf %107, %108 : vector<32x128xf32>
    %c2_86 = arith.constant 2 : index
    %c0_87 = arith.constant 0 : index
    %c0_88 = arith.constant 0 : index
    %110 = vector.load %arg8[%c2_86, %c0_87, %c0_88] : memref<6x32x32xf32, #tpu.memory_space<vmem>>, vector<1x32x32xf32>
    %111 = vector.shape_cast %110 : vector<1x32x32xf32> to vector<32x32xf32>
    %cst_89 = arith.constant dense<0.000000e+00> : vector<32x128xf32>
    %112 = tpu.matmul %111, %109, %cst_89 {dimension_numbers = #tpu.dot_dimension_numbers<[1], [0], [0], [1], [0, 0, 1, 1], [], []>} : vector<32x32xf32>, vector<32x128xf32>, vector<32x128xf32> -> vector<32x128xf32>
    %c2_90 = arith.constant 2 : index
    %c0_91 = arith.constant 0 : index
    %c0_92 = arith.constant 0 : index
    %113 = vector.load %arg9[%c2_90, %c0_91, %c0_92] : memref<6x32x1xf32, #tpu.memory_space<vmem>>, vector<1x32x1xf32>
    %114 = vector.shape_cast %113 : vector<1x32x1xf32> to vector<32x1xf32>
    %115 = vector.broadcast %114 : vector<32x1xf32> to vector<32x128xf32>
    %116 = arith.addf %112, %115 : vector<32x128xf32>
    %c64 = arith.constant 64 : index
    %c0_93 = arith.constant 0 : index
    %117 = vector.load %arg17[%c64, %c0_93] : memref<192x128xf32, #tpu.memory_space<vmem>>, vector<32x128xf32>
    %118 = arith.mulf %116, %117 : vector<32x128xf32>
    %119 = arith.addf %98, %118 : vector<32x128xf32>
    %cst_94 = arith.constant 0.000000e+00 : f32
    %120 = vector.broadcast %cst_94 : f32 to vector<32x128xf32>
    %121 = arith.maximumf %119, %120 : vector<32x128xf32>
    %c3 = arith.constant 3 : index
    %c0_95 = arith.constant 0 : index
    %c0_96 = arith.constant 0 : index
    %122 = vector.load %arg6[%c3, %c0_95, %c0_96] : memref<6x32x32xf32, #tpu.memory_space<vmem>>, vector<1x32x32xf32>
    %123 = vector.shape_cast %122 : vector<1x32x32xf32> to vector<32x32xf32>
    %cst_97 = arith.constant dense<0.000000e+00> : vector<32x128xf32>
    %124 = tpu.matmul %123, %121, %cst_97 {dimension_numbers = #tpu.dot_dimension_numbers<[1], [0], [0], [1], [0, 0, 1, 1], [], []>} : vector<32x32xf32>, vector<32x128xf32>, vector<32x128xf32> -> vector<32x128xf32>
    %c3_98 = arith.constant 3 : index
    %c0_99 = arith.constant 0 : index
    %c0_100 = arith.constant 0 : index
    %125 = vector.load %arg7[%c3_98, %c0_99, %c0_100] : memref<6x32x1xf32, #tpu.memory_space<vmem>>, vector<1x32x1xf32>
    %126 = vector.shape_cast %125 : vector<1x32x1xf32> to vector<32x1xf32>
    %127 = vector.broadcast %126 : vector<32x1xf32> to vector<32x128xf32>
    %128 = arith.addf %124, %127 : vector<32x128xf32>
    %cst_101 = arith.constant 0.000000e+00 : f32
    %129 = vector.broadcast %cst_101 : f32 to vector<32x128xf32>
    %130 = arith.maximumf %128, %129 : vector<32x128xf32>
    %c3_102 = arith.constant 3 : index
    %c0_103 = arith.constant 0 : index
    %c0_104 = arith.constant 0 : index
    %131 = vector.load %arg8[%c3_102, %c0_103, %c0_104] : memref<6x32x32xf32, #tpu.memory_space<vmem>>, vector<1x32x32xf32>
    %132 = vector.shape_cast %131 : vector<1x32x32xf32> to vector<32x32xf32>
    %cst_105 = arith.constant dense<0.000000e+00> : vector<32x128xf32>
    %133 = tpu.matmul %132, %130, %cst_105 {dimension_numbers = #tpu.dot_dimension_numbers<[1], [0], [0], [1], [0, 0, 1, 1], [], []>} : vector<32x32xf32>, vector<32x128xf32>, vector<32x128xf32> -> vector<32x128xf32>
    %c3_106 = arith.constant 3 : index
    %c0_107 = arith.constant 0 : index
    %c0_108 = arith.constant 0 : index
    %134 = vector.load %arg9[%c3_106, %c0_107, %c0_108] : memref<6x32x1xf32, #tpu.memory_space<vmem>>, vector<1x32x1xf32>
    %135 = vector.shape_cast %134 : vector<1x32x1xf32> to vector<32x1xf32>
    %136 = vector.broadcast %135 : vector<32x1xf32> to vector<32x128xf32>
    %137 = arith.addf %133, %136 : vector<32x128xf32>
    %c96 = arith.constant 96 : index
    %c0_109 = arith.constant 0 : index
    %138 = vector.load %arg17[%c96, %c0_109] : memref<192x128xf32, #tpu.memory_space<vmem>>, vector<32x128xf32>
    %139 = arith.mulf %137, %138 : vector<32x128xf32>
    %140 = arith.addf %119, %139 : vector<32x128xf32>
    %c1_110 = arith.constant 1 : index
    %c0_111 = arith.constant 0 : index
    %c0_112 = arith.constant 0 : index
    %141 = vector.load %arg12[%c1_110, %c0_111, %c0_112] : memref<3x8x32xf32, #tpu.memory_space<vmem>>, vector<1x8x32xf32>
    %142 = vector.shape_cast %141 : vector<1x8x32xf32> to vector<8x32xf32>
    %cst_113 = arith.constant dense<0.000000e+00> : vector<8x128xf32>
    %143 = tpu.matmul %142, %140, %cst_113 {dimension_numbers = #tpu.dot_dimension_numbers<[1], [0], [0], [1], [0, 0, 1, 1], [], []>} : vector<8x32xf32>, vector<32x128xf32>, vector<8x128xf32> -> vector<8x128xf32>
    %c1_114 = arith.constant 1 : index
    %c0_115 = arith.constant 0 : index
    %c0_116 = arith.constant 0 : index
    %144 = vector.load %arg13[%c1_114, %c0_115, %c0_116] : memref<3x8x1xf32, #tpu.memory_space<vmem>>, vector<1x8x1xf32>
    %145 = vector.shape_cast %144 : vector<1x8x1xf32> to vector<8x1xf32>
    %146 = vector.broadcast %145 : vector<8x1xf32> to vector<8x128xf32>
    %147 = arith.addf %143, %146 : vector<8x128xf32>
    %148 = vector.extract_strided_slice %147 {offsets = [0, 0], sizes = [4, 128], strides = [1, 1]} : vector<8x128xf32> to vector<4x128xf32>
    %cst_117 = arith.constant 2.000000e+00 : f32
    %149 = vector.broadcast %cst_117 : f32 to vector<4x128xf32>
    %150 = arith.addf %148, %149 : vector<4x128xf32>
    %151 = arith.negf %150 : vector<4x128xf32>
    %152 = math.exp %151 : vector<4x128xf32>
    %cst_118 = arith.constant 1.000000e+00 : f32
    %153 = vector.broadcast %cst_118 : f32 to vector<4x128xf32>
    %154 = arith.addf %153, %152 : vector<4x128xf32>
    %155 = arith.divf %153, %154 : vector<4x128xf32>
    %cst_119 = arith.constant 1.000000e-03 : f32
    %156 = vector.broadcast %cst_119 : f32 to vector<4x128xf32>
    %157 = arith.addf %155, %156 : vector<4x128xf32>
    %158 = vector.extract_strided_slice %147 {offsets = [4, 0], sizes = [4, 128], strides = [1, 1]} : vector<8x128xf32> to vector<4x128xf32>
    %159 = math.log %157 : vector<4x128xf32>
    %160 = arith.addf %87, %159 : vector<4x128xf32>
    %161 = arith.mulf %157, %89 : vector<4x128xf32>
    %162 = arith.addf %161, %158 : vector<4x128xf32>
    %c2_120 = arith.constant 2 : index
    %c0_121 = arith.constant 0 : index
    %c0_122 = arith.constant 0 : index
    %163 = vector.load %arg3[%c2_120, %c0_121, %c0_122] : memref<3x32x4xf32, #tpu.memory_space<vmem>>, vector<1x32x4xf32>
    %164 = vector.shape_cast %163 : vector<1x32x4xf32> to vector<32x4xf32>
    %cst_123 = arith.constant dense<0.000000e+00> : vector<32x128xf32>
    %165 = tpu.matmul %164, %162, %cst_123 {dimension_numbers = #tpu.dot_dimension_numbers<[1], [0], [0], [1], [0, 0, 1, 1], [], []>} : vector<32x4xf32>, vector<4x128xf32>, vector<32x128xf32> -> vector<32x128xf32>
    %c64_124 = arith.constant 64 : index
    %c0_125 = arith.constant 0 : index
    %166 = vector.load %arg16[%c64_124, %c0_125] : memref<96x128xf32, #tpu.memory_space<vmem>>, vector<32x128xf32>
    %167 = arith.addf %165, %166 : vector<32x128xf32>
    %c2_126 = arith.constant 2 : index
    %c0_127 = arith.constant 0 : index
    %c0_128 = arith.constant 0 : index
    %168 = vector.load %arg4[%c2_126, %c0_127, %c0_128] : memref<3x32x1xf32, #tpu.memory_space<vmem>>, vector<1x32x1xf32>
    %169 = vector.shape_cast %168 : vector<1x32x1xf32> to vector<32x1xf32>
    %170 = vector.broadcast %169 : vector<32x1xf32> to vector<32x128xf32>
    %171 = arith.addf %167, %170 : vector<32x128xf32>
    %cst_129 = arith.constant 0.000000e+00 : f32
    %172 = vector.broadcast %cst_129 : f32 to vector<32x128xf32>
    %173 = arith.maximumf %171, %172 : vector<32x128xf32>
    %c4 = arith.constant 4 : index
    %c0_130 = arith.constant 0 : index
    %c0_131 = arith.constant 0 : index
    %174 = vector.load %arg6[%c4, %c0_130, %c0_131] : memref<6x32x32xf32, #tpu.memory_space<vmem>>, vector<1x32x32xf32>
    %175 = vector.shape_cast %174 : vector<1x32x32xf32> to vector<32x32xf32>
    %cst_132 = arith.constant dense<0.000000e+00> : vector<32x128xf32>
    %176 = tpu.matmul %175, %173, %cst_132 {dimension_numbers = #tpu.dot_dimension_numbers<[1], [0], [0], [1], [0, 0, 1, 1], [], []>} : vector<32x32xf32>, vector<32x128xf32>, vector<32x128xf32> -> vector<32x128xf32>
    %c4_133 = arith.constant 4 : index
    %c0_134 = arith.constant 0 : index
    %c0_135 = arith.constant 0 : index
    %177 = vector.load %arg7[%c4_133, %c0_134, %c0_135] : memref<6x32x1xf32, #tpu.memory_space<vmem>>, vector<1x32x1xf32>
    %178 = vector.shape_cast %177 : vector<1x32x1xf32> to vector<32x1xf32>
    %179 = vector.broadcast %178 : vector<32x1xf32> to vector<32x128xf32>
    %180 = arith.addf %176, %179 : vector<32x128xf32>
    %cst_136 = arith.constant 0.000000e+00 : f32
    %181 = vector.broadcast %cst_136 : f32 to vector<32x128xf32>
    %182 = arith.maximumf %180, %181 : vector<32x128xf32>
    %c4_137 = arith.constant 4 : index
    %c0_138 = arith.constant 0 : index
    %c0_139 = arith.constant 0 : index
    %183 = vector.load %arg8[%c4_137, %c0_138, %c0_139] : memref<6x32x32xf32, #tpu.memory_space<vmem>>, vector<1x32x32xf32>
    %184 = vector.shape_cast %183 : vector<1x32x32xf32> to vector<32x32xf32>
    %cst_140 = arith.constant dense<0.000000e+00> : vector<32x128xf32>
    %185 = tpu.matmul %184, %182, %cst_140 {dimension_numbers = #tpu.dot_dimension_numbers<[1], [0], [0], [1], [0, 0, 1, 1], [], []>} : vector<32x32xf32>, vector<32x128xf32>, vector<32x128xf32> -> vector<32x128xf32>
    %c4_141 = arith.constant 4 : index
    %c0_142 = arith.constant 0 : index
    %c0_143 = arith.constant 0 : index
    %186 = vector.load %arg9[%c4_141, %c0_142, %c0_143] : memref<6x32x1xf32, #tpu.memory_space<vmem>>, vector<1x32x1xf32>
    %187 = vector.shape_cast %186 : vector<1x32x1xf32> to vector<32x1xf32>
    %188 = vector.broadcast %187 : vector<32x1xf32> to vector<32x128xf32>
    %189 = arith.addf %185, %188 : vector<32x128xf32>
    %c128 = arith.constant 128 : index
    %c0_144 = arith.constant 0 : index
    %190 = vector.load %arg17[%c128, %c0_144] : memref<192x128xf32, #tpu.memory_space<vmem>>, vector<32x128xf32>
    %191 = arith.mulf %189, %190 : vector<32x128xf32>
    %192 = arith.addf %171, %191 : vector<32x128xf32>
    %cst_145 = arith.constant 0.000000e+00 : f32
    %193 = vector.broadcast %cst_145 : f32 to vector<32x128xf32>
    %194 = arith.maximumf %192, %193 : vector<32x128xf32>
    %c5 = arith.constant 5 : index
    %c0_146 = arith.constant 0 : index
    %c0_147 = arith.constant 0 : index
    %195 = vector.load %arg6[%c5, %c0_146, %c0_147] : memref<6x32x32xf32, #tpu.memory_space<vmem>>, vector<1x32x32xf32>
    %196 = vector.shape_cast %195 : vector<1x32x32xf32> to vector<32x32xf32>
    %cst_148 = arith.constant dense<0.000000e+00> : vector<32x128xf32>
    %197 = tpu.matmul %196, %194, %cst_148 {dimension_numbers = #tpu.dot_dimension_numbers<[1], [0], [0], [1], [0, 0, 1, 1], [], []>} : vector<32x32xf32>, vector<32x128xf32>, vector<32x128xf32> -> vector<32x128xf32>
    %c5_149 = arith.constant 5 : index
    %c0_150 = arith.constant 0 : index
    %c0_151 = arith.constant 0 : index
    %198 = vector.load %arg7[%c5_149, %c0_150, %c0_151] : memref<6x32x1xf32, #tpu.memory_space<vmem>>, vector<1x32x1xf32>
    %199 = vector.shape_cast %198 : vector<1x32x1xf32> to vector<32x1xf32>
    %200 = vector.broadcast %199 : vector<32x1xf32> to vector<32x128xf32>
    %201 = arith.addf %197, %200 : vector<32x128xf32>
    %cst_152 = arith.constant 0.000000e+00 : f32
    %202 = vector.broadcast %cst_152 : f32 to vector<32x128xf32>
    %203 = arith.maximumf %201, %202 : vector<32x128xf32>
    %c5_153 = arith.constant 5 : index
    %c0_154 = arith.constant 0 : index
    %c0_155 = arith.constant 0 : index
    %204 = vector.load %arg8[%c5_153, %c0_154, %c0_155] : memref<6x32x32xf32, #tpu.memory_space<vmem>>, vector<1x32x32xf32>
    %205 = vector.shape_cast %204 : vector<1x32x32xf32> to vector<32x32xf32>
    %cst_156 = arith.constant dense<0.000000e+00> : vector<32x128xf32>
    %206 = tpu.matmul %205, %203, %cst_156 {dimension_numbers = #tpu.dot_dimension_numbers<[1], [0], [0], [1], [0, 0, 1, 1], [], []>} : vector<32x32xf32>, vector<32x128xf32>, vector<32x128xf32> -> vector<32x128xf32>
    %c5_157 = arith.constant 5 : index
    %c0_158 = arith.constant 0 : index
    %c0_159 = arith.constant 0 : index
    %207 = vector.load %arg9[%c5_157, %c0_158, %c0_159] : memref<6x32x1xf32, #tpu.memory_space<vmem>>, vector<1x32x1xf32>
    %208 = vector.shape_cast %207 : vector<1x32x1xf32> to vector<32x1xf32>
    %209 = vector.broadcast %208 : vector<32x1xf32> to vector<32x128xf32>
    %210 = arith.addf %206, %209 : vector<32x128xf32>
    %c160 = arith.constant 160 : index
    %c0_160 = arith.constant 0 : index
    %211 = vector.load %arg17[%c160, %c0_160] : memref<192x128xf32, #tpu.memory_space<vmem>>, vector<32x128xf32>
    %212 = arith.mulf %210, %211 : vector<32x128xf32>
    %213 = arith.addf %192, %212 : vector<32x128xf32>
    %c2_161 = arith.constant 2 : index
    %c0_162 = arith.constant 0 : index
    %c0_163 = arith.constant 0 : index
    %214 = vector.load %arg12[%c2_161, %c0_162, %c0_163] : memref<3x8x32xf32, #tpu.memory_space<vmem>>, vector<1x8x32xf32>
    %215 = vector.shape_cast %214 : vector<1x8x32xf32> to vector<8x32xf32>
    %cst_164 = arith.constant dense<0.000000e+00> : vector<8x128xf32>
    %216 = tpu.matmul %215, %213, %cst_164 {dimension_numbers = #tpu.dot_dimension_numbers<[1], [0], [0], [1], [0, 0, 1, 1], [], []>} : vector<8x32xf32>, vector<32x128xf32>, vector<8x128xf32> -> vector<8x128xf32>
    %c2_165 = arith.constant 2 : index
    %c0_166 = arith.constant 0 : index
    %c0_167 = arith.constant 0 : index
    %217 = vector.load %arg13[%c2_165, %c0_166, %c0_167] : memref<3x8x1xf32, #tpu.memory_space<vmem>>, vector<1x8x1xf32>
    %218 = vector.shape_cast %217 : vector<1x8x1xf32> to vector<8x1xf32>
    %219 = vector.broadcast %218 : vector<8x1xf32> to vector<8x128xf32>
    %220 = arith.addf %216, %219 : vector<8x128xf32>
    %221 = vector.extract_strided_slice %220 {offsets = [0, 0], sizes = [4, 128], strides = [1, 1]} : vector<8x128xf32> to vector<4x128xf32>
    %cst_168 = arith.constant 2.000000e+00 : f32
    %222 = vector.broadcast %cst_168 : f32 to vector<4x128xf32>
    %223 = arith.addf %221, %222 : vector<4x128xf32>
    %224 = arith.negf %223 : vector<4x128xf32>
    %225 = math.exp %224 : vector<4x128xf32>
    %cst_169 = arith.constant 1.000000e+00 : f32
    %226 = vector.broadcast %cst_169 : f32 to vector<4x128xf32>
    %227 = arith.addf %226, %225 : vector<4x128xf32>
    %228 = arith.divf %226, %227 : vector<4x128xf32>
    %cst_170 = arith.constant 1.000000e-03 : f32
    %229 = vector.broadcast %cst_170 : f32 to vector<4x128xf32>
    %230 = arith.addf %228, %229 : vector<4x128xf32>
    %231 = vector.extract_strided_slice %220 {offsets = [4, 0], sizes = [4, 128], strides = [1, 1]} : vector<8x128xf32> to vector<4x128xf32>
    %232 = math.log %230 : vector<4x128xf32>
    %233 = arith.addf %160, %232 : vector<4x128xf32>
    %234 = arith.mulf %230, %162 : vector<4x128xf32>
    %235 = arith.addf %234, %231 : vector<4x128xf32>
    %c0_171 = arith.constant 0 : index
    %c0_172 = arith.constant 0 : index
    %236 = vector.load %arg14[%c0_171, %c0_172] : memref<4x128xf32, #tpu.memory_space<vmem>>, vector<4x128xf32>
    tpu.vector_store %arg14[%c0_171, %c0_172], %235 {strides = array<i32>} : memref<4x128xf32, #tpu.memory_space<vmem>>, vector<4x128xf32>,
    %cst_173 = arith.constant dense<0.000000e+00> : vector<128xf32>
    %237 = vector.multi_reduction <add>, %233, %cst_173 [0] : vector<4x128xf32> to vector<128xf32>
    %238 = vector.shape_cast %237 : vector<128xf32> to vector<1x128xf32>
    %c0_174 = arith.constant 0 : index
    %c0_175 = arith.constant 0 : index
    %239 = vector.load %arg15[%c0_174, %c0_175] : memref<1x128xf32, #tpu.memory_space<vmem>>, vector<1x128xf32>
    tpu.vector_store %arg15[%c0_174, %c0_175], %238 {strides = array<i32>} : memref<1x128xf32, #tpu.memory_space<vmem>>, vector<1x128xf32>,
    return
  }
  func.func @transform_0(%arg0: i32) -> (i32, i32) {
    %c0_i32 = arith.constant 0 : i32
    %c0_i32_0 = arith.constant 0 : i32
    return %c0_i32, %arg0 : i32, i32
  }
  func.func @transform_1(%arg0: i32) -> (i32, i32) {
    %c0_i32 = arith.constant 0 : i32
    %c0_i32_0 = arith.constant 0 : i32
    return %c0_i32, %arg0 : i32, i32
  }
  func.func @transform_2(%arg0: i32) -> (i32, i32, i32) {
    %c0_i32 = arith.constant 0 : i32
    %c0_i32_0 = arith.constant 0 : i32
    %c0_i32_1 = arith.constant 0 : i32
    %c0_i32_2 = arith.constant 0 : i32
    return %c0_i32, %c0_i32_0, %c0_i32_1 : i32, i32, i32
  }
  func.func @transform_3(%arg0: i32) -> (i32, i32, i32) {
    %c0_i32 = arith.constant 0 : i32
    %c0_i32_0 = arith.constant 0 : i32
    %c0_i32_1 = arith.constant 0 : i32
    %c0_i32_2 = arith.constant 0 : i32
    return %c0_i32, %c0_i32_0, %c0_i32_1 : i32, i32, i32
  }
  func.func @transform_4(%arg0: i32) -> (i32, i32) {
    %c0_i32 = arith.constant 0 : i32
    %c0_i32_0 = arith.constant 0 : i32
    %c0_i32_1 = arith.constant 0 : i32
    return %c0_i32, %c0_i32_0 : i32, i32
  }
  func.func @transform_5(%arg0: i32) -> (i32, i32, i32) {
    %c0_i32 = arith.constant 0 : i32
    %c0_i32_0 = arith.constant 0 : i32
    %c0_i32_1 = arith.constant 0 : i32
    %c0_i32_2 = arith.constant 0 : i32
    return %c0_i32, %c0_i32_0, %c0_i32_1 : i32, i32, i32
  }
  func.func @transform_6(%arg0: i32) -> (i32, i32, i32) {
    %c0_i32 = arith.constant 0 : i32
    %c0_i32_0 = arith.constant 0 : i32
    %c0_i32_1 = arith.constant 0 : i32
    %c0_i32_2 = arith.constant 0 : i32
    return %c0_i32, %c0_i32_0, %c0_i32_1 : i32, i32, i32
  }
  func.func @transform_7(%arg0: i32) -> (i32, i32, i32) {
    %c0_i32 = arith.constant 0 : i32
    %c0_i32_0 = arith.constant 0 : i32
    %c0_i32_1 = arith.constant 0 : i32
    %c0_i32_2 = arith.constant 0 : i32
    return %c0_i32, %c0_i32_0, %c0_i32_1 : i32, i32, i32
  }
  func.func @transform_8(%arg0: i32) -> (i32, i32, i32) {
    %c0_i32 = arith.constant 0 : i32
    %c0_i32_0 = arith.constant 0 : i32
    %c0_i32_1 = arith.constant 0 : i32
    %c0_i32_2 = arith.constant 0 : i32
    return %c0_i32, %c0_i32_0, %c0_i32_1 : i32, i32, i32
  }
  func.func @transform_9(%arg0: i32) -> (i32, i32) {
    %c0_i32 = arith.constant 0 : i32
    %c0_i32_0 = arith.constant 0 : i32
    %c0_i32_1 = arith.constant 0 : i32
    return %c0_i32, %c0_i32_0 : i32, i32
  }
  func.func @transform_10(%arg0: i32) -> (i32, i32) {
    %c0_i32 = arith.constant 0 : i32
    %c0_i32_0 = arith.constant 0 : i32
    %c0_i32_1 = arith.constant 0 : i32
    return %c0_i32, %c0_i32_0 : i32, i32
  }
  func.func @transform_11(%arg0: i32) -> (i32, i32, i32) {
    %c0_i32 = arith.constant 0 : i32
    %c0_i32_0 = arith.constant 0 : i32
    %c0_i32_1 = arith.constant 0 : i32
    %c0_i32_2 = arith.constant 0 : i32
    return %c0_i32, %c0_i32_0, %c0_i32_1 : i32, i32, i32
  }
  func.func @transform_12(%arg0: i32) -> (i32, i32, i32) {
    %c0_i32 = arith.constant 0 : i32
    %c0_i32_0 = arith.constant 0 : i32
    %c0_i32_1 = arith.constant 0 : i32
    %c0_i32_2 = arith.constant 0 : i32
    return %c0_i32, %c0_i32_0, %c0_i32_1 : i32, i32, i32
  }
  func.func @transform_13(%arg0: i32) -> (i32, i32) {
    %c0_i32 = arith.constant 0 : i32
    %c0_i32_0 = arith.constant 0 : i32
    return %c0_i32, %arg0 : i32, i32
  }
  func.func @transform_14(%arg0: i32) -> (i32, i32) {
    %c0_i32 = arith.constant 0 : i32
    %c0_i32_0 = arith.constant 0 : i32
    return %c0_i32, %arg0 : i32, i32
  }
}

</mosaic_0001>

<llo_original>
// kernel: tpu_custom_call.1
$region0: #{tpu_custom_call.1}
  #allocation0 [shape = 'u32[]', space=smem, size = 0x4, offset = 0x4, fixed_abs, tag = 'smem constant byte address 0x4 - core index']
  #allocation1 [shape = 'u32[144,128]{1,0:T(1,128)}', space=vmem, size = 0x12000, scoped, tag = 'internal scratch']
  #allocation2 [shape = 'f32[96,128]{1,0:T(8,128)}', space=vmem, size = 0xc000, scoped, tag = 'scratch operand']
  #allocation3 [shape = 'f32[192,128]{1,0:T(8,128)}', space=vmem, size = 0x18000, scoped, tag = 'scratch operand']
  %s0 = inlined_call_operand.vmem [shape: f32[4,128], index: 0, kind: input, shape index: {}]
  %s1 = inlined_call_operand.vmem [shape: f32[6,128], index: 1, kind: input, shape index: {}]
  %s2 = inlined_call_operand.vmem [shape: f32[3,32,4], index: 2, kind: input, shape index: {}]
  %s3 = inlined_call_operand.vmem [shape: f32[3,32,1], index: 3, kind: input, shape index: {}]
  %s4 = inlined_call_operand.vmem [shape: f32[96,6], index: 4, kind: input, shape index: {}]
  %s5 = inlined_call_operand.vmem [shape: f32[6,32,32], index: 5, kind: input, shape index: {}]
  %s6 = inlined_call_operand.vmem [shape: f32[6,32,1], index: 6, kind: input, shape index: {}]
  %s7 = inlined_call_operand.vmem [shape: f32[6,32,32], index: 7, kind: input, shape index: {}]
  %s8 = inlined_call_operand.vmem [shape: f32[6,32,1], index: 8, kind: input, shape index: {}]
  %s9 = inlined_call_operand.vmem [shape: f32[192,6], index: 9, kind: input, shape index: {}]
  %s10 = inlined_call_operand.vmem [shape: f32[192,1], index: 10, kind: input, shape index: {}]
  %s11 = inlined_call_operand.vmem [shape: f32[3,8,32], index: 11, kind: input, shape index: {}]
  %s12 = inlined_call_operand.vmem [shape: f32[3,8,1], index: 12, kind: input, shape index: {}]
  %s13 = inlined_call_operand.hbm [shape: f32[4,128], index: 13, kind: output, shape index: {0}]
  %s14 = inlined_call_operand.hbm [shape: f32[1,128], index: 14, kind: output, shape index: {1}]
  %15 = xla_tuple %s13, %s14
  %s16 = sld [smem:[#allocation0]]
  $region70: #{tpu_custom_call.1} parent=0
    _
  %s18 = ssub.s32 1, %s16
  %s19 = scalar_select 0, %s18, %s16
  $region1: #{tpu_custom_call.1} parent=0
    #allocation4 [shape = 'u8[2048]{0}', space=vmem, size = 0x800, scoped, tag = 'output window, operand 0, single buffered']
    #allocation5 [shape = 's32[1]{0}', space=sflag, size = 0x4, scoped, tag = 'scoped memory for tpu_custom_call.1']
    #allocation6 [shape = 'u8[512]{0}', space=vmem, size = 0x400, scoped, tag = 'output window, operand 1, single buffered']
    #allocation7 [shape = 's32[1]{0}', space=sflag, size = 0x4, scoped, tag = 'scoped memory for tpu_custom_call.1']
    %20 = vsyncpa [#allocation5], 0
    %21 = vsyncpa [#allocation7], 0
    // Predicated region
    $region2: #{tpu_custom_call.1} parent=1 // pred_check
      _
    $region3: #{tpu_custom_call.1} parent=1 // pred_check_branch
      %23 = sbr.rel (0) target = $region5
    $region4: #{tpu_custom_call.1} parent=1 // pred_region
      _
    $region5: #{tpu_custom_call.1} parent=1 // pred_fallthru
      _
    // Predicated region
    $region6: #{tpu_custom_call.1} parent=1 // pred_check
      _
    $region7: #{tpu_custom_call.1} parent=1 // pred_check_branch
      %25 = sbr.rel (0) target = $region9
    $region8: #{tpu_custom_call.1} parent=1 // pred_region
      _
    $region9: #{tpu_custom_call.1} parent=1 // pred_fallthru
      _
    // Predicated region
    $region10: #{tpu_custom_call.1} parent=1 // pred_check
      _
    $region11: #{tpu_custom_call.1} parent=1 // pred_check_branch
      %27 = sbr.rel (0) target = $region13
    $region12: #{tpu_custom_call.1} parent=1 // pred_region
      _
    $region13: #{tpu_custom_call.1} parent=1 // pred_fallthru
      _
    // Predicated region
    $region14: #{tpu_custom_call.1} parent=1 // pred_check
      _
    $region15: #{tpu_custom_call.1} parent=1 // pred_check_branch
      %29 = sbr.rel (0) target = $region17
    $region16: #{tpu_custom_call.1} parent=1 // pred_region
      _
    $region17: #{tpu_custom_call.1} parent=1 // pred_fallthru
      _
    // Predicated region
    $region18: #{tpu_custom_call.1} parent=1 // pred_check
      _
    $region19: #{tpu_custom_call.1} parent=1 // pred_check_branch
      %31 = sbr.rel (0) target = $region21
    $region20: #{tpu_custom_call.1} parent=1 // pred_region
      _
    $region21: #{tpu_custom_call.1} parent=1 // pred_fallthru
      _
    // Predicated region
    $region22: #{tpu_custom_call.1} parent=1 // pred_check
      _
    $region23: #{tpu_custom_call.1} parent=1 // pred_check_branch
      %33 = sbr.rel (0) target = $region25
    $region24: #{tpu_custom_call.1} parent=1 // pred_region
      _
    $region25: #{tpu_custom_call.1} parent=1 // pred_fallthru
      _
    // Predicated region
    $region26: #{tpu_custom_call.1} parent=1 // pred_check
      _
    $region27: #{tpu_custom_call.1} parent=1 // pred_check_branch
      %35 = sbr.rel (0) target = $region29
    $region28: #{tpu_custom_call.1} parent=1 // pred_region
      _
    $region29: #{tpu_custom_call.1} parent=1 // pred_fallthru
      _
    // Predicated region
    $region30: #{tpu_custom_call.1} parent=1 // pred_check
      _
    $region31: #{tpu_custom_call.1} parent=1 // pred_check_branch
      %37 = sbr.rel (0) target = $region33
    $region32: #{tpu_custom_call.1} parent=1 // pred_region
      _
    $region33: #{tpu_custom_call.1} parent=1 // pred_fallthru
      _
    // Predicated region
    $region34: #{tpu_custom_call.1} parent=1 // pred_check
      _
    $region35: #{tpu_custom_call.1} parent=1 // pred_check_branch
      %39 = sbr.rel (0) target = $region37
    $region36: #{tpu_custom_call.1} parent=1 // pred_region
      _
    $region37: #{tpu_custom_call.1} parent=1 // pred_fallthru
      _
    // Predicated region
    $region38: #{tpu_custom_call.1} parent=1 // pred_check
      _
    $region39: #{tpu_custom_call.1} parent=1 // pred_check_branch
      %41 = sbr.rel (0) target = $region41
    $region40: #{tpu_custom_call.1} parent=1 // pred_region
      _
    $region41: #{tpu_custom_call.1} parent=1 // pred_fallthru
      _
    // Predicated region
    $region42: #{tpu_custom_call.1} parent=1 // pred_check
      _
    $region43: #{tpu_custom_call.1} parent=1 // pred_check_branch
      %43 = sbr.rel (0) target = $region45
    $region44: #{tpu_custom_call.1} parent=1 // pred_region
      _
    $region45: #{tpu_custom_call.1} parent=1 // pred_fallthru
      _
    // Predicated region
    $region46: #{tpu_custom_call.1} parent=1 // pred_check
      _
    $region47: #{tpu_custom_call.1} parent=1 // pred_check_branch
      %45 = sbr.rel (0) target = $region49
    $region48: #{tpu_custom_call.1} parent=1 // pred_region
      _
    $region49: #{tpu_custom_call.1} parent=1 // pred_fallthru
      _
    // Predicated region
    $region50: #{tpu_custom_call.1} parent=1 // pred_check
      _
    $region51: #{tpu_custom_call.1} parent=1 // pred_check_branch
      %47 = sbr.rel (0) target = $region53
    $region52: #{tpu_custom_call.1} parent=1 // pred_region
      _
    $region53: #{tpu_custom_call.1} parent=1 // pred_fallthru
      _
    %v48 = vld [vmem:[%s0] sm:$0xf]
    %v49 = vld [vmem:[%s1] sm:$0x3f]
    %v50 = vld [vmem:[%s4] sm:$0xff]
    %v51 = vld [vmem:[%s4 + $0x8] sm:$0xff]
    %v52 = vld [vmem:[%s4 + $0x10] sm:$0xff]
    %v53 = vld [vmem:[%s4 + $0x18] sm:$0xff]
    %v54 = vld [vmem:[%s4 + $0x20] sm:$0xff]
    %v55 = vld [vmem:[%s4 + $0x28] sm:$0xff]
    %v56 = vld [vmem:[%s4 + $0x30] sm:$0xff]
    %v57 = vld [vmem:[%s4 + $0x38] sm:$0xff]
    %v58 = vld [vmem:[%s4 + $0x40] sm:$0xff]
    %v59 = vld [vmem:[%s4 + $0x48] sm:$0xff]
    %v60 = vld [vmem:[%s4 + $0x50] sm:$0xff]
    %v61 = vld [vmem:[%s4 + $0x58] sm:$0xff]
    %vm62 = vcmask 48128
    %v64 = vsel %vm62, %v50, 0
    %v67 = vsel %vm62, %v51, 0
    %v70 = vsel %vm62, %v52, 0
    %v73 = vsel %vm62, %v53, 0
    %v76 = vsel %vm62, %v54, 0
    %v79 = vsel %vm62, %v55, 0
    %v82 = vsel %vm62, %v56, 0
    %v85 = vsel %vm62, %v57, 0
    %v88 = vsel %vm62, %v58, 0
    %v91 = vsel %vm62, %v59, 0
    %v94 = vsel %vm62, %v60, 0
    %v97 = vsel %vm62, %v61, 0
    %vm99 = vcmask 1045504
    %v101 = vsel %vm99, %v49, 0
    %103 = vmatprep.subr.mxu0 0.0
    %104 = vmatpush1.msra.mxu0 %v101
    %105 = vmatprep.subr.mxu0 0.0
    %106 = vmatpush1.msra.mxu0 0.0
    %107 = vmatprep.subr.mxu0 0.0
    %108 = vmatpush1.msra.mxu0 0.0
    %109 = vmatprep.subr.mxu0 0.0
    %110 = vmatpush1.msra.mxu0 0.0
    %111 = vmatprep.subr.mxu0 0.0
    %112 = vmatpush1.msra.mxu0 0.0
    %113 = vmatprep.subr.mxu0 0.0
    %114 = vmatpush1.msra.mxu0 0.0
    %115 = vmatprep.subr.mxu0 0.0
    %116 = vmatpush1.msra.mxu0 0.0
    %117 = vmatprep.subr.mxu0 0.0
    %118 = vmatpush1.msra.mxu0 0.0
    %119 = vmatprep.subr.mxu0 0.0
    %120 = vmatpush1.msra.mxu0 0.0
    %121 = vmatprep.subr.mxu0 0.0
    %122 = vmatpush1.msra.mxu0 0.0
    %123 = vmatprep.subr.mxu0 0.0
    %124 = vmatpush1.msra.mxu0 0.0
    %125 = vmatprep.subr.mxu0 0.0
    %126 = vmatpush1.msra.mxu0 0.0
    %127 = vmatprep.subr.mxu0 0.0
    %128 = vmatpush1.msra.mxu0 0.0
    %129 = vmatprep.subr.mxu0 0.0
    %130 = vmatpush1.msra.mxu0 0.0
    %131 = vmatprep.subr.mxu0 0.0
    %132 = vmatpush1.msra.mxu0 0.0
    %133 = vmatprep.subr.mxu0 0.0
    %134 = vmatpush1.msra.mxu0 0.0
    %135 = vmatprep.subr.mxu0 0.0
    %136 = vmatpush1.msra.mxu0 0.0
    %137 = vmatprep.subr.mxu0 0.0
    %138 = vmatpush1.msra.mxu0 0.0
    %139 = vmatprep.subr.mxu0 0.0
    %140 = vmatpush1.msra.mxu0 0.0
    %141 = vmatprep.subr.mxu0 0.0
    %142 = vmatpush1.msra.mxu0 0.0
    %143 = vmatprep.subr.mxu0 0.0
    %144 = vmatpush1.msra.mxu0 0.0
    %145 = vmatprep.subr.mxu0 0.0
    %146 = vmatpush1.msra.mxu0 0.0
    %147 = vmatprep.subr.mxu0 0.0
    %148 = vmatpush1.msra.mxu0 0.0
    %149 = vmatprep.subr.mxu0 0.0
    %150 = vmatpush1.msra.mxu0 0.0
    %151 = vmatprep.subr.mxu0 0.0
    %152 = vmatpush1.msra.mxu0 0.0
    %153 = vmatprep.subr.mxu0 0.0
    %154 = vmatpush1.msra.mxu0 0.0
    %155 = vmatprep.subr.mxu0 0.0
    %156 = vmatpush1.msra.mxu0 0.0
    %157 = vmatprep.subr.mxu0 0.0
    %158 = vmatpush1.msra.mxu0 0.0
    %159 = vmatprep.subr.mxu0 0.0
    %160 = vmatpush1.msra.mxu0 0.0
    %161 = vmatprep.subr.mxu0 0.0
    %162 = vmatpush1.msra.mxu0 0.0
    %163 = vmatprep.subr.mxu0 0.0
    %164 = vmatpush1.msra.mxu0 0.0
    %165 = vmatprep.subr.mxu0 0.0
    %166 = vmatpush1.msra.mxu0 0.0
    %167 = vmatprep.mubr.f32.mxu0 0.0
    %168 = vmatmul.mubr.f32.gmra.mrb[0].mxu0 %v64
    %v169 = vpop.f32.mrb[0].mxu0
    %v170 = vadd.f32 0.0, %v169
    %v171 = vpop.f32.mrb[0].mxu0
    %172 = vmatprep.mubr.f32.mxu0 0.0
    %173 = vmatmul.mubr.f32.gmra.mrb[0].mxu0 %v67
    %v174 = vpop.f32.mrb[0].mxu0
    %v175 = vadd.f32 0.0, %v174
    %v176 = vpop.f32.mrb[0].mxu0
    %177 = vmatprep.mubr.f32.mxu0 0.0
    %178 = vmatmul.mubr.f32.gmra.mrb[0].mxu0 %v70
    %v179 = vpop.f32.mrb[0].mxu0
    %v180 = vadd.f32 0.0, %v179
    %v181 = vpop.f32.mrb[0].mxu0
    %182 = vmatprep.mubr.f32.mxu0 0.0
    %183 = vmatmul.mubr.f32.gmra.mrb[0].mxu0 %v73
    %v184 = vpop.f32.mrb[0].mxu0
    %v185 = vadd.f32 0.0, %v184
    %v186 = vpop.f32.mrb[0].mxu0
    %187 = vmatprep.mubr.f32.mxu0 0.0
    %188 = vmatmul.mubr.f32.gmra.mrb[0].mxu0 %v76
    %v189 = vpop.f32.mrb[0].mxu0
    %v190 = vadd.f32 0.0, %v189
    %v191 = vpop.f32.mrb[0].mxu0
    %192 = vmatprep.mubr.f32.mxu0 0.0
    %193 = vmatmul.mubr.f32.gmra.mrb[0].mxu0 %v79
    %v194 = vpop.f32.mrb[0].mxu0
    %v195 = vadd.f32 0.0, %v194
    %v196 = vpop.f32.mrb[0].mxu0
    %197 = vmatprep.mubr.f32.mxu0 0.0
    %198 = vmatmul.mubr.f32.gmra.mrb[0].mxu0 %v82
    %v199 = vpop.f32.mrb[0].mxu0
    %v200 = vadd.f32 0.0, %v199
    %v201 = vpop.f32.mrb[0].mxu0
    %202 = vmatprep.mubr.f32.mxu0 0.0
    %203 = vmatmul.mubr.f32.gmra.mrb[0].mxu0 %v85
    %v204 = vpop.f32.mrb[0].mxu0
    %v205 = vadd.f32 0.0, %v204
    %v206 = vpop.f32.mrb[0].mxu0
    %207 = vmatprep.mubr.f32.mxu0 0.0
    %208 = vmatmul.mubr.f32.gmra.mrb[0].mxu0 %v88
    %v209 = vpop.f32.mrb[0].mxu0
    %v210 = vadd.f32 0.0, %v209
    %v211 = vpop.f32.mrb[0].mxu0
    %212 = vmatprep.mubr.f32.mxu0 0.0
    %213 = vmatmul.mubr.f32.gmra.mrb[0].mxu0 %v91
    %v214 = vpop.f32.mrb[0].mxu0
    %v215 = vadd.f32 0.0, %v214
    %v216 = vpop.f32.mrb[0].mxu0
    %217 = vmatprep.mubr.f32.mxu0 0.0
    %218 = vmatmul.mubr.f32.gmra.mrb[0].mxu0 %v94
    %v219 = vpop.f32.mrb[0].mxu0
    %v220 = vadd.f32 0.0, %v219
    %v221 = vpop.f32.mrb[0].mxu0
    %222 = vmatprep.mubr.f32.mxu0 0.0
    %223 = vmatmul.mubr.f32.gmra.mrb[0].mxu0 %v97
    %v224 = vpop.f32.mrb[0].mxu0
    %v225 = vadd.f32 0.0, %v224
    %v226 = vpop.f32.mrb[0].mxu0
    %227 = vdwg.mxu0
    %228 = vst [vmem:[#allocation2] sm:$0xff] %v170
    %229 = vst [vmem:[#allocation2 + $0x8] sm:$0xff] %v175
    %230 = vst [vmem:[#allocation2 + $0x10] sm:$0xff] %v180
    %231 = vst [vmem:[#allocation2 + $0x18] sm:$0xff] %v185
    %232 = vst [vmem:[#allocation2 + $0x20] sm:$0xff] %v190
    %233 = vst [vmem:[#allocation2 + $0x28] sm:$0xff] %v195
    %234 = vst [vmem:[#allocation2 + $0x30] sm:$0xff] %v200
    %235 = vst [vmem:[#allocation2 + $0x38] sm:$0xff] %v205
    %236 = vst [vmem:[#allocation2 + $0x40] sm:$0xff] %v210
    %237 = vst [vmem:[#allocation2 + $0x48] sm:$0xff] %v215
    %238 = vst [vmem:[#allocation2 + $0x50] sm:$0xff] %v220
    %239 = vst [vmem:[#allocation2 + $0x58] sm:$0xff] %v225
    %v240 = vld [vmem:[%s9] sm:$0xff]
    %v241 = vld [vmem:[%s9 + $0x8] sm:$0xff]
    %v242 = vld [vmem:[%s9 + $0x10] sm:$0xff]
    %v243 = vld [vmem:[%s9 + $0x18] sm:$0xff]
    %v244 = vld [vmem:[%s9 + $0x20] sm:$0xff]
    %v245 = vld [vmem:[%s9 + $0x28] sm:$0xff]
    %v246 = vld [vmem:[%s9 + $0x30] sm:$0xff]
    %v247 = vld [vmem:[%s9 + $0x38] sm:$0xff]
    %v248 = vld [vmem:[%s9 + $0x40] sm:$0xff]
    %v249 = vld [vmem:[%s9 + $0x48] sm:$0xff]
    %v250 = vld [vmem:[%s9 + $0x50] sm:$0xff]
    %v251 = vld [vmem:[%s9 + $0x58] sm:$0xff]
    %v252 = vld [vmem:[%s9 + $0x60] sm:$0xff]
    %v253 = vld [vmem:[%s9 + $0x68] sm:$0xff]
    %v254 = vld [vmem:[%s9 + $0x70] sm:$0xff]
    %v255 = vld [vmem:[%s9 + $0x78] sm:$0xff]
    %v256 = vld [vmem:[%s9 + $0x80] sm:$0xff]
    %v257 = vld [vmem:[%s9 + $0x88] sm:$0xff]
    %v258 = vld [vmem:[%s9 + $0x90] sm:$0xff]
    %v259 = vld [vmem:[%s9 + $0x98] sm:$0xff]
    %v260 = vld [vmem:[%s9 + $0xa0] sm:$0xff]
    %v261 = vld [vmem:[%s9 + $0xa8] sm:$0xff]
    %v262 = vld [vmem:[%s9 + $0xb0] sm:$0xff]
    %v263 = vld [vmem:[%s9 + $0xb8] sm:$0xff]
    %v264 = vld [vmem:[%s10] sm:$0xff]
    %v265 = vld [vmem:[%s10 + $0x8] sm:$0xff]
    %v266 = vld [vmem:[%s10 + $0x10] sm:$0xff]
    %v267 = vld [vmem:[%s10 + $0x18] sm:$0xff]
    %v268 = vld [vmem:[%s10 + $0x20] sm:$0xff]
    %v269 = vld [vmem:[%s10 + $0x28] sm:$0xff]
    %v270 = vld [vmem:[%s10 + $0x30] sm:$0xff]
    %v271 = vld [vmem:[%s10 + $0x38] sm:$0xff]
    %v272 = vld [vmem:[%s10 + $0x40] sm:$0xff]
    %v273 = vld [vmem:[%s10 + $0x48] sm:$0xff]
    %v274 = vld [vmem:[%s10 + $0x50] sm:$0xff]
    %v275 = vld [vmem:[%s10 + $0x58] sm:$0xff]
    %v276 = vld [vmem:[%s10 + $0x60] sm:$0xff]
    %v277 = vld [vmem:[%s10 + $0x68] sm:$0xff]
    %v278 = vld [vmem:[%s10 + $0x70] sm:$0xff]
    %v279 = vld [vmem:[%s10 + $0x78] sm:$0xff]
    %v280 = vld [vmem:[%s10 + $0x80] sm:$0xff]
    %v281 = vld [vmem:[%s10 + $0x88] sm:$0xff]
    %v282 = vld [vmem:[%s10 + $0x90] sm:$0xff]
    %v283 = vld [vmem:[%s10 + $0x98] sm:$0xff]
    %v284 = vld [vmem:[%s10 + $0xa0] sm:$0xff]
    %v285 = vld [vmem:[%s10 + $0xa8] sm:$0xff]
    %v286 = vld [vmem:[%s10 + $0xb0] sm:$0xff]
    %v287 = vld [vmem:[%s10 + $0xb8] sm:$0xff]
    %289 = vset.pattern.permute.xlu0 0
    %290 = vperm.xlu0 %289, %v264
    %v291 = vpop.permute.xlu0 %290
    %294 = vset.pattern.permute.xlu0 0
    %295 = vperm.xlu0 %294, %v265
    %v296 = vpop.permute.xlu0 %295
    %299 = vset.pattern.permute.xlu0 0
    %300 = vperm.xlu0 %299, %v266
    %v301 = vpop.permute.xlu0 %300
    %304 = vset.pattern.permute.xlu0 0
    %305 = vperm.xlu0 %304, %v267
    %v306 = vpop.permute.xlu0 %305
    %309 = vset.pattern.permute.xlu0 0
    %310 = vperm.xlu0 %309, %v268
    %v311 = vpop.permute.xlu0 %310
    %314 = vset.pattern.permute.xlu0 0
    %315 = vperm.xlu0 %314, %v269
    %v316 = vpop.permute.xlu0 %315
    %319 = vset.pattern.permute.xlu0 0
    %320 = vperm.xlu0 %319, %v270
    %v321 = vpop.permute.xlu0 %320
    %324 = vset.pattern.permute.xlu0 0
    %325 = vperm.xlu0 %324, %v271
    %v326 = vpop.permute.xlu0 %325
    %329 = vset.pattern.permute.xlu0 0
    %330 = vperm.xlu0 %329, %v272
    %v331 = vpop.permute.xlu0 %330
    %334 = vset.pattern.permute.xlu0 0
    %335 = vperm.xlu0 %334, %v273
    %v336 = vpop.permute.xlu0 %335
    %339 = vset.pattern.permute.xlu0 0
    %340 = vperm.xlu0 %339, %v274
    %v341 = vpop.permute.xlu0 %340
    %344 = vset.pattern.permute.xlu0 0
    %345 = vperm.xlu0 %344, %v275
    %v346 = vpop.permute.xlu0 %345
    %349 = vset.pattern.permute.xlu0 0
    %350 = vperm.xlu0 %349, %v276
    %v351 = vpop.permute.xlu0 %350
    %354 = vset.pattern.permute.xlu0 0
    %355 = vperm.xlu0 %354, %v277
    %v356 = vpop.permute.xlu0 %355
    %359 = vset.pattern.permute.xlu0 0
    %360 = vperm.xlu0 %359, %v278
    %v361 = vpop.permute.xlu0 %360
    %364 = vset.pattern.permute.xlu0 0
    %365 = vperm.xlu0 %364, %v279
    %v366 = vpop.permute.xlu0 %365
    %369 = vset.pattern.permute.xlu0 0
    %370 = vperm.xlu0 %369, %v280
    %v371 = vpop.permute.xlu0 %370
    %374 = vset.pattern.permute.xlu0 0
    %375 = vperm.xlu0 %374, %v281
    %v376 = vpop.permute.xlu0 %375
    %379 = vset.pattern.permute.xlu0 0
    %380 = vperm.xlu0 %379, %v282
    %v381 = vpop.permute.xlu0 %380
    %384 = vset.pattern.permute.xlu0 0
    %385 = vperm.xlu0 %384, %v283
    %v386 = vpop.permute.xlu0 %385
    %389 = vset.pattern.permute.xlu0 0
    %390 = vperm.xlu0 %389, %v284
    %v391 = vpop.permute.xlu0 %390
    %394 = vset.pattern.permute.xlu0 0
    %395 = vperm.xlu0 %394, %v285
    %v396 = vpop.permute.xlu0 %395
    %399 = vset.pattern.permute.xlu0 0
    %400 = vperm.xlu0 %399, %v286
    %v401 = vpop.permute.xlu0 %400
    %404 = vset.pattern.permute.xlu0 0
    %405 = vperm.xlu0 %404, %v287
    %v406 = vpop.permute.xlu0 %405
    %v409 = vsel %vm62, %v240, 0
    %v412 = vsel %vm62, %v241, 0
    %v415 = vsel %vm62, %v242, 0
    %v418 = vsel %vm62, %v243, 0
    %v421 = vsel %vm62, %v244, 0
    %v424 = vsel %vm62, %v245, 0
    %v427 = vsel %vm62, %v246, 0
    %v430 = vsel %vm62, %v247, 0
    %v433 = vsel %vm62, %v248, 0
    %v436 = vsel %vm62, %v249, 0
    %v439 = vsel %vm62, %v250, 0
    %v442 = vsel %vm62, %v251, 0
    %v445 = vsel %vm62, %v252, 0
    %v448 = vsel %vm62, %v253, 0
    %v451 = vsel %vm62, %v254, 0
    %v454 = vsel %vm62, %v255, 0
    %v457 = vsel %vm62, %v256, 0
    %v460 = vsel %vm62, %v257, 0
    %v463 = vsel %vm62, %v258, 0
    %v466 = vsel %vm62, %v259, 0
    %v469 = vsel %vm62, %v260, 0
    %v472 = vsel %vm62, %v261, 0
    %v475 = vsel %vm62, %v262, 0
    %v478 = vsel %vm62, %v263, 0
    %480 = vmatprep.subr.mxu0 0.0
    %481 = vmatpush1.msra.mxu0 %v101
    %482 = vmatprep.subr.mxu0 0.0
    %483 = vmatpush1.msra.mxu0 0.0
    %484 = vmatprep.subr.mxu0 0.0
    %485 = vmatpush1.msra.mxu0 0.0
    %486 = vmatprep.subr.mxu0 0.0
    %487 = vmatpush1.msra.mxu0 0.0
    %488 = vmatprep.subr.mxu0 0.0
    %489 = vmatpush1.msra.mxu0 0.0
    %490 = vmatprep.subr.mxu0 0.0
    %491 = vmatpush1.msra.mxu0 0.0
    %492 = vmatprep.subr.mxu0 0.0
    %493 = vmatpush1.msra.mxu0 0.0
    %494 = vmatprep.subr.mxu0 0.0
    %495 = vmatpush1.msra.mxu0 0.0
    %496 = vmatprep.subr.mxu0 0.0
    %497 = vmatpush1.msra.mxu0 0.0
    %498 = vmatprep.subr.mxu0 0.0
    %499 = vmatpush1.msra.mxu0 0.0
    %500 = vmatprep.subr.mxu0 0.0
    %501 = vmatpush1.msra.mxu0 0.0
    %502 = vmatprep.subr.mxu0 0.0
    %503 = vmatpush1.msra.mxu0 0.0
    %504 = vmatprep.subr.mxu0 0.0
    %505 = vmatpush1.msra.mxu0 0.0
    %506 = vmatprep.subr.mxu0 0.0
    %507 = vmatpush1.msra.mxu0 0.0
    %508 = vmatprep.subr.mxu0 0.0
    %509 = vmatpush1.msra.mxu0 0.0
    %510 = vmatprep.subr.mxu0 0.0
    %511 = vmatpush1.msra.mxu0 0.0
    %512 = vmatprep.subr.mxu0 0.0
    %513 = vmatpush1.msra.mxu0 0.0
    %514 = vmatprep.subr.mxu0 0.0
    %515 = vmatpush1.msra.mxu0 0.0
    %516 = vmatprep.subr.mxu0 0.0
    %517 = vmatpush1.msra.mxu0 0.0
    %518 = vmatprep.subr.mxu0 0.0
    %519 = vmatpush1.msra.mxu0 0.0
    %520 = vmatprep.subr.mxu0 0.0
    %521 = vmatpush1.msra.mxu0 0.0
    %522 = vmatprep.subr.mxu0 0.0
    %523 = vmatpush1.msra.mxu0 0.0
    %524 = vmatprep.subr.mxu0 0.0
    %525 = vmatpush1.msra.mxu0 0.0
    %526 = vmatprep.subr.mxu0 0.0
    %527 = vmatpush1.msra.mxu0 0.0
    %528 = vmatprep.subr.mxu0 0.0
    %529 = vmatpush1.msra.mxu0 0.0
    %530 = vmatprep.subr.mxu0 0.0
    %531 = vmatpush1.msra.mxu0 0.0
    %532 = vmatprep.subr.mxu0 0.0
    %533 = vmatpush1.msra.mxu0 0.0
    %534 = vmatprep.subr.mxu0 0.0
    %535 = vmatpush1.msra.mxu0 0.0
    %536 = vmatprep.subr.mxu0 0.0
    %537 = vmatpush1.msra.mxu0 0.0
    %538 = vmatprep.subr.mxu0 0.0
    %539 = vmatpush1.msra.mxu0 0.0
    %540 = vmatprep.subr.mxu0 0.0
    %541 = vmatpush1.msra.mxu0 0.0
    %542 = vmatprep.subr.mxu0 0.0
    %543 = vmatpush1.msra.mxu0 0.0
    %544 = vmatprep.mubr.f32.mxu0 0.0
    %545 = vmatmul.mubr.f32.gmra.mrb[0].mxu0 %v409
    %v546 = vpop.f32.mrb[0].mxu0
    %v547 = vadd.f32 %v291, %v546
    %v548 = vpop.f32.mrb[0].mxu0
    %549 = vmatprep.mubr.f32.mxu0 0.0
    %550 = vmatmul.mubr.f32.gmra.mrb[0].mxu0 %v412
    %v551 = vpop.f32.mrb[0].mxu0
    %v552 = vadd.f32 %v296, %v551
    %v553 = vpop.f32.mrb[0].mxu0
    %554 = vmatprep.mubr.f32.mxu0 0.0
    %555 = vmatmul.mubr.f32.gmra.mrb[0].mxu0 %v415
    %v556 = vpop.f32.mrb[0].mxu0
    %v557 = vadd.f32 %v301, %v556
    %v558 = vpop.f32.mrb[0].mxu0
    %559 = vmatprep.mubr.f32.mxu0 0.0
    %560 = vmatmul.mubr.f32.gmra.mrb[0].mxu0 %v418
    %v561 = vpop.f32.mrb[0].mxu0
    %v562 = vadd.f32 %v306, %v561
    %v563 = vpop.f32.mrb[0].mxu0
    %564 = vmatprep.mubr.f32.mxu0 0.0
    %565 = vmatmul.mubr.f32.gmra.mrb[0].mxu0 %v421
    %v566 = vpop.f32.mrb[0].mxu0
    %v567 = vadd.f32 %v311, %v566
    %v568 = vpop.f32.mrb[0].mxu0
    %569 = vmatprep.mubr.f32.mxu0 0.0
    %570 = vmatmul.mubr.f32.gmra.mrb[0].mxu0 %v424
    %v571 = vpop.f32.mrb[0].mxu0
    %v572 = vadd.f32 %v316, %v571
    %v573 = vpop.f32.mrb[0].mxu0
    %574 = vmatprep.mubr.f32.mxu0 0.0
    %575 = vmatmul.mubr.f32.gmra.mrb[0].mxu0 %v427
    %v576 = vpop.f32.mrb[0].mxu0
    %v577 = vadd.f32 %v321, %v576
    %v578 = vpop.f32.mrb[0].mxu0
    %579 = vmatprep.mubr.f32.mxu0 0.0
    %580 = vmatmul.mubr.f32.gmra.mrb[0].mxu0 %v430
    %v581 = vpop.f32.mrb[0].mxu0
    %v582 = vadd.f32 %v326, %v581
    %v583 = vpop.f32.mrb[0].mxu0
    %584 = vmatprep.mubr.f32.mxu0 0.0
    %585 = vmatmul.mubr.f32.gmra.mrb[0].mxu0 %v433
    %v586 = vpop.f32.mrb[0].mxu0
    %v587 = vadd.f32 %v331, %v586
    %v588 = vpop.f32.mrb[0].mxu0
    %589 = vmatprep.mubr.f32.mxu0 0.0
    %590 = vmatmul.mubr.f32.gmra.mrb[0].mxu0 %v436
    %v591 = vpop.f32.mrb[0].mxu0
    %v592 = vadd.f32 %v336, %v591
    %v593 = vpop.f32.mrb[0].mxu0
    %594 = vmatprep.mubr.f32.mxu0 0.0
    %595 = vmatmul.mubr.f32.gmra.mrb[0].mxu0 %v439
    %v596 = vpop.f32.mrb[0].mxu0
    %v597 = vadd.f32 %v341, %v596
    %v598 = vpop.f32.mrb[0].mxu0
    %599 = vmatprep.mubr.f32.mxu0 0.0
    %600 = vmatmul.mubr.f32.gmra.mrb[0].mxu0 %v442
    %v601 = vpop.f32.mrb[0].mxu0
    %v602 = vadd.f32 %v346, %v601
    %v603 = vpop.f32.mrb[0].mxu0
    %604 = vmatprep.mubr.f32.mxu0 0.0
    %605 = vmatmul.mubr.f32.gmra.mrb[0].mxu0 %v445
    %v606 = vpop.f32.mrb[0].mxu0
    %v607 = vadd.f32 %v351, %v606
    %v608 = vpop.f32.mrb[0].mxu0
    %609 = vmatprep.mubr.f32.mxu0 0.0
    %610 = vmatmul.mubr.f32.gmra.mrb[0].mxu0 %v448
    %v611 = vpop.f32.mrb[0].mxu0
    %v612 = vadd.f32 %v356, %v611
    %v613 = vpop.f32.mrb[0].mxu0
    %614 = vmatprep.mubr.f32.mxu0 0.0
    %615 = vmatmul.mubr.f32.gmra.mrb[0].mxu0 %v451
    %v616 = vpop.f32.mrb[0].mxu0
    %v617 = vadd.f32 %v361, %v616
    %v618 = vpop.f32.mrb[0].mxu0
    %619 = vmatprep.mubr.f32.mxu0 0.0
    %620 = vmatmul.mubr.f32.gmra.mrb[0].mxu0 %v454
    %v621 = vpop.f32.mrb[0].mxu0
    %v622 = vadd.f32 %v366, %v621
    %v623 = vpop.f32.mrb[0].mxu0
    %624 = vmatprep.mubr.f32.mxu0 0.0
    %625 = vmatmul.mubr.f32.gmra.mrb[0].mxu0 %v457
    %v626 = vpop.f32.mrb[0].mxu0
    %v627 = vadd.f32 %v371, %v626
    %v628 = vpop.f32.mrb[0].mxu0
    %629 = vmatprep.mubr.f32.mxu0 0.0
    %630 = vmatmul.mubr.f32.gmra.mrb[0].mxu0 %v460
    %v631 = vpop.f32.mrb[0].mxu0
    %v632 = vadd.f32 %v376, %v631
    %v633 = vpop.f32.mrb[0].mxu0
    %634 = vmatprep.mubr.f32.mxu0 0.0
    %635 = vmatmul.mubr.f32.gmra.mrb[0].mxu0 %v463
    %v636 = vpop.f32.mrb[0].mxu0
    %v637 = vadd.f32 %v381, %v636
    %v638 = vpop.f32.mrb[0].mxu0
    %639 = vmatprep.mubr.f32.mxu0 0.0
    %640 = vmatmul.mubr.f32.gmra.mrb[0].mxu0 %v466
    %v641 = vpop.f32.mrb[0].mxu0
    %v642 = vadd.f32 %v386, %v641
    %v643 = vpop.f32.mrb[0].mxu0
    %644 = vmatprep.mubr.f32.mxu0 0.0
    %645 = vmatmul.mubr.f32.gmra.mrb[0].mxu0 %v469
    %v646 = vpop.f32.mrb[0].mxu0
    %v647 = vadd.f32 %v391, %v646
    %v648 = vpop.f32.mrb[0].mxu0
    %649 = vmatprep.mubr.f32.mxu0 0.0
    %650 = vmatmul.mubr.f32.gmra.mrb[0].mxu0 %v472
    %v651 = vpop.f32.mrb[0].mxu0
    %v652 = vadd.f32 %v396, %v651
    %v653 = vpop.f32.mrb[0].mxu0
    %654 = vmatprep.mubr.f32.mxu0 0.0
    %655 = vmatmul.mubr.f32.gmra.mrb[0].mxu0 %v475
    %v656 = vpop.f32.mrb[0].mxu0
    %v657 = vadd.f32 %v401, %v656
    %v658 = vpop.f32.mrb[0].mxu0
    %659 = vmatprep.mubr.f32.mxu0 0.0
    %660 = vmatmul.mubr.f32.gmra.mrb[0].mxu0 %v478
    %v661 = vpop.f32.mrb[0].mxu0
    %v662 = vadd.f32 %v406, %v661
    %v663 = vpop.f32.mrb[0].mxu0
    %664 = vdwg.mxu0
    %v665 = vxor.u32 %v547, 2147483648
    %v666 = vxor.u32 %v552, 2147483648
    %v667 = vxor.u32 %v557, 2147483648
    %v668 = vxor.u32 %v562, 2147483648
    %v669 = vxor.u32 %v567, 2147483648
    %v670 = vxor.u32 %v572, 2147483648
    %v671 = vxor.u32 %v577, 2147483648
    %v672 = vxor.u32 %v582, 2147483648
    %v673 = vxor.u32 %v587, 2147483648
    %v674 = vxor.u32 %v592, 2147483648
    %v675 = vxor.u32 %v597, 2147483648
    %v676 = vxor.u32 %v602, 2147483648
    %v677 = vxor.u32 %v607, 2147483648
    %v678 = vxor.u32 %v612, 2147483648
    %v679 = vxor.u32 %v617, 2147483648
    %v680 = vxor.u32 %v622, 2147483648
    %v681 = vxor.u32 %v627, 2147483648
    %v682 = vxor.u32 %v632, 2147483648
    %v683 = vxor.u32 %v637, 2147483648
    %v684 = vxor.u32 %v642, 2147483648
    %v685 = vxor.u32 %v647, 2147483648
    %v686 = vxor.u32 %v652, 2147483648
    %v687 = vxor.u32 %v657, 2147483648
    %v688 = vxor.u32 %v662, 2147483648
    %v689 = vmul.f32 %v665, 1.442695
    %v690 = vpow.pop %v689
    %v691 = vmul.f32 %v666, 1.442695
    %v692 = vpow.pop %v691
    %v693 = vmul.f32 %v667, 1.442695
    %v694 = vpow.pop %v693
    %v695 = vmul.f32 %v668, 1.442695
    %v696 = vpow.pop %v695
    %v697 = vmul.f32 %v669, 1.442695
    %v698 = vpow.pop %v697
    %v699 = vmul.f32 %v670, 1.442695
    %v700 = vpow.pop %v699
    %v701 = vmul.f32 %v671, 1.442695
    %v702 = vpow.pop %v701
    %v703 = vmul.f32 %v672, 1.442695
    %v704 = vpow.pop %v703
    %v705 = vmul.f32 %v673, 1.442695
    %v706 = vpow.pop %v705
    %v707 = vmul.f32 %v674, 1.442695
    %v708 = vpow.pop %v707
    %v709 = vmul.f32 %v675, 1.442695
    %v710 = vpow.pop %v709
    %v711 = vmul.f32 %v676, 1.442695
    %v712 = vpow.pop %v711
    %v713 = vmul.f32 %v677, 1.442695
    %v714 = vpow.pop %v713
    %v715 = vmul.f32 %v678, 1.442695
    %v716 = vpow.pop %v715
    %v717 = vmul.f32 %v679, 1.442695
    %v718 = vpow.pop %v717
    %v719 = vmul.f32 %v680, 1.442695
    %v720 = vpow.pop %v719
    %v721 = vmul.f32 %v681, 1.442695
    %v722 = vpow.pop %v721
    %v723 = vmul.f32 %v682, 1.442695
    %v724 = vpow.pop %v723
    %v725 = vmul.f32 %v683, 1.442695
    %v726 = vpow.pop %v725
    %v727 = vmul.f32 %v684, 1.442695
    %v728 = vpow.pop %v727
    %v729 = vmul.f32 %v685, 1.442695
    %v730 = vpow.pop %v729
    %v731 = vmul.f32 %v686, 1.442695
    %v732 = vpow.pop %v731
    %v733 = vmul.f32 %v687, 1.442695
    %v734 = vpow.pop %v733
    %v735 = vmul.f32 %v688, 1.442695
    %v736 = vpow.pop %v735
    %v737 = vadd.f32 %v690, 1.0
    %v738 = vadd.f32 %v692, 1.0
    %v739 = vadd.f32 %v694, 1.0
    %v740 = vadd.f32 %v696, 1.0
    %v741 = vadd.f32 %v698, 1.0
    %v742 = vadd.f32 %v700, 1.0
    %v743 = vadd.f32 %v702, 1.0
    %v744 = vadd.f32 %v704, 1.0
    %v745 = vadd.f32 %v706, 1.0
    %v746 = vadd.f32 %v708, 1.0
    %v747 = vadd.f32 %v710, 1.0
    %v748 = vadd.f32 %v712, 1.0
    %v749 = vadd.f32 %v714, 1.0
    %v750 = vadd.f32 %v716, 1.0
    %v751 = vadd.f32 %v718, 1.0
    %v752 = vadd.f32 %v720, 1.0
    %v753 = vadd.f32 %v722, 1.0
    %v754 = vadd.f32 %v724, 1.0
    %v755 = vadd.f32 %v726, 1.0
    %v756 = vadd.f32 %v728, 1.0
    %v757 = vadd.f32 %v730, 1.0
    %v758 = vadd.f32 %v732, 1.0
    %v759 = vadd.f32 %v734, 1.0
    %v760 = vadd.f32 %v736, 1.0
    %v761 = vrcp.pop %v737
    %v762 = vmul.f32 1.0, %v761
    %v763 = vrcp.pop %v738
    %v764 = vmul.f32 1.0, %v763
    %v765 = vrcp.pop %v739
    %v766 = vmul.f32 1.0, %v765
    %v767 = vrcp.pop %v740
    %v768 = vmul.f32 1.0, %v767
    %v769 = vrcp.pop %v741
    %v770 = vmul.f32 1.0, %v769
    %v771 = vrcp.pop %v742
    %v772 = vmul.f32 1.0, %v771
    %v773 = vrcp.pop %v743
    %v774 = vmul.f32 1.0, %v773
    %v775 = vrcp.pop %v744
    %v776 = vmul.f32 1.0, %v775
    %v777 = vrcp.pop %v745
    %v778 = vmul.f32 1.0, %v777
    %v779 = vrcp.pop %v746
    %v780 = vmul.f32 1.0, %v779
    %v781 = vrcp.pop %v747
    %v782 = vmul.f32 1.0, %v781
    %v783 = vrcp.pop %v748
    %v784 = vmul.f32 1.0, %v783
    %v785 = vrcp.pop %v749
    %v786 = vmul.f32 1.0, %v785
    %v787 = vrcp.pop %v750
    %v788 = vmul.f32 1.0, %v787
    %v789 = vrcp.pop %v751
    %v790 = vmul.f32 1.0, %v789
    %v791 = vrcp.pop %v752
    %v792 = vmul.f32 1.0, %v791
    %v793 = vrcp.pop %v753
    %v794 = vmul.f32 1.0, %v793
    %v795 = vrcp.pop %v754
    %v796 = vmul.f32 1.0, %v795
    %v797 = vrcp.pop %v755
    %v798 = vmul.f32 1.0, %v797
    %v799 = vrcp.pop %v756
    %v800 = vmul.f32 1.0, %v799
    %v801 = vrcp.pop %v757
    %v802 = vmul.f32 1.0, %v801
    %v803 = vrcp.pop %v758
    %v804 = vmul.f32 1.0, %v803
    %v805 = vrcp.pop %v759
    %v806 = vmul.f32 1.0, %v805
    %v807 = vrcp.pop %v760
    %v808 = vmul.f32 1.0, %v807
    %809 = vst [vmem:[#allocation3] sm:$0xff] %v762
    %810 = vst [vmem:[#allocation3 + $0x8] sm:$0xff] %v764
    %811 = vst [vmem:[#allocation3 + $0x10] sm:$0xff] %v766
    %812 = vst [vmem:[#allocation3 + $0x18] sm:$0xff] %v768
    %813 = vst [vmem:[#allocation3 + $0x20] sm:$0xff] %v770
    %814 = vst [vmem:[#allocation3 + $0x28] sm:$0xff] %v772
    %815 = vst [vmem:[#allocation3 + $0x30] sm:$0xff] %v774
    %816 = vst [vmem:[#allocation3 + $0x38] sm:$0xff] %v776
    %817 = vst [vmem:[#allocation3 + $0x40] sm:$0xff] %v778
    %818 = vst [vmem:[#allocation3 + $0x48] sm:$0xff] %v780
    %819 = vst [vmem:[#allocation3 + $0x50] sm:$0xff] %v782
    %820 = vst [vmem:[#allocation3 + $0x58] sm:$0xff] %v784
    %821 = vst [vmem:[#allocation3 + $0x60] sm:$0xff] %v786
    %822 = vst [vmem:[#allocation3 + $0x68] sm:$0xff] %v788
    %823 = vst [vmem:[#allocation3 + $0x70] sm:$0xff] %v790
    %824 = vst [vmem:[#allocation3 + $0x78] sm:$0xff] %v792
    %825 = vst [vmem:[#allocation3 + $0x80] sm:$0xff] %v794
    %826 = vst [vmem:[#allocation3 + $0x88] sm:$0xff] %v796
    %827 = vst [vmem:[#allocation3 + $0x90] sm:$0xff] %v798
    %828 = vst [vmem:[#allocation3 + $0x98] sm:$0xff] %v800
    %829 = vst [vmem:[#allocation3 + $0xa0] sm:$0xff] %v802
    %830 = vst [vmem:[#allocation3 + $0xa8] sm:$0xff] %v804
    %831 = vst [vmem:[#allocation3 + $0xb0] sm:$0xff] %v806
    %832 = vst [vmem:[#allocation3 + $0xb8] sm:$0xff] %v808
    %v833 = vld [vmem:[%s2] sm:$0xff]
    %v834 = vld [vmem:[%s2 + $0x8] sm:$0xff]
    %v835 = vld [vmem:[%s2 + $0x10] sm:$0xff]
    %v836 = vld [vmem:[%s2 + $0x18] sm:$0xff]
    %v837 = vld [vmem:[#allocation2] sm:$0xff]
    %v838 = vld [vmem:[#allocation2 + $0x8] sm:$0xff]
    %v839 = vld [vmem:[#allocation2 + $0x10] sm:$0xff]
    %v840 = vld [vmem:[#allocation2 + $0x18] sm:$0xff]
    %vm841 = vcmask 31744
    %v843 = vsel %vm841, %v833, 0
    %v846 = vsel %vm841, %v834, 0
    %v849 = vsel %vm841, %v835, 0
    %v852 = vsel %vm841, %v836, 0
    %vm854 = vcmask 1043456
    %v856 = vsel %vm854, %v48, 0
    %858 = vmatprep.subr.mxu0 0.0
    %859 = vmatpush1.msra.mxu0 %v856
    %860 = vmatprep.subr.mxu0 0.0
    %861 = vmatpush1.msra.mxu0 0.0
    %862 = vmatprep.subr.mxu0 0.0
    %863 = vmatpush1.msra.mxu0 0.0
    %864 = vmatprep.subr.mxu0 0.0
    %865 = vmatpush1.msra.mxu0 0.0
    %866 = vmatprep.subr.mxu0 0.0
    %867 = vmatpush1.msra.mxu0 0.0
    %868 = vmatprep.subr.mxu0 0.0
    %869 = vmatpush1.msra.mxu0 0.0
    %870 = vmatprep.subr.mxu0 0.0
    %871 = vmatpush1.msra.mxu0 0.0
    %872 = vmatprep.subr.mxu0 0.0
    %873 = vmatpush1.msra.mxu0 0.0
    %874 = vmatprep.subr.mxu0 0.0
    %875 = vmatpush1.msra.mxu0 0.0
    %876 = vmatprep.subr.mxu0 0.0
    %877 = vmatpush1.msra.mxu0 0.0
    %878 = vmatprep.subr.mxu0 0.0
    %879 = vmatpush1.msra.mxu0 0.0
    %880 = vmatprep.subr.mxu0 0.0
    %881 = vmatpush1.msra.mxu0 0.0
    %882 = vmatprep.subr.mxu0 0.0
    %883 = vmatpush1.msra.mxu0 0.0
    %884 = vmatprep.subr.mxu0 0.0
    %885 = vmatpush1.msra.mxu0 0.0
    %886 = vmatprep.subr.mxu0 0.0
    %887 = vmatpush1.msra.mxu0 0.0
    %888 = vmatprep.subr.mxu0 0.0
    %889 = vmatpush1.msra.mxu0 0.0
    %890 = vmatprep.subr.mxu0 0.0
    %891 = vmatpush1.msra.mxu0 0.0
    %892 = vmatprep.subr.mxu0 0.0
    %893 = vmatpush1.msra.mxu0 0.0
    %894 = vmatprep.subr.mxu0 0.0
    %895 = vmatpush1.msra.mxu0 0.0
    %896 = vmatprep.subr.mxu0 0.0
    %897 = vmatpush1.msra.mxu0 0.0
    %898 = vmatprep.subr.mxu0 0.0
    %899 = vmatpush1.msra.mxu0 0.0
    %900 = vmatprep.subr.mxu0 0.0
    %901 = vmatpush1.msra.mxu0 0.0
    %902 = vmatprep.subr.mxu0 0.0
    %903 = vmatpush1.msra.mxu0 0.0
    %904 = vmatprep.subr.mxu0 0.0
    %905 = vmatpush1.msra.mxu0 0.0
    %906 = vmatprep.subr.mxu0 0.0
    %907 = vmatpush1.msra.mxu0 0.0
    %908 = vmatprep.subr.mxu0 0.0
    %909 = vmatpush1.msra.mxu0 0.0
    %910 = vmatprep.subr.mxu0 0.0
    %911 = vmatpush1.msra.mxu0 0.0
    %912 = vmatprep.subr.mxu0 0.0
    %913 = vmatpush1.msra.mxu0 0.0
    %914 = vmatprep.subr.mxu0 0.0
    %915 = vmatpush1.msra.mxu0 0.0
    %916 = vmatprep.subr.mxu0 0.0
    %917 = vmatpush1.msra.mxu0 0.0
    %918 = vmatprep.subr.mxu0 0.0
    %919 = vmatpush1.msra.mxu0 0.0
    %920 = vmatprep.subr.mxu0 0.0
    %921 = vmatpush1.msra.mxu0 0.0
    %922 = vmatprep.mubr.f32.mxu0 0.0
    %923 = vmatmul.mubr.f32.gmra.mrb[0].mxu0 %v843
    %v924 = vpop.f32.mrb[0].mxu0
    %v925 = vadd.f32 %v837, %v924
    %v926 = vpop.f32.mrb[0].mxu0
    %927 = vmatprep.mubr.f32.mxu0 0.0
    %928 = vmatmul.mubr.f32.gmra.mrb[0].mxu0 %v846
    %v929 = vpop.f32.mrb[0].mxu0
    %v930 = vadd.f32 %v838, %v929
    %v931 = vpop.f32.mrb[0].mxu0
    %932 = vmatprep.mubr.f32.mxu0 0.0
    %933 = vmatmul.mubr.f32.gmra.mrb[0].mxu0 %v849
    %v934 = vpop.f32.mrb[0].mxu0
    %v935 = vadd.f32 %v839, %v934
    %v936 = vpop.f32.mrb[0].mxu0
    %937 = vmatprep.mubr.f32.mxu0 0.0
    %938 = vmatmul.mubr.f32.gmra.mrb[0].mxu0 %v852
    %v939 = vpop.f32.mrb[0].mxu0
    %v940 = vadd.f32 %v840, %v939
    %v941 = vpop.f32.mrb[0].mxu0
    %942 = vdwg.mxu0
    %v943 = vld [vmem:[%s3] sm:$0xff]
    %v944 = vld [vmem:[%s3 + $0x8] sm:$0xff]
    %v945 = vld [vmem:[%s3 + $0x10] sm:$0xff]
    %v946 = vld [vmem:[%s3 + $0x18] sm:$0xff]
    %948 = vset.pattern.permute.xlu0 0
    %949 = vperm.xlu0 %948, %v943
    %v950 = vpop.permute.xlu0 %949
    %953 = vset.pattern.permute.xlu0 0
    %954 = vperm.xlu0 %953, %v944
    %v955 = vpop.permute.xlu0 %954
    %958 = vset.pattern.permute.xlu0 0
    %959 = vperm.xlu0 %958, %v945
    %v960 = vpop.permute.xlu0 %959
    %963 = vset.pattern.permute.xlu0 0
    %964 = vperm.xlu0 %963, %v946
    %v965 = vpop.permute.xlu0 %964
    %v967 = vadd.f32 %v925, %v950
    %v968 = vadd.f32 %v930, %v955
    %v969 = vadd.f32 %v935, %v960
    %v970 = vadd.f32 %v940, %v965
    %v971 = vmax.f32 %v967, 0.0
    %v972 = vmax.f32 %v968, 0.0
    %v973 = vmax.f32 %v969, 0.0
    %v974 = vmax.f32 %v970, 0.0
    %v975 = vld [vmem:[%s5] sm:$0xff]
    %v976 = vld [vmem:[%s5 + $0x8] sm:$0xff]
    %v977 = vld [vmem:[%s5 + $0x10] sm:$0xff]
    %v978 = vld [vmem:[%s5 + $0x18] sm:$0xff]
    %v979 = vld [vmem:[%s6] sm:$0xff]
    %v980 = vld [vmem:[%s6 + $0x8] sm:$0xff]
    %v981 = vld [vmem:[%s6 + $0x10] sm:$0xff]
    %v982 = vld [vmem:[%s6 + $0x18] sm:$0xff]
    %984 = vset.pattern.permute.xlu0 0
    %985 = vperm.xlu0 %984, %v979
    %v986 = vpop.permute.xlu0 %985
    %989 = vset.pattern.permute.xlu0 0
    %990 = vperm.xlu0 %989, %v980
    %v991 = vpop.permute.xlu0 %990
    %994 = vset.pattern.permute.xlu0 0
    %995 = vperm.xlu0 %994, %v981
    %v996 = vpop.permute.xlu0 %995
    %999 = vset.pattern.permute.xlu0 0
    %1000 = vperm.xlu0 %999, %v982
    %v1001 = vpop.permute.xlu0 %1000
    %vm1003 = vcmask 261120
    %v1005 = vsel %vm1003, %v975, 0
    %v1008 = vsel %vm1003, %v976, 0
    %v1011 = vsel %vm1003, %v977, 0
    %v1014 = vsel %vm1003, %v978, 0
    %1016 = vmatprep.subr.mxu0 0.0
    %1017 = vmatpush1.msra.mxu0 %v971
    %1018 = vmatprep.subr.mxu0 0.0
    %1019 = vmatpush1.msra.mxu0 %v972
    %1020 = vmatprep.subr.mxu0 0.0
    %1021 = vmatpush1.msra.mxu0 %v973
    %1022 = vmatprep.subr.mxu0 0.0
    %1023 = vmatpush1.msra.mxu0 %v974
    %1024 = vmatprep.subr.mxu0 0.0
    %1025 = vmatpush1.msra.mxu0 0.0
    %1026 = vmatprep.subr.mxu0 0.0
    %1027 = vmatpush1.msra.mxu0 0.0
    %1028 = vmatprep.subr.mxu0 0.0
    %1029 = vmatpush1.msra.mxu0 0.0
    %1030 = vmatprep.subr.mxu0 0.0
    %1031 = vmatpush1.msra.mxu0 0.0
    %1032 = vmatprep.subr.mxu0 0.0
    %1033 = vmatpush1.msra.mxu0 0.0
    %1034 = vmatprep.subr.mxu0 0.0
    %1035 = vmatpush1.msra.mxu0 0.0
    %1036 = vmatprep.subr.mxu0 0.0
    %1037 = vmatpush1.msra.mxu0 0.0
    %1038 = vmatprep.subr.mxu0 0.0
    %1039 = vmatpush1.msra.mxu0 0.0
    %1040 = vmatprep.subr.mxu0 0.0
    %1041 = vmatpush1.msra.mxu0 0.0
    %1042 = vmatprep.subr.mxu0 0.0
    %1043 = vmatpush1.msra.mxu0 0.0
    %1044 = vmatprep.subr.mxu0 0.0
    %1045 = vmatpush1.msra.mxu0 0.0
    %1046 = vmatprep.subr.mxu0 0.0
    %1047 = vmatpush1.msra.mxu0 0.0
    %1048 = vmatprep.subr.mxu0 0.0
    %1049 = vmatpush1.msra.mxu0 0.0
    %1050 = vmatprep.subr.mxu0 0.0
    %1051 = vmatpush1.msra.mxu0 0.0
    %1052 = vmatprep.subr.mxu0 0.0
    %1053 = vmatpush1.msra.mxu0 0.0
    %1054 = vmatprep.subr.mxu0 0.0
    %1055 = vmatpush1.msra.mxu0 0.0
    %1056 = vmatprep.subr.mxu0 0.0
    %1057 = vmatpush1.msra.mxu0 0.0
    %1058 = vmatprep.subr.mxu0 0.0
    %1059 = vmatpush1.msra.mxu0 0.0
    %1060 = vmatprep.subr.mxu0 0.0
    %1061 = vmatpush1.msra.mxu0 0.0
    %1062 = vmatprep.subr.mxu0 0.0
    %1063 = vmatpush1.msra.mxu0 0.0
    %1064 = vmatprep.subr.mxu0 0.0
    %1065 = vmatpush1.msra.mxu0 0.0
    %1066 = vmatprep.subr.mxu0 0.0
    %1067 = vmatpush1.msra.mxu0 0.0
    %1068 = vmatprep.subr.mxu0 0.0
    %1069 = vmatpush1.msra.mxu0 0.0
    %1070 = vmatprep.subr.mxu0 0.0
    %1071 = vmatpush1.msra.mxu0 0.0
    %1072 = vmatprep.subr.mxu0 0.0
    %1073 = vmatpush1.msra.mxu0 0.0
    %1074 = vmatprep.subr.mxu0 0.0
    %1075 = vmatpush1.msra.mxu0 0.0
    %1076 = vmatprep.subr.mxu0 0.0
    %1077 = vmatpush1.msra.mxu0 0.0
    %1078 = vmatprep.subr.mxu0 0.0
    %1079 = vmatpush1.msra.mxu0 0.0
    %1080 = vmatprep.mubr.f32.mxu0 0.0
    %1081 = vmatmul.mubr.f32.gmra.mrb[0].mxu0 %v1005
    %v1082 = vpop.f32.mrb[0].mxu0
    %v1083 = vadd.f32 %v986, %v1082
    %v1084 = vpop.f32.mrb[0].mxu0
    %1085 = vmatprep.mubr.f32.mxu0 0.0
    %1086 = vmatmul.mubr.f32.gmra.mrb[0].mxu0 %v1008
    %v1087 = vpop.f32.mrb[0].mxu0
    %v1088 = vadd.f32 %v991, %v1087
    %v1089 = vpop.f32.mrb[0].mxu0
    %1090 = vmatprep.mubr.f32.mxu0 0.0
    %1091 = vmatmul.mubr.f32.gmra.mrb[0].mxu0 %v1011
    %v1092 = vpop.f32.mrb[0].mxu0
    %v1093 = vadd.f32 %v996, %v1092
    %v1094 = vpop.f32.mrb[0].mxu0
    %1095 = vmatprep.mubr.f32.mxu0 0.0
    %1096 = vmatmul.mubr.f32.gmra.mrb[0].mxu0 %v1014
    %v1097 = vpop.f32.mrb[0].mxu0
    %v1098 = vadd.f32 %v1001, %v1097
    %v1099 = vpop.f32.mrb[0].mxu0
    %1100 = vdwg.mxu0
    %v1101 = vmax.f32 %v1083, 0.0
    %v1102 = vmax.f32 %v1088, 0.0
    %v1103 = vmax.f32 %v1093, 0.0
    %v1104 = vmax.f32 %v1098, 0.0
    %v1105 = vld [vmem:[%s7] sm:$0xff]
    %v1106 = vld [vmem:[%s7 + $0x8] sm:$0xff]
    %v1107 = vld [vmem:[%s7 + $0x10] sm:$0xff]
    %v1108 = vld [vmem:[%s7 + $0x18] sm:$0xff]
    %v1109 = vld [vmem:[%s8] sm:$0xff]
    %v1110 = vld [vmem:[%s8 + $0x8] sm:$0xff]
    %v1111 = vld [vmem:[%s8 + $0x10] sm:$0xff]
    %v1112 = vld [vmem:[%s8 + $0x18] sm:$0xff]
    %1114 = vset.pattern.permute.xlu0 0
    %1115 = vperm.xlu0 %1114, %v1109
    %v1116 = vpop.permute.xlu0 %1115
    %1119 = vset.pattern.permute.xlu0 0
    %1120 = vperm.xlu0 %1119, %v1110
    %v1121 = vpop.permute.xlu0 %1120
    %1124 = vset.pattern.permute.xlu0 0
    %1125 = vperm.xlu0 %1124, %v1111
    %v1126 = vpop.permute.xlu0 %1125
    %1129 = vset.pattern.permute.xlu0 0
    %1130 = vperm.xlu0 %1129, %v1112
    %v1131 = vpop.permute.xlu0 %1130
    %v1134 = vsel %vm1003, %v1105, 0
    %v1137 = vsel %vm1003, %v1106, 0
    %v1140 = vsel %vm1003, %v1107, 0
    %v1143 = vsel %vm1003, %v1108, 0
    %1145 = vmatprep.subr.mxu0 0.0
    %1146 = vmatpush1.msra.mxu0 %v1101
    %1147 = vmatprep.subr.mxu0 0.0
    %1148 = vmatpush1.msra.mxu0 %v1102
    %1149 = vmatprep.subr.mxu0 0.0
    %1150 = vmatpush1.msra.mxu0 %v1103
    %1151 = vmatprep.subr.mxu0 0.0
    %1152 = vmatpush1.msra.mxu0 %v1104
    %1153 = vmatprep.subr.mxu0 0.0
    %1154 = vmatpush1.msra.mxu0 0.0
    %1155 = vmatprep.subr.mxu0 0.0
    %1156 = vmatpush1.msra.mxu0 0.0
    %1157 = vmatprep.subr.mxu0 0.0
    %1158 = vmatpush1.msra.mxu0 0.0
    %1159 = vmatprep.subr.mxu0 0.0
    %1160 = vmatpush1.msra.mxu0 0.0
    %1161 = vmatprep.subr.mxu0 0.0
    %1162 = vmatpush1.msra.mxu0 0.0
    %1163 = vmatprep.subr.mxu0 0.0
    %1164 = vmatpush1.msra.mxu0 0.0
    %1165 = vmatprep.subr.mxu0 0.0
    %1166 = vmatpush1.msra.mxu0 0.0
    %1167 = vmatprep.subr.mxu0 0.0
    %1168 = vmatpush1.msra.mxu0 0.0
    %1169 = vmatprep.subr.mxu0 0.0
    %1170 = vmatpush1.msra.mxu0 0.0
    %1171 = vmatprep.subr.mxu0 0.0
    %1172 = vmatpush1.msra.mxu0 0.0
    %1173 = vmatprep.subr.mxu0 0.0
    %1174 = vmatpush1.msra.mxu0 0.0
    %1175 = vmatprep.subr.mxu0 0.0
    %1176 = vmatpush1.msra.mxu0 0.0
    %1177 = vmatprep.subr.mxu0 0.0
    %1178 = vmatpush1.msra.mxu0 0.0
    %1179 = vmatprep.subr.mxu0 0.0
    %1180 = vmatpush1.msra.mxu0 0.0
    %1181 = vmatprep.subr.mxu0 0.0
    %1182 = vmatpush1.msra.mxu0 0.0
    %1183 = vmatprep.subr.mxu0 0.0
    %1184 = vmatpush1.msra.mxu0 0.0
    %1185 = vmatprep.subr.mxu0 0.0
    %1186 = vmatpush1.msra.mxu0 0.0
    %1187 = vmatprep.subr.mxu0 0.0
    %1188 = vmatpush1.msra.mxu0 0.0
    %1189 = vmatprep.subr.mxu0 0.0
    %1190 = vmatpush1.msra.mxu0 0.0
    %1191 = vmatprep.subr.mxu0 0.0
    %1192 = vmatpush1.msra.mxu0 0.0
    %1193 = vmatprep.subr.mxu0 0.0
    %1194 = vmatpush1.msra.mxu0 0.0
    %1195 = vmatprep.subr.mxu0 0.0
    %1196 = vmatpush1.msra.mxu0 0.0
    %1197 = vmatprep.subr.mxu0 0.0
    %1198 = vmatpush1.msra.mxu0 0.0
    %1199 = vmatprep.subr.mxu0 0.0
    %1200 = vmatpush1.msra.mxu0 0.0
    %1201 = vmatprep.subr.mxu0 0.0
    %1202 = vmatpush1.msra.mxu0 0.0
    %1203 = vmatprep.subr.mxu0 0.0
    %1204 = vmatpush1.msra.mxu0 0.0
    %1205 = vmatprep.subr.mxu0 0.0
    %1206 = vmatpush1.msra.mxu0 0.0
    %1207 = vmatprep.subr.mxu0 0.0
    %1208 = vmatpush1.msra.mxu0 0.0
    %1209 = vmatprep.mubr.f32.mxu0 0.0
    %1210 = vmatmul.mubr.f32.gmra.mrb[0].mxu0 %v1134
    %v1211 = vpop.f32.mrb[0].mxu0
    %v1212 = vadd.f32 %v1116, %v1211
    %v1213 = vpop.f32.mrb[0].mxu0
    %1214 = vmatprep.mubr.f32.mxu0 0.0
    %1215 = vmatmul.mubr.f32.gmra.mrb[0].mxu0 %v1137
    %v1216 = vpop.f32.mrb[0].mxu0
    %v1217 = vadd.f32 %v1121, %v1216
    %v1218 = vpop.f32.mrb[0].mxu0
    %1219 = vmatprep.mubr.f32.mxu0 0.0
    %1220 = vmatmul.mubr.f32.gmra.mrb[0].mxu0 %v1140
    %v1221 = vpop.f32.mrb[0].mxu0
    %v1222 = vadd.f32 %v1126, %v1221
    %v1223 = vpop.f32.mrb[0].mxu0
    %1224 = vmatprep.mubr.f32.mxu0 0.0
    %1225 = vmatmul.mubr.f32.gmra.mrb[0].mxu0 %v1143
    %v1226 = vpop.f32.mrb[0].mxu0
    %v1227 = vadd.f32 %v1131, %v1226
    %v1228 = vpop.f32.mrb[0].mxu0
    %1229 = vdwg.mxu0
    %v1230 = vld [vmem:[#allocation3] sm:$0xff]
    %v1231 = vld [vmem:[#allocation3 + $0x8] sm:$0xff]
    %v1232 = vld [vmem:[#allocation3 + $0x10] sm:$0xff]
    %v1233 = vld [vmem:[#allocation3 + $0x18] sm:$0xff]
    %v1234 = vmul.f32 %v1212, %v1230
    %v1235 = vmul.f32 %v1217, %v1231
    %v1236 = vmul.f32 %v1222, %v1232
    %v1237 = vmul.f32 %v1227, %v1233
    %v1238 = vadd.f32 %v967, %v1234
    %v1239 = vadd.f32 %v968, %v1235
    %v1240 = vadd.f32 %v969, %v1236
    %v1241 = vadd.f32 %v970, %v1237
    %v1242 = vmax.f32 %v1238, 0.0
    %v1243 = vmax.f32 %v1239, 0.0
    %v1244 = vmax.f32 %v1240, 0.0
    %v1245 = vmax.f32 %v1241, 0.0
    %s1246 = scalar_lea.vmem %s5, 32
    %v1247 = vld [vmem:[%s1246] sm:$0xff]
    %v1248 = vld [vmem:[%s1246 + $0x8] sm:$0xff]
    %v1249 = vld [vmem:[%s1246 + $0x10] sm:$0xff]
    %v1250 = vld [vmem:[%s1246 + $0x18] sm:$0xff]
    %s1251 = scalar_lea.vmem %s6, 32
    %v1252 = vld [vmem:[%s1251] sm:$0xff]
    %v1253 = vld [vmem:[%s1251 + $0x8] sm:$0xff]
    %v1254 = vld [vmem:[%s1251 + $0x10] sm:$0xff]
    %v1255 = vld [vmem:[%s1251 + $0x18] sm:$0xff]
    %1257 = vset.pattern.permute.xlu0 0
    %1258 = vperm.xlu0 %1257, %v1252
    %v1259 = vpop.permute.xlu0 %1258
    %1262 = vset.pattern.permute.xlu0 0
    %1263 = vperm.xlu0 %1262, %v1253
    %v1264 = vpop.permute.xlu0 %1263
    %1267 = vset.pattern.permute.xlu0 0
    %1268 = vperm.xlu0 %1267, %v1254
    %v1269 = vpop.permute.xlu0 %1268
    %1272 = vset.pattern.permute.xlu0 0
    %1273 = vperm.xlu0 %1272, %v1255
    %v1274 = vpop.permute.xlu0 %1273
    %v1277 = vsel %vm1003, %v1247, 0
    %v1280 = vsel %vm1003, %v1248, 0
    %v1283 = vsel %vm1003, %v1249, 0
    %v1286 = vsel %vm1003, %v1250, 0
    %1288 = vmatprep.subr.mxu0 0.0
    %1289 = vmatpush1.msra.mxu0 %v1242
    %1290 = vmatprep.subr.mxu0 0.0
    %1291 = vmatpush1.msra.mxu0 %v1243
    %1292 = vmatprep.subr.mxu0 0.0
    %1293 = vmatpush1.msra.mxu0 %v1244
    %1294 = vmatprep.subr.mxu0 0.0
    %1295 = vmatpush1.msra.mxu0 %v1245
    %1296 = vmatprep.subr.mxu0 0.0
    %1297 = vmatpush1.msra.mxu0 0.0
    %1298 = vmatprep.subr.mxu0 0.0
    %1299 = vmatpush1.msra.mxu0 0.0
    %1300 = vmatprep.subr.mxu0 0.0
    %1301 = vmatpush1.msra.mxu0 0.0
    %1302 = vmatprep.subr.mxu0 0.0
    %1303 = vmatpush1.msra.mxu0 0.0
    %1304 = vmatprep.subr.mxu0 0.0
    %1305 = vmatpush1.msra.mxu0 0.0
    %1306 = vmatprep.subr.mxu0 0.0
    %1307 = vmatpush1.msra.mxu0 0.0
    %1308 = vmatprep.subr.mxu0 0.0
    %1309 = vmatpush1.msra.mxu0 0.0
    %1310 = vmatprep.subr.mxu0 0.0
    %1311 = vmatpush1.msra.mxu0 0.0
    %1312 = vmatprep.subr.mxu0 0.0
    %1313 = vmatpush1.msra.mxu0 0.0
    %1314 = vmatprep.subr.mxu0 0.0
    %1315 = vmatpush1.msra.mxu0 0.0
    %1316 = vmatprep.subr.mxu0 0.0
    %1317 = vmatpush1.msra.mxu0 0.0
    %1318 = vmatprep.subr.mxu0 0.0
    %1319 = vmatpush1.msra.mxu0 0.0
    %1320 = vmatprep.subr.mxu0 0.0
    %1321 = vmatpush1.msra.mxu0 0.0
    %1322 = vmatprep.subr.mxu0 0.0
    %1323 = vmatpush1.msra.mxu0 0.0
    %1324 = vmatprep.subr.mxu0 0.0
    %1325 = vmatpush1.msra.mxu0 0.0
    %1326 = vmatprep.subr.mxu0 0.0
    %1327 = vmatpush1.msra.mxu0 0.0
    %1328 = vmatprep.subr.mxu0 0.0
    %1329 = vmatpush1.msra.mxu0 0.0
    %1330 = vmatprep.subr.mxu0 0.0
    %1331 = vmatpush1.msra.mxu0 0.0
    %1332 = vmatprep.subr.mxu0 0.0
    %1333 = vmatpush1.msra.mxu0 0.0
    %1334 = vmatprep.subr.mxu0 0.0
    %1335 = vmatpush1.msra.mxu0 0.0
    %1336 = vmatprep.subr.mxu0 0.0
    %1337 = vmatpush1.msra.mxu0 0.0
    %1338 = vmatprep.subr.mxu0 0.0
    %1339 = vmatpush1.msra.mxu0 0.0
    %1340 = vmatprep.subr.mxu0 0.0
    %1341 = vmatpush1.msra.mxu0 0.0
    %1342 = vmatprep.subr.mxu0 0.0
    %1343 = vmatpush1.msra.mxu0 0.0
    %1344 = vmatprep.subr.mxu0 0.0
    %1345 = vmatpush1.msra.mxu0 0.0
    %1346 = vmatprep.subr.mxu0 0.0
    %1347 = vmatpush1.msra.mxu0 0.0
    %1348 = vmatprep.subr.mxu0 0.0
    %1349 = vmatpush1.msra.mxu0 0.0
    %1350 = vmatprep.subr.mxu0 0.0
    %1351 = vmatpush1.msra.mxu0 0.0
    %1352 = vmatprep.mubr.f32.mxu0 0.0
    %1353 = vmatmul.mubr.f32.gmra.mrb[0].mxu0 %v1277
    %v1354 = vpop.f32.mrb[0].mxu0
    %v1355 = vadd.f32 %v1259, %v1354
    %v1356 = vpop.f32.mrb[0].mxu0
    %1357 = vmatprep.mubr.f32.mxu0 0.0
    %1358 = vmatmul.mubr.f32.gmra.mrb[0].mxu0 %v1280
    %v1359 = vpop.f32.mrb[0].mxu0
    %v1360 = vadd.f32 %v1264, %v1359
    %v1361 = vpop.f32.mrb[0].mxu0
    %1362 = vmatprep.mubr.f32.mxu0 0.0
    %1363 = vmatmul.mubr.f32.gmra.mrb[0].mxu0 %v1283
    %v1364 = vpop.f32.mrb[0].mxu0
    %v1365 = vadd.f32 %v1269, %v1364
    %v1366 = vpop.f32.mrb[0].mxu0
    %1367 = vmatprep.mubr.f32.mxu0 0.0
    %1368 = vmatmul.mubr.f32.gmra.mrb[0].mxu0 %v1286
    %v1369 = vpop.f32.mrb[0].mxu0
    %v1370 = vadd.f32 %v1274, %v1369
    %v1371 = vpop.f32.mrb[0].mxu0
    %1372 = vdwg.mxu0
    %v1373 = vmax.f32 %v1355, 0.0
    %v1374 = vmax.f32 %v1360, 0.0
    %v1375 = vmax.f32 %v1365, 0.0
    %v1376 = vmax.f32 %v1370, 0.0
    %s1377 = scalar_lea.vmem %s7, 32
    %v1378 = vld [vmem:[%s1377] sm:$0xff]
    %v1379 = vld [vmem:[%s1377 + $0x8] sm:$0xff]
    %v1380 = vld [vmem:[%s1377 + $0x10] sm:$0xff]
    %v1381 = vld [vmem:[%s1377 + $0x18] sm:$0xff]
    %s1382 = scalar_lea.vmem %s8, 32
    %v1383 = vld [vmem:[%s1382] sm:$0xff]
    %v1384 = vld [vmem:[%s1382 + $0x8] sm:$0xff]
    %v1385 = vld [vmem:[%s1382 + $0x10] sm:$0xff]
    %v1386 = vld [vmem:[%s1382 + $0x18] sm:$0xff]
    %1388 = vset.pattern.permute.xlu0 0
    %1389 = vperm.xlu0 %1388, %v1383
    %v1390 = vpop.permute.xlu0 %1389
    %1393 = vset.pattern.permute.xlu0 0
    %1394 = vperm.xlu0 %1393, %v1384
    %v1395 = vpop.permute.xlu0 %1394
    %1398 = vset.pattern.permute.xlu0 0
    %1399 = vperm.xlu0 %1398, %v1385
    %v1400 = vpop.permute.xlu0 %1399
    %1403 = vset.pattern.permute.xlu0 0
    %1404 = vperm.xlu0 %1403, %v1386
    %v1405 = vpop.permute.xlu0 %1404
    %v1408 = vsel %vm1003, %v1378, 0
    %v1411 = vsel %vm1003, %v1379, 0
    %v1414 = vsel %vm1003, %v1380, 0
    %v1417 = vsel %vm1003, %v1381, 0
    %1419 = vmatprep.subr.mxu0 0.0
    %1420 = vmatpush1.msra.mxu0 %v1373
    %1421 = vmatprep.subr.mxu0 0.0
    %1422 = vmatpush1.msra.mxu0 %v1374
    %1423 = vmatprep.subr.mxu0 0.0
    %1424 = vmatpush1.msra.mxu0 %v1375
    %1425 = vmatprep.subr.mxu0 0.0
    %1426 = vmatpush1.msra.mxu0 %v1376
    %1427 = vmatprep.subr.mxu0 0.0
    %1428 = vmatpush1.msra.mxu0 0.0
    %1429 = vmatprep.subr.mxu0 0.0
    %1430 = vmatpush1.msra.mxu0 0.0
    %1431 = vmatprep.subr.mxu0 0.0
    %1432 = vmatpush1.msra.mxu0 0.0
    %1433 = vmatprep.subr.mxu0 0.0
    %1434 = vmatpush1.msra.mxu0 0.0
    %1435 = vmatprep.subr.mxu0 0.0
    %1436 = vmatpush1.msra.mxu0 0.0
    %1437 = vmatprep.subr.mxu0 0.0
    %1438 = vmatpush1.msra.mxu0 0.0
    %1439 = vmatprep.subr.mxu0 0.0
    %1440 = vmatpush1.msra.mxu0 0.0
    %1441 = vmatprep.subr.mxu0 0.0
    %1442 = vmatpush1.msra.mxu0 0.0
    %1443 = vmatprep.subr.mxu0 0.0
    %1444 = vmatpush1.msra.mxu0 0.0
    %1445 = vmatprep.subr.mxu0 0.0
    %1446 = vmatpush1.msra.mxu0 0.0
    %1447 = vmatprep.subr.mxu0 0.0
    %1448 = vmatpush1.msra.mxu0 0.0
    %1449 = vmatprep.subr.mxu0 0.0
    %1450 = vmatpush1.msra.mxu0 0.0
    %1451 = vmatprep.subr.mxu0 0.0
    %1452 = vmatpush1.msra.mxu0 0.0
    %1453 = vmatprep.subr.mxu0 0.0
    %1454 = vmatpush1.msra.mxu0 0.0
    %1455 = vmatprep.subr.mxu0 0.0
    %1456 = vmatpush1.msra.mxu0 0.0
    %1457 = vmatprep.subr.mxu0 0.0
    %1458 = vmatpush1.msra.mxu0 0.0
    %1459 = vmatprep.subr.mxu0 0.0
    %1460 = vmatpush1.msra.mxu0 0.0
    %1461 = vmatprep.subr.mxu0 0.0
    %1462 = vmatpush1.msra.mxu0 0.0
    %1463 = vmatprep.subr.mxu0 0.0
    %1464 = vmatpush1.msra.mxu0 0.0
    %1465 = vmatprep.subr.mxu0 0.0
    %1466 = vmatpush1.msra.mxu0 0.0
    %1467 = vmatprep.subr.mxu0 0.0
    %1468 = vmatpush1.msra.mxu0 0.0
    %1469 = vmatprep.subr.mxu0 0.0
    %1470 = vmatpush1.msra.mxu0 0.0
    %1471 = vmatprep.subr.mxu0 0.0
    %1472 = vmatpush1.msra.mxu0 0.0
    %1473 = vmatprep.subr.mxu0 0.0
    %1474 = vmatpush1.msra.mxu0 0.0
    %1475 = vmatprep.subr.mxu0 0.0
    %1476 = vmatpush1.msra.mxu0 0.0
    %1477 = vmatprep.subr.mxu0 0.0
    %1478 = vmatpush1.msra.mxu0 0.0
    %1479 = vmatprep.subr.mxu0 0.0
    %1480 = vmatpush1.msra.mxu0 0.0
    %1481 = vmatprep.subr.mxu0 0.0
    %1482 = vmatpush1.msra.mxu0 0.0
    %1483 = vmatprep.mubr.f32.mxu0 0.0
    %1484 = vmatmul.mubr.f32.gmra.mrb[0].mxu0 %v1408
    %v1485 = vpop.f32.mrb[0].mxu0
    %v1486 = vadd.f32 %v1390, %v1485
    %v1487 = vpop.f32.mrb[0].mxu0
    %1488 = vmatprep.mubr.f32.mxu0 0.0
    %1489 = vmatmul.mubr.f32.gmra.mrb[0].mxu0 %v1411
    %v1490 = vpop.f32.mrb[0].mxu0
    %v1491 = vadd.f32 %v1395, %v1490
    %v1492 = vpop.f32.mrb[0].mxu0
    %1493 = vmatprep.mubr.f32.mxu0 0.0
    %1494 = vmatmul.mubr.f32.gmra.mrb[0].mxu0 %v1414
    %v1495 = vpop.f32.mrb[0].mxu0
    %v1496 = vadd.f32 %v1400, %v1495
    %v1497 = vpop.f32.mrb[0].mxu0
    %1498 = vmatprep.mubr.f32.mxu0 0.0
    %1499 = vmatmul.mubr.f32.gmra.mrb[0].mxu0 %v1417
    %v1500 = vpop.f32.mrb[0].mxu0
    %v1501 = vadd.f32 %v1405, %v1500
    %v1502 = vpop.f32.mrb[0].mxu0
    %1503 = vdwg.mxu0
    %v1504 = vld [vmem:[#allocation3 + $0x20] sm:$0xff]
    %v1505 = vld [vmem:[#allocation3 + $0x28] sm:$0xff]
    %v1506 = vld [vmem:[#allocation3 + $0x30] sm:$0xff]
    %v1507 = vld [vmem:[#allocation3 + $0x38] sm:$0xff]
    %v1508 = vmul.f32 %v1486, %v1504
    %v1509 = vmul.f32 %v1491, %v1505
    %v1510 = vmul.f32 %v1496, %v1506
    %v1511 = vmul.f32 %v1501, %v1507
    %v1512 = vadd.f32 %v1238, %v1508
    %v1513 = vadd.f32 %v1239, %v1509
    %v1514 = vadd.f32 %v1240, %v1510
    %v1515 = vadd.f32 %v1241, %v1511
    %v1516 = vld [vmem:[%s11] sm:$0xff]
    %v1517 = vld [vmem:[%s12] sm:$0xff]
    %1519 = vset.pattern.permute.xlu0 0
    %1520 = vperm.xlu0 %1519, %v1517
    %v1521 = vpop.permute.xlu0 %1520
    %v1524 = vsel %vm1003, %v1516, 0
    %1526 = vmatprep.subr.mxu0 0.0
    %1527 = vmatpush1.msra.mxu0 %v1512
    %1528 = vmatprep.subr.mxu0 0.0
    %1529 = vmatpush1.msra.mxu0 %v1513
    %1530 = vmatprep.subr.mxu0 0.0
    %1531 = vmatpush1.msra.mxu0 %v1514
    %1532 = vmatprep.subr.mxu0 0.0
    %1533 = vmatpush1.msra.mxu0 %v1515
    %1534 = vmatprep.subr.mxu0 0.0
    %1535 = vmatpush1.msra.mxu0 0.0
    %1536 = vmatprep.subr.mxu0 0.0
    %1537 = vmatpush1.msra.mxu0 0.0
    %1538 = vmatprep.subr.mxu0 0.0
    %1539 = vmatpush1.msra.mxu0 0.0
    %1540 = vmatprep.subr.mxu0 0.0
    %1541 = vmatpush1.msra.mxu0 0.0
    %1542 = vmatprep.subr.mxu0 0.0
    %1543 = vmatpush1.msra.mxu0 0.0
    %1544 = vmatprep.subr.mxu0 0.0
    %1545 = vmatpush1.msra.mxu0 0.0
    %1546 = vmatprep.subr.mxu0 0.0
    %1547 = vmatpush1.msra.mxu0 0.0
    %1548 = vmatprep.subr.mxu0 0.0
    %1549 = vmatpush1.msra.mxu0 0.0
    %1550 = vmatprep.subr.mxu0 0.0
    %1551 = vmatpush1.msra.mxu0 0.0
    %1552 = vmatprep.subr.mxu0 0.0
    %1553 = vmatpush1.msra.mxu0 0.0
    %1554 = vmatprep.subr.mxu0 0.0
    %1555 = vmatpush1.msra.mxu0 0.0
    %1556 = vmatprep.subr.mxu0 0.0
    %1557 = vmatpush1.msra.mxu0 0.0
    %1558 = vmatprep.subr.mxu0 0.0
    %1559 = vmatpush1.msra.mxu0 0.0
    %1560 = vmatprep.subr.mxu0 0.0
    %1561 = vmatpush1.msra.mxu0 0.0
    %1562 = vmatprep.subr.mxu0 0.0
    %1563 = vmatpush1.msra.mxu0 0.0
    %1564 = vmatprep.subr.mxu0 0.0
    %1565 = vmatpush1.msra.mxu0 0.0
    %1566 = vmatprep.subr.mxu0 0.0
    %1567 = vmatpush1.msra.mxu0 0.0
    %1568 = vmatprep.subr.mxu0 0.0
    %1569 = vmatpush1.msra.mxu0 0.0
    %1570 = vmatprep.subr.mxu0 0.0
    %1571 = vmatpush1.msra.mxu0 0.0
    %1572 = vmatprep.subr.mxu0 0.0
    %1573 = vmatpush1.msra.mxu0 0.0
    %1574 = vmatprep.subr.mxu0 0.0
    %1575 = vmatpush1.msra.mxu0 0.0
    %1576 = vmatprep.subr.mxu0 0.0
    %1577 = vmatpush1.msra.mxu0 0.0
    %1578 = vmatprep.subr.mxu0 0.0
    %1579 = vmatpush1.msra.mxu0 0.0
    %1580 = vmatprep.subr.mxu0 0.0
    %1581 = vmatpush1.msra.mxu0 0.0
    %1582 = vmatprep.subr.mxu0 0.0
    %1583 = vmatpush1.msra.mxu0 0.0
    %1584 = vmatprep.subr.mxu0 0.0
    %1585 = vmatpush1.msra.mxu0 0.0
    %1586 = vmatprep.subr.mxu0 0.0
    %1587 = vmatpush1.msra.mxu0 0.0
    %1588 = vmatprep.subr.mxu0 0.0
    %1589 = vmatpush1.msra.mxu0 0.0
    %1590 = vmatprep.mubr.f32.mxu0 0.0
    %1591 = vmatmul.mubr.f32.gmra.mrb[0].mxu0 %v1524
    %v1592 = vpop.f32.mrb[0].mxu0
    %v1593 = vadd.f32 %v1521, %v1592
    %v1594 = vpop.f32.mrb[0].mxu0
    %1595 = vdwg.mxu0
    %v1596 = vadd.f32 %v1593, 2.0
    %v1597 = vxor.u32 %v1596, 2147483648
    %v1598 = vmul.f32 %v1597, 1.442695
    %v1599 = vpow.pop %v1598
    %v1600 = vadd.f32 %v1599, 1.0
    %v1601 = vrcp.pop %v1600
    %v1602 = vmul.f32 1.0, %v1601
    %v1603 = vadd.f32 %v1602, 0.001
    %v1604 = vlog2.pop %v1603
    %v1605 = vmul.f32 %v1604, 0.6931472
    %v1606 = vadd.f32 %v1605, 0.0
    %v1607 = vmul.f32 %v1603, %v48
    %v1609 = vrot.slane %v1593, 4
    %v1611 = vadd.f32 %v1607, %v1609
    %s1612 = scalar_lea.vmem %s2, 32
    %v1613 = vld [vmem:[%s1612] sm:$0xff]
    %v1614 = vld [vmem:[%s1612 + $0x8] sm:$0xff]
    %v1615 = vld [vmem:[%s1612 + $0x10] sm:$0xff]
    %v1616 = vld [vmem:[%s1612 + $0x18] sm:$0xff]
    %v1617 = vld [vmem:[#allocation2 + $0x20] sm:$0xff]
    %v1618 = vld [vmem:[#allocation2 + $0x28] sm:$0xff]
    %v1619 = vld [vmem:[#allocation2 + $0x30] sm:$0xff]
    %v1620 = vld [vmem:[#allocation2 + $0x38] sm:$0xff]
    %v1622 = vsel %vm841, %v1613, 0
    %v1625 = vsel %vm841, %v1614, 0
    %v1628 = vsel %vm841, %v1615, 0
    %v1631 = vsel %vm841, %v1616, 0
    %v1634 = vsel %vm854, %v1611, 0
    %1636 = vmatprep.subr.mxu0 0.0
    %1637 = vmatpush1.msra.mxu0 %v1634
    %1638 = vmatprep.subr.mxu0 0.0
    %1639 = vmatpush1.msra.mxu0 0.0
    %1640 = vmatprep.subr.mxu0 0.0
    %1641 = vmatpush1.msra.mxu0 0.0
    %1642 = vmatprep.subr.mxu0 0.0
    %1643 = vmatpush1.msra.mxu0 0.0
    %1644 = vmatprep.subr.mxu0 0.0
    %1645 = vmatpush1.msra.mxu0 0.0
    %1646 = vmatprep.subr.mxu0 0.0
    %1647 = vmatpush1.msra.mxu0 0.0
    %1648 = vmatprep.subr.mxu0 0.0
    %1649 = vmatpush1.msra.mxu0 0.0
    %1650 = vmatprep.subr.mxu0 0.0
    %1651 = vmatpush1.msra.mxu0 0.0
    %1652 = vmatprep.subr.mxu0 0.0
    %1653 = vmatpush1.msra.mxu0 0.0
    %1654 = vmatprep.subr.mxu0 0.0
    %1655 = vmatpush1.msra.mxu0 0.0
    %1656 = vmatprep.subr.mxu0 0.0
    %1657 = vmatpush1.msra.mxu0 0.0
    %1658 = vmatprep.subr.mxu0 0.0
    %1659 = vmatpush1.msra.mxu0 0.0
    %1660 = vmatprep.subr.mxu0 0.0
    %1661 = vmatpush1.msra.mxu0 0.0
    %1662 = vmatprep.subr.mxu0 0.0
    %1663 = vmatpush1.msra.mxu0 0.0
    %1664 = vmatprep.subr.mxu0 0.0
    %1665 = vmatpush1.msra.mxu0 0.0
    %1666 = vmatprep.subr.mxu0 0.0
    %1667 = vmatpush1.msra.mxu0 0.0
    %1668 = vmatprep.subr.mxu0 0.0
    %1669 = vmatpush1.msra.mxu0 0.0
    %1670 = vmatprep.subr.mxu0 0.0
    %1671 = vmatpush1.msra.mxu0 0.0
    %1672 = vmatprep.subr.mxu0 0.0
    %1673 = vmatpush1.msra.mxu0 0.0
    %1674 = vmatprep.subr.mxu0 0.0
    %1675 = vmatpush1.msra.mxu0 0.0
    %1676 = vmatprep.subr.mxu0 0.0
    %1677 = vmatpush1.msra.mxu0 0.0
    %1678 = vmatprep.subr.mxu0 0.0
    %1679 = vmatpush1.msra.mxu0 0.0
    %1680 = vmatprep.subr.mxu0 0.0
    %1681 = vmatpush1.msra.mxu0 0.0
    %1682 = vmatprep.subr.mxu0 0.0
    %1683 = vmatpush1.msra.mxu0 0.0
    %1684 = vmatprep.subr.mxu0 0.0
    %1685 = vmatpush1.msra.mxu0 0.0
    %1686 = vmatprep.subr.mxu0 0.0
    %1687 = vmatpush1.msra.mxu0 0.0
    %1688 = vmatprep.subr.mxu0 0.0
    %1689 = vmatpush1.msra.mxu0 0.0
    %1690 = vmatprep.subr.mxu0 0.0
    %1691 = vmatpush1.msra.mxu0 0.0
    %1692 = vmatprep.subr.mxu0 0.0
    %1693 = vmatpush1.msra.mxu0 0.0
    %1694 = vmatprep.subr.mxu0 0.0
    %1695 = vmatpush1.msra.mxu0 0.0
    %1696 = vmatprep.subr.mxu0 0.0
    %1697 = vmatpush1.msra.mxu0 0.0
    %1698 = vmatprep.subr.mxu0 0.0
    %1699 = vmatpush1.msra.mxu0 0.0
    %1700 = vmatprep.mubr.f32.mxu0 0.0
    %1701 = vmatmul.mubr.f32.gmra.mrb[0].mxu0 %v1622
    %v1702 = vpop.f32.mrb[0].mxu0
    %v1703 = vadd.f32 %v1617, %v1702
    %v1704 = vpop.f32.mrb[0].mxu0
    %1705 = vmatprep.mubr.f32.mxu0 0.0
    %1706 = vmatmul.mubr.f32.gmra.mrb[0].mxu0 %v1625
    %v1707 = vpop.f32.mrb[0].mxu0
    %v1708 = vadd.f32 %v1618, %v1707
    %v1709 = vpop.f32.mrb[0].mxu0
    %1710 = vmatprep.mubr.f32.mxu0 0.0
    %1711 = vmatmul.mubr.f32.gmra.mrb[0].mxu0 %v1628
    %v1712 = vpop.f32.mrb[0].mxu0
    %v1713 = vadd.f32 %v1619, %v1712
    %v1714 = vpop.f32.mrb[0].mxu0
    %1715 = vmatprep.mubr.f32.mxu0 0.0
    %1716 = vmatmul.mubr.f32.gmra.mrb[0].mxu0 %v1631
    %v1717 = vpop.f32.mrb[0].mxu0
    %v1718 = vadd.f32 %v1620, %v1717
    %v1719 = vpop.f32.mrb[0].mxu0
    %1720 = vdwg.mxu0
    %s1721 = scalar_lea.vmem %s3, 32
    %v1722 = vld [vmem:[%s1721] sm:$0xff]
    %v1723 = vld [vmem:[%s1721 + $0x8] sm:$0xff]
    %v1724 = vld [vmem:[%s1721 + $0x10] sm:$0xff]
    %v1725 = vld [vmem:[%s1721 + $0x18] sm:$0xff]
    %1727 = vset.pattern.permute.xlu0 0
    %1728 = vperm.xlu0 %1727, %v1722
    %v1729 = vpop.permute.xlu0 %1728
    %1732 = vset.pattern.permute.xlu0 0
    %1733 = vperm.xlu0 %1732, %v1723
    %v1734 = vpop.permute.xlu0 %1733
    %1737 = vset.pattern.permute.xlu0 0
    %1738 = vperm.xlu0 %1737, %v1724
    %v1739 = vpop.permute.xlu0 %1738
    %1742 = vset.pattern.permute.xlu0 0
    %1743 = vperm.xlu0 %1742, %v1725
    %v1744 = vpop.permute.xlu0 %1743
    %v1746 = vadd.f32 %v1703, %v1729
    %v1747 = vadd.f32 %v1708, %v1734
    %v1748 = vadd.f32 %v1713, %v1739
    %v1749 = vadd.f32 %v1718, %v1744
    %v1750 = vmax.f32 %v1746, 0.0
    %v1751 = vmax.f32 %v1747, 0.0
    %v1752 = vmax.f32 %v1748, 0.0
    %v1753 = vmax.f32 %v1749, 0.0
    %s1754 = scalar_lea.vmem %s5, 64
    %v1755 = vld [vmem:[%s1754] sm:$0xff]
    %v1756 = vld [vmem:[%s1754 + $0x8] sm:$0xff]
    %v1757 = vld [vmem:[%s1754 + $0x10] sm:$0xff]
    %v1758 = vld [vmem:[%s1754 + $0x18] sm:$0xff]
    %s1759 = scalar_lea.vmem %s6, 64
    %v1760 = vld [vmem:[%s1759] sm:$0xff]
    %v1761 = vld [vmem:[%s1759 + $0x8] sm:$0xff]
    %v1762 = vld [vmem:[%s1759 + $0x10] sm:$0xff]
    %v1763 = vld [vmem:[%s1759 + $0x18] sm:$0xff]
    %1765 = vset.pattern.permute.xlu0 0
    %1766 = vperm.xlu0 %1765, %v1760
    %v1767 = vpop.permute.xlu0 %1766
    %1770 = vset.pattern.permute.xlu0 0
    %1771 = vperm.xlu0 %1770, %v1761
    %v1772 = vpop.permute.xlu0 %1771
    %1775 = vset.pattern.permute.xlu0 0
    %1776 = vperm.xlu0 %1775, %v1762
    %v1777 = vpop.permute.xlu0 %1776
    %1780 = vset.pattern.permute.xlu0 0
    %1781 = vperm.xlu0 %1780, %v1763
    %v1782 = vpop.permute.xlu0 %1781
    %v1785 = vsel %vm1003, %v1755, 0
    %v1788 = vsel %vm1003, %v1756, 0
    %v1791 = vsel %vm1003, %v1757, 0
    %v1794 = vsel %vm1003, %v1758, 0
    %1796 = vmatprep.subr.mxu0 0.0
    %1797 = vmatpush1.msra.mxu0 %v1750
    %1798 = vmatprep.subr.mxu0 0.0
    %1799 = vmatpush1.msra.mxu0 %v1751
    %1800 = vmatprep.subr.mxu0 0.0
    %1801 = vmatpush1.msra.mxu0 %v1752
    %1802 = vmatprep.subr.mxu0 0.0
    %1803 = vmatpush1.msra.mxu0 %v1753
    %1804 = vmatprep.subr.mxu0 0.0
    %1805 = vmatpush1.msra.mxu0 0.0
    %1806 = vmatprep.subr.mxu0 0.0
    %1807 = vmatpush1.msra.mxu0 0.0
    %1808 = vmatprep.subr.mxu0 0.0
    %1809 = vmatpush1.msra.mxu0 0.0
    %1810 = vmatprep.subr.mxu0 0.0
    %1811 = vmatpush1.msra.mxu0 0.0
    %1812 = vmatprep.subr.mxu0 0.0
    %1813 = vmatpush1.msra.mxu0 0.0
    %1814 = vmatprep.subr.mxu0 0.0
    %1815 = vmatpush1.msra.mxu0 0.0
    %1816 = vmatprep.subr.mxu0 0.0
    %1817 = vmatpush1.msra.mxu0 0.0
    %1818 = vmatprep.subr.mxu0 0.0
    %1819 = vmatpush1.msra.mxu0 0.0
    %1820 = vmatprep.subr.mxu0 0.0
    %1821 = vmatpush1.msra.mxu0 0.0
    %1822 = vmatprep.subr.mxu0 0.0
    %1823 = vmatpush1.msra.mxu0 0.0
    %1824 = vmatprep.subr.mxu0 0.0
    %1825 = vmatpush1.msra.mxu0 0.0
    %1826 = vmatprep.subr.mxu0 0.0
    %1827 = vmatpush1.msra.mxu0 0.0
    %1828 = vmatprep.subr.mxu0 0.0
    %1829 = vmatpush1.msra.mxu0 0.0
    %1830 = vmatprep.subr.mxu0 0.0
    %1831 = vmatpush1.msra.mxu0 0.0
    %1832 = vmatprep.subr.mxu0 0.0
    %1833 = vmatpush1.msra.mxu0 0.0
    %1834 = vmatprep.subr.mxu0 0.0
    %1835 = vmatpush1.msra.mxu0 0.0
    %1836 = vmatprep.subr.mxu0 0.0
    %1837 = vmatpush1.msra.mxu0 0.0
    %1838 = vmatprep.subr.mxu0 0.0
    %1839 = vmatpush1.msra.mxu0 0.0
    %1840 = vmatprep.subr.mxu0 0.0
    %1841 = vmatpush1.msra.mxu0 0.0
    %1842 = vmatprep.subr.mxu0 0.0
    %1843 = vmatpush1.msra.mxu0 0.0
    %1844 = vmatprep.subr.mxu0 0.0
    %1845 = vmatpush1.msra.mxu0 0.0
    %1846 = vmatprep.subr.mxu0 0.0
    %1847 = vmatpush1.msra.mxu0 0.0
    %1848 = vmatprep.subr.mxu0 0.0
    %1849 = vmatpush1.msra.mxu0 0.0
    %1850 = vmatprep.subr.mxu0 0.0
    %1851 = vmatpush1.msra.mxu0 0.0
    %1852 = vmatprep.subr.mxu0 0.0
    %1853 = vmatpush1.msra.mxu0 0.0
    %1854 = vmatprep.subr.mxu0 0.0
    %1855 = vmatpush1.msra.mxu0 0.0
    %1856 = vmatprep.subr.mxu0 0.0
    %1857 = vmatpush1.msra.mxu0 0.0
    %1858 = vmatprep.subr.mxu0 0.0
    %1859 = vmatpush1.msra.mxu0 0.0
    %1860 = vmatprep.mubr.f32.mxu0 0.0
    %1861 = vmatmul.mubr.f32.gmra.mrb[0].mxu0 %v1785
    %v1862 = vpop.f32.mrb[0].mxu0
    %v1863 = vadd.f32 %v1767, %v1862
    %v1864 = vpop.f32.mrb[0].mxu0
    %1865 = vmatprep.mubr.f32.mxu0 0.0
    %1866 = vmatmul.mubr.f32.gmra.mrb[0].mxu0 %v1788
    %v1867 = vpop.f32.mrb[0].mxu0
    %v1868 = vadd.f32 %v1772, %v1867
    %v1869 = vpop.f32.mrb[0].mxu0
    %1870 = vmatprep.mubr.f32.mxu0 0.0
    %1871 = vmatmul.mubr.f32.gmra.mrb[0].mxu0 %v1791
    %v1872 = vpop.f32.mrb[0].mxu0
    %v1873 = vadd.f32 %v1777, %v1872
    %v1874 = vpop.f32.mrb[0].mxu0
    %1875 = vmatprep.mubr.f32.mxu0 0.0
    %1876 = vmatmul.mubr.f32.gmra.mrb[0].mxu0 %v1794
    %v1877 = vpop.f32.mrb[0].mxu0
    %v1878 = vadd.f32 %v1782, %v1877
    %v1879 = vpop.f32.mrb[0].mxu0
    %1880 = vdwg.mxu0
    %v1881 = vmax.f32 %v1863, 0.0
    %v1882 = vmax.f32 %v1868, 0.0
    %v1883 = vmax.f32 %v1873, 0.0
    %v1884 = vmax.f32 %v1878, 0.0
    %s1885 = scalar_lea.vmem %s7, 64
    %v1886 = vld [vmem:[%s1885] sm:$0xff]
    %v1887 = vld [vmem:[%s1885 + $0x8] sm:$0xff]
    %v1888 = vld [vmem:[%s1885 + $0x10] sm:$0xff]
    %v1889 = vld [vmem:[%s1885 + $0x18] sm:$0xff]
    %s1890 = scalar_lea.vmem %s8, 64
    %v1891 = vld [vmem:[%s1890] sm:$0xff]
    %v1892 = vld [vmem:[%s1890 + $0x8] sm:$0xff]
    %v1893 = vld [vmem:[%s1890 + $0x10] sm:$0xff]
    %v1894 = vld [vmem:[%s1890 + $0x18] sm:$0xff]
    %1896 = vset.pattern.permute.xlu0 0
    %1897 = vperm.xlu0 %1896, %v1891
    %v1898 = vpop.permute.xlu0 %1897
    %1901 = vset.pattern.permute.xlu0 0
    %1902 = vperm.xlu0 %1901, %v1892
    %v1903 = vpop.permute.xlu0 %1902
    %1906 = vset.pattern.permute.xlu0 0
    %1907 = vperm.xlu0 %1906, %v1893
    %v1908 = vpop.permute.xlu0 %1907
    %1911 = vset.pattern.permute.xlu0 0
    %1912 = vperm.xlu0 %1911, %v1894
    %v1913 = vpop.permute.xlu0 %1912
    %v1916 = vsel %vm1003, %v1886, 0
    %v1919 = vsel %vm1003, %v1887, 0
    %v1922 = vsel %vm1003, %v1888, 0
    %v1925 = vsel %vm1003, %v1889, 0
    %1927 = vmatprep.subr.mxu0 0.0
    %1928 = vmatpush1.msra.mxu0 %v1881
    %1929 = vmatprep.subr.mxu0 0.0
    %1930 = vmatpush1.msra.mxu0 %v1882
    %1931 = vmatprep.subr.mxu0 0.0
    %1932 = vmatpush1.msra.mxu0 %v1883
    %1933 = vmatprep.subr.mxu0 0.0
    %1934 = vmatpush1.msra.mxu0 %v1884
    %1935 = vmatprep.subr.mxu0 0.0
    %1936 = vmatpush1.msra.mxu0 0.0
    %1937 = vmatprep.subr.mxu0 0.0
    %1938 = vmatpush1.msra.mxu0 0.0
    %1939 = vmatprep.subr.mxu0 0.0
    %1940 = vmatpush1.msra.mxu0 0.0
    %1941 = vmatprep.subr.mxu0 0.0
    %1942 = vmatpush1.msra.mxu0 0.0
    %1943 = vmatprep.subr.mxu0 0.0
    %1944 = vmatpush1.msra.mxu0 0.0
    %1945 = vmatprep.subr.mxu0 0.0
    %1946 = vmatpush1.msra.mxu0 0.0
    %1947 = vmatprep.subr.mxu0 0.0
    %1948 = vmatpush1.msra.mxu0 0.0
    %1949 = vmatprep.subr.mxu0 0.0
    %1950 = vmatpush1.msra.mxu0 0.0
    %1951 = vmatprep.subr.mxu0 0.0
    %1952 = vmatpush1.msra.mxu0 0.0
    %1953 = vmatprep.subr.mxu0 0.0
    %1954 = vmatpush1.msra.mxu0 0.0
    %1955 = vmatprep.subr.mxu0 0.0
    %1956 = vmatpush1.msra.mxu0 0.0
    %1957 = vmatprep.subr.mxu0 0.0
    %1958 = vmatpush1.msra.mxu0 0.0
    %1959 = vmatprep.subr.mxu0 0.0
    %1960 = vmatpush1.msra.mxu0 0.0
    %1961 = vmatprep.subr.mxu0 0.0
    %1962 = vmatpush1.msra.mxu0 0.0
    %1963 = vmatprep.subr.mxu0 0.0
    %1964 = vmatpush1.msra.mxu0 0.0
    %1965 = vmatprep.subr.mxu0 0.0
    %1966 = vmatpush1.msra.mxu0 0.0
    %1967 = vmatprep.subr.mxu0 0.0
    %1968 = vmatpush1.msra.mxu0 0.0
    %1969 = vmatprep.subr.mxu0 0.0
    %1970 = vmatpush1.msra.mxu0 0.0
    %1971 = vmatprep.subr.mxu0 0.0
    %1972 = vmatpush1.msra.mxu0 0.0
    %1973 = vmatprep.subr.mxu0 0.0
    %1974 = vmatpush1.msra.mxu0 0.0
    %1975 = vmatprep.subr.mxu0 0.0
    %1976 = vmatpush1.msra.mxu0 0.0
    %1977 = vmatprep.subr.mxu0 0.0
    %1978 = vmatpush1.msra.mxu0 0.0
    %1979 = vmatprep.subr.mxu0 0.0
    %1980 = vmatpush1.msra.mxu0 0.0
    %1981 = vmatprep.subr.mxu0 0.0
    %1982 = vmatpush1.msra.mxu0 0.0
    %1983 = vmatprep.subr.mxu0 0.0
    %1984 = vmatpush1.msra.mxu0 0.0
    %1985 = vmatprep.subr.mxu0 0.0
    %1986 = vmatpush1.msra.mxu0 0.0
    %1987 = vmatprep.subr.mxu0 0.0
    %1988 = vmatpush1.msra.mxu0 0.0
    %1989 = vmatprep.subr.mxu0 0.0
    %1990 = vmatpush1.msra.mxu0 0.0
    %1991 = vmatprep.mubr.f32.mxu0 0.0
    %1992 = vmatmul.mubr.f32.gmra.mrb[0].mxu0 %v1916
    %v1993 = vpop.f32.mrb[0].mxu0
    %v1994 = vadd.f32 %v1898, %v1993
    %v1995 = vpop.f32.mrb[0].mxu0
    %1996 = vmatprep.mubr.f32.mxu0 0.0
    %1997 = vmatmul.mubr.f32.gmra.mrb[0].mxu0 %v1919
    %v1998 = vpop.f32.mrb[0].mxu0
    %v1999 = vadd.f32 %v1903, %v1998
    %v2000 = vpop.f32.mrb[0].mxu0
    %2001 = vmatprep.mubr.f32.mxu0 0.0
    %2002 = vmatmul.mubr.f32.gmra.mrb[0].mxu0 %v1922
    %v2003 = vpop.f32.mrb[0].mxu0
    %v2004 = vadd.f32 %v1908, %v2003
    %v2005 = vpop.f32.mrb[0].mxu0
    %2006 = vmatprep.mubr.f32.mxu0 0.0
    %2007 = vmatmul.mubr.f32.gmra.mrb[0].mxu0 %v1925
    %v2008 = vpop.f32.mrb[0].mxu0
    %v2009 = vadd.f32 %v1913, %v2008
    %v2010 = vpop.f32.mrb[0].mxu0
    %2011 = vdwg.mxu0
    %v2012 = vld [vmem:[#allocation3 + $0x40] sm:$0xff]
    %v2013 = vld [vmem:[#allocation3 + $0x48] sm:$0xff]
    %v2014 = vld [vmem:[#allocation3 + $0x50] sm:$0xff]
    %v2015 = vld [vmem:[#allocation3 + $0x58] sm:$0xff]
    %v2016 = vmul.f32 %v1994, %v2012
    %v2017 = vmul.f32 %v1999, %v2013
    %v2018 = vmul.f32 %v2004, %v2014
    %v2019 = vmul.f32 %v2009, %v2015
    %v2020 = vadd.f32 %v1746, %v2016
    %v2021 = vadd.f32 %v1747, %v2017
    %v2022 = vadd.f32 %v1748, %v2018
    %v2023 = vadd.f32 %v1749, %v2019
    %v2024 = vmax.f32 %v2020, 0.0
    %v2025 = vmax.f32 %v2021, 0.0
    %v2026 = vmax.f32 %v2022, 0.0
    %v2027 = vmax.f32 %v2023, 0.0
    %s2028 = scalar_lea.vmem %s5, 96
    %v2029 = vld [vmem:[%s2028] sm:$0xff]
    %v2030 = vld [vmem:[%s2028 + $0x8] sm:$0xff]
    %v2031 = vld [vmem:[%s2028 + $0x10] sm:$0xff]
    %v2032 = vld [vmem:[%s2028 + $0x18] sm:$0xff]
    %s2033 = scalar_lea.vmem %s6, 96
    %v2034 = vld [vmem:[%s2033] sm:$0xff]
    %v2035 = vld [vmem:[%s2033 + $0x8] sm:$0xff]
    %v2036 = vld [vmem:[%s2033 + $0x10] sm:$0xff]
    %v2037 = vld [vmem:[%s2033 + $0x18] sm:$0xff]
    %2039 = vset.pattern.permute.xlu0 0
    %2040 = vperm.xlu0 %2039, %v2034
    %v2041 = vpop.permute.xlu0 %2040
    %2044 = vset.pattern.permute.xlu0 0
    %2045 = vperm.xlu0 %2044, %v2035
    %v2046 = vpop.permute.xlu0 %2045
    %2049 = vset.pattern.permute.xlu0 0
    %2050 = vperm.xlu0 %2049, %v2036
    %v2051 = vpop.permute.xlu0 %2050
    %2054 = vset.pattern.permute.xlu0 0
    %2055 = vperm.xlu0 %2054, %v2037
    %v2056 = vpop.permute.xlu0 %2055
    %v2059 = vsel %vm1003, %v2029, 0
    %v2062 = vsel %vm1003, %v2030, 0
    %v2065 = vsel %vm1003, %v2031, 0
    %v2068 = vsel %vm1003, %v2032, 0
    %2070 = vmatprep.subr.mxu0 0.0
    %2071 = vmatpush1.msra.mxu0 %v2024
    %2072 = vmatprep.subr.mxu0 0.0
    %2073 = vmatpush1.msra.mxu0 %v2025
    %2074 = vmatprep.subr.mxu0 0.0
    %2075 = vmatpush1.msra.mxu0 %v2026
    %2076 = vmatprep.subr.mxu0 0.0
    %2077 = vmatpush1.msra.mxu0 %v2027
    %2078 = vmatprep.subr.mxu0 0.0
    %2079 = vmatpush1.msra.mxu0 0.0
    %2080 = vmatprep.subr.mxu0 0.0
    %2081 = vmatpush1.msra.mxu0 0.0
    %2082 = vmatprep.subr.mxu0 0.0
    %2083 = vmatpush1.msra.mxu0 0.0
    %2084 = vmatprep.subr.mxu0 0.0
    %2085 = vmatpush1.msra.mxu0 0.0
    %2086 = vmatprep.subr.mxu0 0.0
    %2087 = vmatpush1.msra.mxu0 0.0
    %2088 = vmatprep.subr.mxu0 0.0
    %2089 = vmatpush1.msra.mxu0 0.0
    %2090 = vmatprep.subr.mxu0 0.0
    %2091 = vmatpush1.msra.mxu0 0.0
    %2092 = vmatprep.subr.mxu0 0.0
    %2093 = vmatpush1.msra.mxu0 0.0
    %2094 = vmatprep.subr.mxu0 0.0
    %2095 = vmatpush1.msra.mxu0 0.0
    %2096 = vmatprep.subr.mxu0 0.0
    %2097 = vmatpush1.msra.mxu0 0.0
    %2098 = vmatprep.subr.mxu0 0.0
    %2099 = vmatpush1.msra.mxu0 0.0
    %2100 = vmatprep.subr.mxu0 0.0
    %2101 = vmatpush1.msra.mxu0 0.0
    %2102 = vmatprep.subr.mxu0 0.0
    %2103 = vmatpush1.msra.mxu0 0.0
    %2104 = vmatprep.subr.mxu0 0.0
    %2105 = vmatpush1.msra.mxu0 0.0
    %2106 = vmatprep.subr.mxu0 0.0
    %2107 = vmatpush1.msra.mxu0 0.0
    %2108 = vmatprep.subr.mxu0 0.0
    %2109 = vmatpush1.msra.mxu0 0.0
    %2110 = vmatprep.subr.mxu0 0.0
    %2111 = vmatpush1.msra.mxu0 0.0
    %2112 = vmatprep.subr.mxu0 0.0
    %2113 = vmatpush1.msra.mxu0 0.0
    %2114 = vmatprep.subr.mxu0 0.0
    %2115 = vmatpush1.msra.mxu0 0.0
    %2116 = vmatprep.subr.mxu0 0.0
    %2117 = vmatpush1.msra.mxu0 0.0
    %2118 = vmatprep.subr.mxu0 0.0
    %2119 = vmatpush1.msra.mxu0 0.0
    %2120 = vmatprep.subr.mxu0 0.0
    %2121 = vmatpush1.msra.mxu0 0.0
    %2122 = vmatprep.subr.mxu0 0.0
    %2123 = vmatpush1.msra.mxu0 0.0
    %2124 = vmatprep.subr.mxu0 0.0
    %2125 = vmatpush1.msra.mxu0 0.0
    %2126 = vmatprep.subr.mxu0 0.0
    %2127 = vmatpush1.msra.mxu0 0.0
    %2128 = vmatprep.subr.mxu0 0.0
    %2129 = vmatpush1.msra.mxu0 0.0
    %2130 = vmatprep.subr.mxu0 0.0
    %2131 = vmatpush1.msra.mxu0 0.0
    %2132 = vmatprep.subr.mxu0 0.0
    %2133 = vmatpush1.msra.mxu0 0.0
    %2134 = vmatprep.mubr.f32.mxu0 0.0
    %2135 = vmatmul.mubr.f32.gmra.mrb[0].mxu0 %v2059
    %v2136 = vpop.f32.mrb[0].mxu0
    %v2137 = vadd.f32 %v2041, %v2136
    %v2138 = vpop.f32.mrb[0].mxu0
    %2139 = vmatprep.mubr.f32.mxu0 0.0
    %2140 = vmatmul.mubr.f32.gmra.mrb[0].mxu0 %v2062
    %v2141 = vpop.f32.mrb[0].mxu0
    %v2142 = vadd.f32 %v2046, %v2141
    %v2143 = vpop.f32.mrb[0].mxu0
    %2144 = vmatprep.mubr.f32.mxu0 0.0
    %2145 = vmatmul.mubr.f32.gmra.mrb[0].mxu0 %v2065
    %v2146 = vpop.f32.mrb[0].mxu0
    %v2147 = vadd.f32 %v2051, %v2146
    %v2148 = vpop.f32.mrb[0].mxu0
    %2149 = vmatprep.mubr.f32.mxu0 0.0
    %2150 = vmatmul.mubr.f32.gmra.mrb[0].mxu0 %v2068
    %v2151 = vpop.f32.mrb[0].mxu0
    %v2152 = vadd.f32 %v2056, %v2151
    %v2153 = vpop.f32.mrb[0].mxu0
    %2154 = vdwg.mxu0
    %v2155 = vmax.f32 %v2137, 0.0
    %v2156 = vmax.f32 %v2142, 0.0
    %v2157 = vmax.f32 %v2147, 0.0
    %v2158 = vmax.f32 %v2152, 0.0
    %s2159 = scalar_lea.vmem %s7, 96
    %v2160 = vld [vmem:[%s2159] sm:$0xff]
    %v2161 = vld [vmem:[%s2159 + $0x8] sm:$0xff]
    %v2162 = vld [vmem:[%s2159 + $0x10] sm:$0xff]
    %v2163 = vld [vmem:[%s2159 + $0x18] sm:$0xff]
    %s2164 = scalar_lea.vmem %s8, 96
    %v2165 = vld [vmem:[%s2164] sm:$0xff]
    %v2166 = vld [vmem:[%s2164 + $0x8] sm:$0xff]
    %v2167 = vld [vmem:[%s2164 + $0x10] sm:$0xff]
    %v2168 = vld [vmem:[%s2164 + $0x18] sm:$0xff]
    %2170 = vset.pattern.permute.xlu0 0
    %2171 = vperm.xlu0 %2170, %v2165
    %v2172 = vpop.permute.xlu0 %2171
    %2175 = vset.pattern.permute.xlu0 0
    %2176 = vperm.xlu0 %2175, %v2166
    %v2177 = vpop.permute.xlu0 %2176
    %2180 = vset.pattern.permute.xlu0 0
    %2181 = vperm.xlu0 %2180, %v2167
    %v2182 = vpop.permute.xlu0 %2181
    %2185 = vset.pattern.permute.xlu0 0
    %2186 = vperm.xlu0 %2185, %v2168
    %v2187 = vpop.permute.xlu0 %2186
    %v2190 = vsel %vm1003, %v2160, 0
    %v2193 = vsel %vm1003, %v2161, 0
    %v2196 = vsel %vm1003, %v2162, 0
    %v2199 = vsel %vm1003, %v2163, 0
    %2201 = vmatprep.subr.mxu0 0.0
    %2202 = vmatpush1.msra.mxu0 %v2155
    %2203 = vmatprep.subr.mxu0 0.0
    %2204 = vmatpush1.msra.mxu0 %v2156
    %2205 = vmatprep.subr.mxu0 0.0
    %2206 = vmatpush1.msra.mxu0 %v2157
    %2207 = vmatprep.subr.mxu0 0.0
    %2208 = vmatpush1.msra.mxu0 %v2158
    %2209 = vmatprep.subr.mxu0 0.0
    %2210 = vmatpush1.msra.mxu0 0.0
    %2211 = vmatprep.subr.mxu0 0.0
    %2212 = vmatpush1.msra.mxu0 0.0
    %2213 = vmatprep.subr.mxu0 0.0
    %2214 = vmatpush1.msra.mxu0 0.0
    %2215 = vmatprep.subr.mxu0 0.0
    %2216 = vmatpush1.msra.mxu0 0.0
    %2217 = vmatprep.subr.mxu0 0.0
    %2218 = vmatpush1.msra.mxu0 0.0
    %2219 = vmatprep.subr.mxu0 0.0
    %2220 = vmatpush1.msra.mxu0 0.0
    %2221 = vmatprep.subr.mxu0 0.0
    %2222 = vmatpush1.msra.mxu0 0.0
    %2223 = vmatprep.subr.mxu0 0.0
    %2224 = vmatpush1.msra.mxu0 0.0
    %2225 = vmatprep.subr.mxu0 0.0
    %2226 = vmatpush1.msra.mxu0 0.0
    %2227 = vmatprep.subr.mxu0 0.0
    %2228 = vmatpush1.msra.mxu0 0.0
    %2229 = vmatprep.subr.mxu0 0.0
    %2230 = vmatpush1.msra.mxu0 0.0
    %2231 = vmatprep.subr.mxu0 0.0
    %2232 = vmatpush1.msra.mxu0 0.0
    %2233 = vmatprep.subr.mxu0 0.0
    %2234 = vmatpush1.msra.mxu0 0.0
    %2235 = vmatprep.subr.mxu0 0.0
    %2236 = vmatpush1.msra.mxu0 0.0
    %2237 = vmatprep.subr.mxu0 0.0
    %2238 = vmatpush1.msra.mxu0 0.0
    %2239 = vmatprep.subr.mxu0 0.0
    %2240 = vmatpush1.msra.mxu0 0.0
    %2241 = vmatprep.subr.mxu0 0.0
    %2242 = vmatpush1.msra.mxu0 0.0
    %2243 = vmatprep.subr.mxu0 0.0
    %2244 = vmatpush1.msra.mxu0 0.0
    %2245 = vmatprep.subr.mxu0 0.0
    %2246 = vmatpush1.msra.mxu0 0.0
    %2247 = vmatprep.subr.mxu0 0.0
    %2248 = vmatpush1.msra.mxu0 0.0
    %2249 = vmatprep.subr.mxu0 0.0
    %2250 = vmatpush1.msra.mxu0 0.0
    %2251 = vmatprep.subr.mxu0 0.0
    %2252 = vmatpush1.msra.mxu0 0.0
    %2253 = vmatprep.subr.mxu0 0.0
    %2254 = vmatpush1.msra.mxu0 0.0
    %2255 = vmatprep.subr.mxu0 0.0
    %2256 = vmatpush1.msra.mxu0 0.0
    %2257 = vmatprep.subr.mxu0 0.0
    %2258 = vmatpush1.msra.mxu0 0.0
    %2259 = vmatprep.subr.mxu0 0.0
    %2260 = vmatpush1.msra.mxu0 0.0
    %2261 = vmatprep.subr.mxu0 0.0
    %2262 = vmatpush1.msra.mxu0 0.0
    %2263 = vmatprep.subr.mxu0 0.0
    %2264 = vmatpush1.msra.mxu0 0.0
    %2265 = vmatprep.mubr.f32.mxu0 0.0
    %2266 = vmatmul.mubr.f32.gmra.mrb[0].mxu0 %v2190
    %v2267 = vpop.f32.mrb[0].mxu0
    %v2268 = vadd.f32 %v2172, %v2267
    %v2269 = vpop.f32.mrb[0].mxu0
    %2270 = vmatprep.mubr.f32.mxu0 0.0
    %2271 = vmatmul.mubr.f32.gmra.mrb[0].mxu0 %v2193
    %v2272 = vpop.f32.mrb[0].mxu0
    %v2273 = vadd.f32 %v2177, %v2272
    %v2274 = vpop.f32.mrb[0].mxu0
    %2275 = vmatprep.mubr.f32.mxu0 0.0
    %2276 = vmatmul.mubr.f32.gmra.mrb[0].mxu0 %v2196
    %v2277 = vpop.f32.mrb[0].mxu0
    %v2278 = vadd.f32 %v2182, %v2277
    %v2279 = vpop.f32.mrb[0].mxu0
    %2280 = vmatprep.mubr.f32.mxu0 0.0
    %2281 = vmatmul.mubr.f32.gmra.mrb[0].mxu0 %v2199
    %v2282 = vpop.f32.mrb[0].mxu0
    %v2283 = vadd.f32 %v2187, %v2282
    %v2284 = vpop.f32.mrb[0].mxu0
    %2285 = vdwg.mxu0
    %v2286 = vld [vmem:[#allocation3 + $0x60] sm:$0xff]
    %v2287 = vld [vmem:[#allocation3 + $0x68] sm:$0xff]
    %v2288 = vld [vmem:[#allocation3 + $0x70] sm:$0xff]
    %v2289 = vld [vmem:[#allocation3 + $0x78] sm:$0xff]
    %v2290 = vmul.f32 %v2268, %v2286
    %v2291 = vmul.f32 %v2273, %v2287
    %v2292 = vmul.f32 %v2278, %v2288
    %v2293 = vmul.f32 %v2283, %v2289
    %v2294 = vadd.f32 %v2020, %v2290
    %v2295 = vadd.f32 %v2021, %v2291
    %v2296 = vadd.f32 %v2022, %v2292
    %v2297 = vadd.f32 %v2023, %v2293
    %s2298 = scalar_lea.vmem %s11, 8
    %v2299 = vld [vmem:[%s2298] sm:$0xff]
    %s2300 = scalar_lea.vmem %s12, 8
    %v2301 = vld [vmem:[%s2300] sm:$0xff]
    %2303 = vset.pattern.permute.xlu0 0
    %2304 = vperm.xlu0 %2303, %v2301
    %v2305 = vpop.permute.xlu0 %2304
    %v2308 = vsel %vm1003, %v2299, 0
    %2310 = vmatprep.subr.mxu0 0.0
    %2311 = vmatpush1.msra.mxu0 %v2294
    %2312 = vmatprep.subr.mxu0 0.0
    %2313 = vmatpush1.msra.mxu0 %v2295
    %2314 = vmatprep.subr.mxu0 0.0
    %2315 = vmatpush1.msra.mxu0 %v2296
    %2316 = vmatprep.subr.mxu0 0.0
    %2317 = vmatpush1.msra.mxu0 %v2297
    %2318 = vmatprep.subr.mxu0 0.0
    %2319 = vmatpush1.msra.mxu0 0.0
    %2320 = vmatprep.subr.mxu0 0.0
    %2321 = vmatpush1.msra.mxu0 0.0
    %2322 = vmatprep.subr.mxu0 0.0
    %2323 = vmatpush1.msra.mxu0 0.0
    %2324 = vmatprep.subr.mxu0 0.0
    %2325 = vmatpush1.msra.mxu0 0.0
    %2326 = vmatprep.subr.mxu0 0.0
    %2327 = vmatpush1.msra.mxu0 0.0
    %2328 = vmatprep.subr.mxu0 0.0
    %2329 = vmatpush1.msra.mxu0 0.0
    %2330 = vmatprep.subr.mxu0 0.0
    %2331 = vmatpush1.msra.mxu0 0.0
    %2332 = vmatprep.subr.mxu0 0.0
    %2333 = vmatpush1.msra.mxu0 0.0
    %2334 = vmatprep.subr.mxu0 0.0
    %2335 = vmatpush1.msra.mxu0 0.0
    %2336 = vmatprep.subr.mxu0 0.0
    %2337 = vmatpush1.msra.mxu0 0.0
    %2338 = vmatprep.subr.mxu0 0.0
    %2339 = vmatpush1.msra.mxu0 0.0
    %2340 = vmatprep.subr.mxu0 0.0
    %2341 = vmatpush1.msra.mxu0 0.0
    %2342 = vmatprep.subr.mxu0 0.0
    %2343 = vmatpush1.msra.mxu0 0.0
    %2344 = vmatprep.subr.mxu0 0.0
    %2345 = vmatpush1.msra.mxu0 0.0
    %2346 = vmatprep.subr.mxu0 0.0
    %2347 = vmatpush1.msra.mxu0 0.0
    %2348 = vmatprep.subr.mxu0 0.0
    %2349 = vmatpush1.msra.mxu0 0.0
    %2350 = vmatprep.subr.mxu0 0.0
    %2351 = vmatpush1.msra.mxu0 0.0
    %2352 = vmatprep.subr.mxu0 0.0
    %2353 = vmatpush1.msra.mxu0 0.0
    %2354 = vmatprep.subr.mxu0 0.0
    %2355 = vmatpush1.msra.mxu0 0.0
    %2356 = vmatprep.subr.mxu0 0.0
    %2357 = vmatpush1.msra.mxu0 0.0
    %2358 = vmatprep.subr.mxu0 0.0
    %2359 = vmatpush1.msra.mxu0 0.0
    %2360 = vmatprep.subr.mxu0 0.0
    %2361 = vmatpush1.msra.mxu0 0.0
    %2362 = vmatprep.subr.mxu0 0.0
    %2363 = vmatpush1.msra.mxu0 0.0
    %2364 = vmatprep.subr.mxu0 0.0
    %2365 = vmatpush1.msra.mxu0 0.0
    %2366 = vmatprep.subr.mxu0 0.0
    %2367 = vmatpush1.msra.mxu0 0.0
    %2368 = vmatprep.subr.mxu0 0.0
    %2369 = vmatpush1.msra.mxu0 0.0
    %2370 = vmatprep.subr.mxu0 0.0
    %2371 = vmatpush1.msra.mxu0 0.0
    %2372 = vmatprep.subr.mxu0 0.0
    %2373 = vmatpush1.msra.mxu0 0.0
    %2374 = vmatprep.mubr.f32.mxu0 0.0
    %2375 = vmatmul.mubr.f32.gmra.mrb[0].mxu0 %v2308
    %v2376 = vpop.f32.mrb[0].mxu0
    %v2377 = vadd.f32 %v2305, %v2376
    %v2378 = vpop.f32.mrb[0].mxu0
    %2379 = vdwg.mxu0
    %v2380 = vadd.f32 %v2377, 2.0
    %v2381 = vxor.u32 %v2380, 2147483648
    %v2382 = vmul.f32 %v2381, 1.442695
    %v2383 = vpow.pop %v2382
    %v2384 = vadd.f32 %v2383, 1.0
    %v2385 = vrcp.pop %v2384
    %v2386 = vmul.f32 1.0, %v2385
    %v2387 = vadd.f32 %v2386, 0.001
    %v2388 = vlog2.pop %v2387
    %v2389 = vmul.f32 %v2388, 0.6931472
    %v2390 = vadd.f32 %v1606, %v2389
    %v2391 = vmul.f32 %v2387, %v1611
    %v2393 = vrot.slane %v2377, 4
    %v2395 = vadd.f32 %v2391, %v2393
    %s2396 = scalar_lea.vmem %s2, 64
    %v2397 = vld [vmem:[%s2396] sm:$0xff]
    %v2398 = vld [vmem:[%s2396 + $0x8] sm:$0xff]
    %v2399 = vld [vmem:[%s2396 + $0x10] sm:$0xff]
    %v2400 = vld [vmem:[%s2396 + $0x18] sm:$0xff]
    %v2401 = vld [vmem:[#allocation2 + $0x40] sm:$0xff]
    %v2402 = vld [vmem:[#allocation2 + $0x48] sm:$0xff]
    %v2403 = vld [vmem:[#allocation2 + $0x50] sm:$0xff]
    %v2404 = vld [vmem:[#allocation2 + $0x58] sm:$0xff]
    %v2406 = vsel %vm841, %v2397, 0
    %v2409 = vsel %vm841, %v2398, 0
    %v2412 = vsel %vm841, %v2399, 0
    %v2415 = vsel %vm841, %v2400, 0
    %v2418 = vsel %vm854, %v2395, 0
    %2420 = vmatprep.subr.mxu0 0.0
    %2421 = vmatpush1.msra.mxu0 %v2418
    %2422 = vmatprep.subr.mxu0 0.0
    %2423 = vmatpush1.msra.mxu0 0.0
    %2424 = vmatprep.subr.mxu0 0.0
    %2425 = vmatpush1.msra.mxu0 0.0
    %2426 = vmatprep.subr.mxu0 0.0
    %2427 = vmatpush1.msra.mxu0 0.0
    %2428 = vmatprep.subr.mxu0 0.0
    %2429 = vmatpush1.msra.mxu0 0.0
    %2430 = vmatprep.subr.mxu0 0.0
    %2431 = vmatpush1.msra.mxu0 0.0
    %2432 = vmatprep.subr.mxu0 0.0
    %2433 = vmatpush1.msra.mxu0 0.0
    %2434 = vmatprep.subr.mxu0 0.0
    %2435 = vmatpush1.msra.mxu0 0.0
    %2436 = vmatprep.subr.mxu0 0.0
    %2437 = vmatpush1.msra.mxu0 0.0
    %2438 = vmatprep.subr.mxu0 0.0
    %2439 = vmatpush1.msra.mxu0 0.0
    %2440 = vmatprep.subr.mxu0 0.0
    %2441 = vmatpush1.msra.mxu0 0.0
    %2442 = vmatprep.subr.mxu0 0.0
    %2443 = vmatpush1.msra.mxu0 0.0
    %2444 = vmatprep.subr.mxu0 0.0
    %2445 = vmatpush1.msra.mxu0 0.0
    %2446 = vmatprep.subr.mxu0 0.0
    %2447 = vmatpush1.msra.mxu0 0.0
    %2448 = vmatprep.subr.mxu0 0.0
    %2449 = vmatpush1.msra.mxu0 0.0
    %2450 = vmatprep.subr.mxu0 0.0
    %2451 = vmatpush1.msra.mxu0 0.0
    %2452 = vmatprep.subr.mxu0 0.0
    %2453 = vmatpush1.msra.mxu0 0.0
    %2454 = vmatprep.subr.mxu0 0.0
    %2455 = vmatpush1.msra.mxu0 0.0
    %2456 = vmatprep.subr.mxu0 0.0
    %2457 = vmatpush1.msra.mxu0 0.0
    %2458 = vmatprep.subr.mxu0 0.0
    %2459 = vmatpush1.msra.mxu0 0.0
    %2460 = vmatprep.subr.mxu0 0.0
    %2461 = vmatpush1.msra.mxu0 0.0
    %2462 = vmatprep.subr.mxu0 0.0
    %2463 = vmatpush1.msra.mxu0 0.0
    %2464 = vmatprep.subr.mxu0 0.0
    %2465 = vmatpush1.msra.mxu0 0.0
    %2466 = vmatprep.subr.mxu0 0.0
    %2467 = vmatpush1.msra.mxu0 0.0
    %2468 = vmatprep.subr.mxu0 0.0
    %2469 = vmatpush1.msra.mxu0 0.0
    %2470 = vmatprep.subr.mxu0 0.0
    %2471 = vmatpush1.msra.mxu0 0.0
    %2472 = vmatprep.subr.mxu0 0.0
    %2473 = vmatpush1.msra.mxu0 0.0
    %2474 = vmatprep.subr.mxu0 0.0
    %2475 = vmatpush1.msra.mxu0 0.0
    %2476 = vmatprep.subr.mxu0 0.0
    %2477 = vmatpush1.msra.mxu0 0.0
    %2478 = vmatprep.subr.mxu0 0.0
    %2479 = vmatpush1.msra.mxu0 0.0
    %2480 = vmatprep.subr.mxu0 0.0
    %2481 = vmatpush1.msra.mxu0 0.0
    %2482 = vmatprep.subr.mxu0 0.0
    %2483 = vmatpush1.msra.mxu0 0.0
    %2484 = vmatprep.mubr.f32.mxu0 0.0
    %2485 = vmatmul.mubr.f32.gmra.mrb[0].mxu0 %v2406
    %v2486 = vpop.f32.mrb[0].mxu0
    %v2487 = vadd.f32 %v2401, %v2486
    %v2488 = vpop.f32.mrb[0].mxu0
    %2489 = vmatprep.mubr.f32.mxu0 0.0
    %2490 = vmatmul.mubr.f32.gmra.mrb[0].mxu0 %v2409
    %v2491 = vpop.f32.mrb[0].mxu0
    %v2492 = vadd.f32 %v2402, %v2491
    %v2493 = vpop.f32.mrb[0].mxu0
    %2494 = vmatprep.mubr.f32.mxu0 0.0
    %2495 = vmatmul.mubr.f32.gmra.mrb[0].mxu0 %v2412
    %v2496 = vpop.f32.mrb[0].mxu0
    %v2497 = vadd.f32 %v2403, %v2496
    %v2498 = vpop.f32.mrb[0].mxu0
    %2499 = vmatprep.mubr.f32.mxu0 0.0
    %2500 = vmatmul.mubr.f32.gmra.mrb[0].mxu0 %v2415
    %v2501 = vpop.f32.mrb[0].mxu0
    %v2502 = vadd.f32 %v2404, %v2501
    %v2503 = vpop.f32.mrb[0].mxu0
    %2504 = vdwg.mxu0
    %s2505 = scalar_lea.vmem %s3, 64
    %v2506 = vld [vmem:[%s2505] sm:$0xff]
    %v2507 = vld [vmem:[%s2505 + $0x8] sm:$0xff]
    %v2508 = vld [vmem:[%s2505 + $0x10] sm:$0xff]
    %v2509 = vld [vmem:[%s2505 + $0x18] sm:$0xff]
    %2511 = vset.pattern.permute.xlu0 0
    %2512 = vperm.xlu0 %2511, %v2506
    %v2513 = vpop.permute.xlu0 %2512
    %2516 = vset.pattern.permute.xlu0 0
    %2517 = vperm.xlu0 %2516, %v2507
    %v2518 = vpop.permute.xlu0 %2517
    %2521 = vset.pattern.permute.xlu0 0
    %2522 = vperm.xlu0 %2521, %v2508
    %v2523 = vpop.permute.xlu0 %2522
    %2526 = vset.pattern.permute.xlu0 0
    %2527 = vperm.xlu0 %2526, %v2509
    %v2528 = vpop.permute.xlu0 %2527
    %v2530 = vadd.f32 %v2487, %v2513
    %v2531 = vadd.f32 %v2492, %v2518
    %v2532 = vadd.f32 %v2497, %v2523
    %v2533 = vadd.f32 %v2502, %v2528
    %v2534 = vmax.f32 %v2530, 0.0
    %v2535 = vmax.f32 %v2531, 0.0
    %v2536 = vmax.f32 %v2532, 0.0
    %v2537 = vmax.f32 %v2533, 0.0
    %s2538 = scalar_lea.vmem %s5, 128
    %v2539 = vld [vmem:[%s2538] sm:$0xff]
    %v2540 = vld [vmem:[%s2538 + $0x8] sm:$0xff]
    %v2541 = vld [vmem:[%s2538 + $0x10] sm:$0xff]
    %v2542 = vld [vmem:[%s2538 + $0x18] sm:$0xff]
    %s2543 = scalar_lea.vmem %s6, 128
    %v2544 = vld [vmem:[%s2543] sm:$0xff]
    %v2545 = vld [vmem:[%s2543 + $0x8] sm:$0xff]
    %v2546 = vld [vmem:[%s2543 + $0x10] sm:$0xff]
    %v2547 = vld [vmem:[%s2543 + $0x18] sm:$0xff]
    %2549 = vset.pattern.permute.xlu0 0
    %2550 = vperm.xlu0 %2549, %v2544
    %v2551 = vpop.permute.xlu0 %2550
    %2554 = vset.pattern.permute.xlu0 0
    %2555 = vperm.xlu0 %2554, %v2545
    %v2556 = vpop.permute.xlu0 %2555
    %2559 = vset.pattern.permute.xlu0 0
    %2560 = vperm.xlu0 %2559, %v2546
    %v2561 = vpop.permute.xlu0 %2560
    %2564 = vset.pattern.permute.xlu0 0
    %2565 = vperm.xlu0 %2564, %v2547
    %v2566 = vpop.permute.xlu0 %2565
    %v2569 = vsel %vm1003, %v2539, 0
    %v2572 = vsel %vm1003, %v2540, 0
    %v2575 = vsel %vm1003, %v2541, 0
    %v2578 = vsel %vm1003, %v2542, 0
    %2580 = vmatprep.subr.mxu0 0.0
    %2581 = vmatpush1.msra.mxu0 %v2534
    %2582 = vmatprep.subr.mxu0 0.0
    %2583 = vmatpush1.msra.mxu0 %v2535
    %2584 = vmatprep.subr.mxu0 0.0
    %2585 = vmatpush1.msra.mxu0 %v2536
    %2586 = vmatprep.subr.mxu0 0.0
    %2587 = vmatpush1.msra.mxu0 %v2537
    %2588 = vmatprep.subr.mxu0 0.0
    %2589 = vmatpush1.msra.mxu0 0.0
    %2590 = vmatprep.subr.mxu0 0.0
    %2591 = vmatpush1.msra.mxu0 0.0
    %2592 = vmatprep.subr.mxu0 0.0
    %2593 = vmatpush1.msra.mxu0 0.0
    %2594 = vmatprep.subr.mxu0 0.0
    %2595 = vmatpush1.msra.mxu0 0.0
    %2596 = vmatprep.subr.mxu0 0.0
    %2597 = vmatpush1.msra.mxu0 0.0
    %2598 = vmatprep.subr.mxu0 0.0
    %2599 = vmatpush1.msra.mxu0 0.0
    %2600 = vmatprep.subr.mxu0 0.0
    %2601 = vmatpush1.msra.mxu0 0.0
    %2602 = vmatprep.subr.mxu0 0.0
    %2603 = vmatpush1.msra.mxu0 0.0
    %2604 = vmatprep.subr.mxu0 0.0
    %2605 = vmatpush1.msra.mxu0 0.0
    %2606 = vmatprep.subr.mxu0 0.0
    %2607 = vmatpush1.msra.mxu0 0.0
    %2608 = vmatprep.subr.mxu0 0.0
    %2609 = vmatpush1.msra.mxu0 0.0
    %2610 = vmatprep.subr.mxu0 0.0
    %2611 = vmatpush1.msra.mxu0 0.0
    %2612 = vmatprep.subr.mxu0 0.0
    %2613 = vmatpush1.msra.mxu0 0.0
    %2614 = vmatprep.subr.mxu0 0.0
    %2615 = vmatpush1.msra.mxu0 0.0
    %2616 = vmatprep.subr.mxu0 0.0
    %2617 = vmatpush1.msra.mxu0 0.0
    %2618 = vmatprep.subr.mxu0 0.0
    %2619 = vmatpush1.msra.mxu0 0.0
    %2620 = vmatprep.subr.mxu0 0.0
    %2621 = vmatpush1.msra.mxu0 0.0
    %2622 = vmatprep.subr.mxu0 0.0
    %2623 = vmatpush1.msra.mxu0 0.0
    %2624 = vmatprep.subr.mxu0 0.0
    %2625 = vmatpush1.msra.mxu0 0.0
    %2626 = vmatprep.subr.mxu0 0.0
    %2627 = vmatpush1.msra.mxu0 0.0
    %2628 = vmatprep.subr.mxu0 0.0
    %2629 = vmatpush1.msra.mxu0 0.0
    %2630 = vmatprep.subr.mxu0 0.0
    %2631 = vmatpush1.msra.mxu0 0.0
    %2632 = vmatprep.subr.mxu0 0.0
    %2633 = vmatpush1.msra.mxu0 0.0
    %2634 = vmatprep.subr.mxu0 0.0
    %2635 = vmatpush1.msra.mxu0 0.0
    %2636 = vmatprep.subr.mxu0 0.0
    %2637 = vmatpush1.msra.mxu0 0.0
    %2638 = vmatprep.subr.mxu0 0.0
    %2639 = vmatpush1.msra.mxu0 0.0
    %2640 = vmatprep.subr.mxu0 0.0
    %2641 = vmatpush1.msra.mxu0 0.0
    %2642 = vmatprep.subr.mxu0 0.0
    %2643 = vmatpush1.msra.mxu0 0.0
    %2644 = vmatprep.mubr.f32.mxu0 0.0
    %2645 = vmatmul.mubr.f32.gmra.mrb[0].mxu0 %v2569
    %v2646 = vpop.f32.mrb[0].mxu0
    %v2647 = vadd.f32 %v2551, %v2646
    %v2648 = vpop.f32.mrb[0].mxu0
    %2649 = vmatprep.mubr.f32.mxu0 0.0
    %2650 = vmatmul.mubr.f32.gmra.mrb[0].mxu0 %v2572
    %v2651 = vpop.f32.mrb[0].mxu0
    %v2652 = vadd.f32 %v2556, %v2651
    %v2653 = vpop.f32.mrb[0].mxu0
    %2654 = vmatprep.mubr.f32.mxu0 0.0
    %2655 = vmatmul.mubr.f32.gmra.mrb[0].mxu0 %v2575
    %v2656 = vpop.f32.mrb[0].mxu0
    %v2657 = vadd.f32 %v2561, %v2656
    %v2658 = vpop.f32.mrb[0].mxu0
    %2659 = vmatprep.mubr.f32.mxu0 0.0
    %2660 = vmatmul.mubr.f32.gmra.mrb[0].mxu0 %v2578
    %v2661 = vpop.f32.mrb[0].mxu0
    %v2662 = vadd.f32 %v2566, %v2661
    %v2663 = vpop.f32.mrb[0].mxu0
    %2664 = vdwg.mxu0
    %v2665 = vmax.f32 %v2647, 0.0
    %v2666 = vmax.f32 %v2652, 0.0
    %v2667 = vmax.f32 %v2657, 0.0
    %v2668 = vmax.f32 %v2662, 0.0
    %s2669 = scalar_lea.vmem %s7, 128
    %v2670 = vld [vmem:[%s2669] sm:$0xff]
    %v2671 = vld [vmem:[%s2669 + $0x8] sm:$0xff]
    %v2672 = vld [vmem:[%s2669 + $0x10] sm:$0xff]
    %v2673 = vld [vmem:[%s2669 + $0x18] sm:$0xff]
    %s2674 = scalar_lea.vmem %s8, 128
    %v2675 = vld [vmem:[%s2674] sm:$0xff]
    %v2676 = vld [vmem:[%s2674 + $0x8] sm:$0xff]
    %v2677 = vld [vmem:[%s2674 + $0x10] sm:$0xff]
    %v2678 = vld [vmem:[%s2674 + $0x18] sm:$0xff]
    %2680 = vset.pattern.permute.xlu0 0
    %2681 = vperm.xlu0 %2680, %v2675
    %v2682 = vpop.permute.xlu0 %2681
    %2685 = vset.pattern.permute.xlu0 0
    %2686 = vperm.xlu0 %2685, %v2676
    %v2687 = vpop.permute.xlu0 %2686
    %2690 = vset.pattern.permute.xlu0 0
    %2691 = vperm.xlu0 %2690, %v2677
    %v2692 = vpop.permute.xlu0 %2691
    %2695 = vset.pattern.permute.xlu0 0
    %2696 = vperm.xlu0 %2695, %v2678
    %v2697 = vpop.permute.xlu0 %2696
    %v2700 = vsel %vm1003, %v2670, 0
    %v2703 = vsel %vm1003, %v2671, 0
    %v2706 = vsel %vm1003, %v2672, 0
    %v2709 = vsel %vm1003, %v2673, 0
    %2711 = vmatprep.subr.mxu0 0.0
    %2712 = vmatpush1.msra.mxu0 %v2665
    %2713 = vmatprep.subr.mxu0 0.0
    %2714 = vmatpush1.msra.mxu0 %v2666
    %2715 = vmatprep.subr.mxu0 0.0
    %2716 = vmatpush1.msra.mxu0 %v2667
    %2717 = vmatprep.subr.mxu0 0.0
    %2718 = vmatpush1.msra.mxu0 %v2668
    %2719 = vmatprep.subr.mxu0 0.0
    %2720 = vmatpush1.msra.mxu0 0.0
    %2721 = vmatprep.subr.mxu0 0.0
    %2722 = vmatpush1.msra.mxu0 0.0
    %2723 = vmatprep.subr.mxu0 0.0
    %2724 = vmatpush1.msra.mxu0 0.0
    %2725 = vmatprep.subr.mxu0 0.0
    %2726 = vmatpush1.msra.mxu0 0.0
    %2727 = vmatprep.subr.mxu0 0.0
    %2728 = vmatpush1.msra.mxu0 0.0
    %2729 = vmatprep.subr.mxu0 0.0
    %2730 = vmatpush1.msra.mxu0 0.0
    %2731 = vmatprep.subr.mxu0 0.0
    %2732 = vmatpush1.msra.mxu0 0.0
    %2733 = vmatprep.subr.mxu0 0.0
    %2734 = vmatpush1.msra.mxu0 0.0
    %2735 = vmatprep.subr.mxu0 0.0
    %2736 = vmatpush1.msra.mxu0 0.0
    %2737 = vmatprep.subr.mxu0 0.0
    %2738 = vmatpush1.msra.mxu0 0.0
    %2739 = vmatprep.subr.mxu0 0.0
    %2740 = vmatpush1.msra.mxu0 0.0
    %2741 = vmatprep.subr.mxu0 0.0
    %2742 = vmatpush1.msra.mxu0 0.0
    %2743 = vmatprep.subr.mxu0 0.0
    %2744 = vmatpush1.msra.mxu0 0.0
    %2745 = vmatprep.subr.mxu0 0.0
    %2746 = vmatpush1.msra.mxu0 0.0
    %2747 = vmatprep.subr.mxu0 0.0
    %2748 = vmatpush1.msra.mxu0 0.0
    %2749 = vmatprep.subr.mxu0 0.0
    %2750 = vmatpush1.msra.mxu0 0.0
    %2751 = vmatprep.subr.mxu0 0.0
    %2752 = vmatpush1.msra.mxu0 0.0
    %2753 = vmatprep.subr.mxu0 0.0
    %2754 = vmatpush1.msra.mxu0 0.0
    %2755 = vmatprep.subr.mxu0 0.0
    %2756 = vmatpush1.msra.mxu0 0.0
    %2757 = vmatprep.subr.mxu0 0.0
    %2758 = vmatpush1.msra.mxu0 0.0
    %2759 = vmatprep.subr.mxu0 0.0
    %2760 = vmatpush1.msra.mxu0 0.0
    %2761 = vmatprep.subr.mxu0 0.0
    %2762 = vmatpush1.msra.mxu0 0.0
    %2763 = vmatprep.subr.mxu0 0.0
    %2764 = vmatpush1.msra.mxu0 0.0
    %2765 = vmatprep.subr.mxu0 0.0
    %2766 = vmatpush1.msra.mxu0 0.0
    %2767 = vmatprep.subr.mxu0 0.0
    %2768 = vmatpush1.msra.mxu0 0.0
    %2769 = vmatprep.subr.mxu0 0.0
    %2770 = vmatpush1.msra.mxu0 0.0
    %2771 = vmatprep.subr.mxu0 0.0
    %2772 = vmatpush1.msra.mxu0 0.0
    %2773 = vmatprep.subr.mxu0 0.0
    %2774 = vmatpush1.msra.mxu0 0.0
    %2775 = vmatprep.mubr.f32.mxu0 0.0
    %2776 = vmatmul.mubr.f32.gmra.mrb[0].mxu0 %v2700
    %v2777 = vpop.f32.mrb[0].mxu0
    %v2778 = vadd.f32 %v2682, %v2777
    %v2779 = vpop.f32.mrb[0].mxu0
    %2780 = vmatprep.mubr.f32.mxu0 0.0
    %2781 = vmatmul.mubr.f32.gmra.mrb[0].mxu0 %v2703
    %v2782 = vpop.f32.mrb[0].mxu0
    %v2783 = vadd.f32 %v2687, %v2782
    %v2784 = vpop.f32.mrb[0].mxu0
    %2785 = vmatprep.mubr.f32.mxu0 0.0
    %2786 = vmatmul.mubr.f32.gmra.mrb[0].mxu0 %v2706
    %v2787 = vpop.f32.mrb[0].mxu0
    %v2788 = vadd.f32 %v2692, %v2787
    %v2789 = vpop.f32.mrb[0].mxu0
    %2790 = vmatprep.mubr.f32.mxu0 0.0
    %2791 = vmatmul.mubr.f32.gmra.mrb[0].mxu0 %v2709
    %v2792 = vpop.f32.mrb[0].mxu0
    %v2793 = vadd.f32 %v2697, %v2792
    %v2794 = vpop.f32.mrb[0].mxu0
    %2795 = vdwg.mxu0
    %v2796 = vld [vmem:[#allocation3 + $0x80] sm:$0xff]
    %v2797 = vld [vmem:[#allocation3 + $0x88] sm:$0xff]
    %v2798 = vld [vmem:[#allocation3 + $0x90] sm:$0xff]
    %v2799 = vld [vmem:[#allocation3 + $0x98] sm:$0xff]
    %v2800 = vmul.f32 %v2778, %v2796
    %v2801 = vmul.f32 %v2783, %v2797
    %v2802 = vmul.f32 %v2788, %v2798
    %v2803 = vmul.f32 %v2793, %v2799
    %v2804 = vadd.f32 %v2530, %v2800
    %v2805 = vadd.f32 %v2531, %v2801
    %v2806 = vadd.f32 %v2532, %v2802
    %v2807 = vadd.f32 %v2533, %v2803
    %v2808 = vmax.f32 %v2804, 0.0
    %v2809 = vmax.f32 %v2805, 0.0
    %v2810 = vmax.f32 %v2806, 0.0
    %v2811 = vmax.f32 %v2807, 0.0
    %s2812 = scalar_lea.vmem %s5, 160
    %v2813 = vld [vmem:[%s2812] sm:$0xff]
    %v2814 = vld [vmem:[%s2812 + $0x8] sm:$0xff]
    %v2815 = vld [vmem:[%s2812 + $0x10] sm:$0xff]
    %v2816 = vld [vmem:[%s2812 + $0x18] sm:$0xff]
    %s2817 = scalar_lea.vmem %s6, 160
    %v2818 = vld [vmem:[%s2817] sm:$0xff]
    %v2819 = vld [vmem:[%s2817 + $0x8] sm:$0xff]
    %v2820 = vld [vmem:[%s2817 + $0x10] sm:$0xff]
    %v2821 = vld [vmem:[%s2817 + $0x18] sm:$0xff]
    %2823 = vset.pattern.permute.xlu0 0
    %2824 = vperm.xlu0 %2823, %v2818
    %v2825 = vpop.permute.xlu0 %2824
    %2828 = vset.pattern.permute.xlu0 0
    %2829 = vperm.xlu0 %2828, %v2819
    %v2830 = vpop.permute.xlu0 %2829
    %2833 = vset.pattern.permute.xlu0 0
    %2834 = vperm.xlu0 %2833, %v2820
    %v2835 = vpop.permute.xlu0 %2834
    %2838 = vset.pattern.permute.xlu0 0
    %2839 = vperm.xlu0 %2838, %v2821
    %v2840 = vpop.permute.xlu0 %2839
    %v2843 = vsel %vm1003, %v2813, 0
    %v2846 = vsel %vm1003, %v2814, 0
    %v2849 = vsel %vm1003, %v2815, 0
    %v2852 = vsel %vm1003, %v2816, 0
    %2854 = vmatprep.subr.mxu0 0.0
    %2855 = vmatpush1.msra.mxu0 %v2808
    %2856 = vmatprep.subr.mxu0 0.0
    %2857 = vmatpush1.msra.mxu0 %v2809
    %2858 = vmatprep.subr.mxu0 0.0
    %2859 = vmatpush1.msra.mxu0 %v2810
    %2860 = vmatprep.subr.mxu0 0.0
    %2861 = vmatpush1.msra.mxu0 %v2811
    %2862 = vmatprep.subr.mxu0 0.0
    %2863 = vmatpush1.msra.mxu0 0.0
    %2864 = vmatprep.subr.mxu0 0.0
    %2865 = vmatpush1.msra.mxu0 0.0
    %2866 = vmatprep.subr.mxu0 0.0
    %2867 = vmatpush1.msra.mxu0 0.0
    %2868 = vmatprep.subr.mxu0 0.0
    %2869 = vmatpush1.msra.mxu0 0.0
    %2870 = vmatprep.subr.mxu0 0.0
    %2871 = vmatpush1.msra.mxu0 0.0
    %2872 = vmatprep.subr.mxu0 0.0
    %2873 = vmatpush1.msra.mxu0 0.0
    %2874 = vmatprep.subr.mxu0 0.0
    %2875 = vmatpush1.msra.mxu0 0.0
    %2876 = vmatprep.subr.mxu0 0.0
    %2877 = vmatpush1.msra.mxu0 0.0
    %2878 = vmatprep.subr.mxu0 0.0
    %2879 = vmatpush1.msra.mxu0 0.0
    %2880 = vmatprep.subr.mxu0 0.0
    %2881 = vmatpush1.msra.mxu0 0.0
    %2882 = vmatprep.subr.mxu0 0.0
    %2883 = vmatpush1.msra.mxu0 0.0
    %2884 = vmatprep.subr.mxu0 0.0
    %2885 = vmatpush1.msra.mxu0 0.0
    %2886 = vmatprep.subr.mxu0 0.0
    %2887 = vmatpush1.msra.mxu0 0.0
    %2888 = vmatprep.subr.mxu0 0.0
    %2889 = vmatpush1.msra.mxu0 0.0
    %2890 = vmatprep.subr.mxu0 0.0
    %2891 = vmatpush1.msra.mxu0 0.0
    %2892 = vmatprep.subr.mxu0 0.0
    %2893 = vmatpush1.msra.mxu0 0.0
    %2894 = vmatprep.subr.mxu0 0.0
    %2895 = vmatpush1.msra.mxu0 0.0
    %2896 = vmatprep.subr.mxu0 0.0
    %2897 = vmatpush1.msra.mxu0 0.0
    %2898 = vmatprep.subr.mxu0 0.0
    %2899 = vmatpush1.msra.mxu0 0.0
    %2900 = vmatprep.subr.mxu0 0.0
    %2901 = vmatpush1.msra.mxu0 0.0
    %2902 = vmatprep.subr.mxu0 0.0
    %2903 = vmatpush1.msra.mxu0 0.0
    %2904 = vmatprep.subr.mxu0 0.0
    %2905 = vmatpush1.msra.mxu0 0.0
    %2906 = vmatprep.subr.mxu0 0.0
    %2907 = vmatpush1.msra.mxu0 0.0
    %2908 = vmatprep.subr.mxu0 0.0
    %2909 = vmatpush1.msra.mxu0 0.0
    %2910 = vmatprep.subr.mxu0 0.0
    %2911 = vmatpush1.msra.mxu0 0.0
    %2912 = vmatprep.subr.mxu0 0.0
    %2913 = vmatpush1.msra.mxu0 0.0
    %2914 = vmatprep.subr.mxu0 0.0
    %2915 = vmatpush1.msra.mxu0 0.0
    %2916 = vmatprep.subr.mxu0 0.0
    %2917 = vmatpush1.msra.mxu0 0.0
    %2918 = vmatprep.mubr.f32.mxu0 0.0
    %2919 = vmatmul.mubr.f32.gmra.mrb[0].mxu0 %v2843
    %v2920 = vpop.f32.mrb[0].mxu0
    %v2921 = vadd.f32 %v2825, %v2920
    %v2922 = vpop.f32.mrb[0].mxu0
    %2923 = vmatprep.mubr.f32.mxu0 0.0
    %2924 = vmatmul.mubr.f32.gmra.mrb[0].mxu0 %v2846
    %v2925 = vpop.f32.mrb[0].mxu0
    %v2926 = vadd.f32 %v2830, %v2925
    %v2927 = vpop.f32.mrb[0].mxu0
    %2928 = vmatprep.mubr.f32.mxu0 0.0
    %2929 = vmatmul.mubr.f32.gmra.mrb[0].mxu0 %v2849
    %v2930 = vpop.f32.mrb[0].mxu0
    %v2931 = vadd.f32 %v2835, %v2930
    %v2932 = vpop.f32.mrb[0].mxu0
    %2933 = vmatprep.mubr.f32.mxu0 0.0
    %2934 = vmatmul.mubr.f32.gmra.mrb[0].mxu0 %v2852
    %v2935 = vpop.f32.mrb[0].mxu0
    %v2936 = vadd.f32 %v2840, %v2935
    %v2937 = vpop.f32.mrb[0].mxu0
    %2938 = vdwg.mxu0
    %v2939 = vmax.f32 %v2921, 0.0
    %v2940 = vmax.f32 %v2926, 0.0
    %v2941 = vmax.f32 %v2931, 0.0
    %v2942 = vmax.f32 %v2936, 0.0
    %s2943 = scalar_lea.vmem %s7, 160
    %v2944 = vld [vmem:[%s2943] sm:$0xff]
    %v2945 = vld [vmem:[%s2943 + $0x8] sm:$0xff]
    %v2946 = vld [vmem:[%s2943 + $0x10] sm:$0xff]
    %v2947 = vld [vmem:[%s2943 + $0x18] sm:$0xff]
    %s2948 = scalar_lea.vmem %s8, 160
    %v2949 = vld [vmem:[%s2948] sm:$0xff]
    %v2950 = vld [vmem:[%s2948 + $0x8] sm:$0xff]
    %v2951 = vld [vmem:[%s2948 + $0x10] sm:$0xff]
    %v2952 = vld [vmem:[%s2948 + $0x18] sm:$0xff]
    %2954 = vset.pattern.permute.xlu0 0
    %2955 = vperm.xlu0 %2954, %v2949
    %v2956 = vpop.permute.xlu0 %2955
    %2959 = vset.pattern.permute.xlu0 0
    %2960 = vperm.xlu0 %2959, %v2950
    %v2961 = vpop.permute.xlu0 %2960
    %2964 = vset.pattern.permute.xlu0 0
    %2965 = vperm.xlu0 %2964, %v2951
    %v2966 = vpop.permute.xlu0 %2965
    %2969 = vset.pattern.permute.xlu0 0
    %2970 = vperm.xlu0 %2969, %v2952
    %v2971 = vpop.permute.xlu0 %2970
    %v2974 = vsel %vm1003, %v2944, 0
    %v2977 = vsel %vm1003, %v2945, 0
    %v2980 = vsel %vm1003, %v2946, 0
    %v2983 = vsel %vm1003, %v2947, 0
    %2985 = vmatprep.subr.mxu0 0.0
    %2986 = vmatpush1.msra.mxu0 %v2939
    %2987 = vmatprep.subr.mxu0 0.0
    %2988 = vmatpush1.msra.mxu0 %v2940
    %2989 = vmatprep.subr.mxu0 0.0
    %2990 = vmatpush1.msra.mxu0 %v2941
    %2991 = vmatprep.subr.mxu0 0.0
    %2992 = vmatpush1.msra.mxu0 %v2942
    %2993 = vmatprep.subr.mxu0 0.0
    %2994 = vmatpush1.msra.mxu0 0.0
    %2995 = vmatprep.subr.mxu0 0.0
    %2996 = vmatpush1.msra.mxu0 0.0
    %2997 = vmatprep.subr.mxu0 0.0
    %2998 = vmatpush1.msra.mxu0 0.0
    %2999 = vmatprep.subr.mxu0 0.0
    %3000 = vmatpush1.msra.mxu0 0.0
    %3001 = vmatprep.subr.mxu0 0.0
    %3002 = vmatpush1.msra.mxu0 0.0
    %3003 = vmatprep.subr.mxu0 0.0
    %3004 = vmatpush1.msra.mxu0 0.0
    %3005 = vmatprep.subr.mxu0 0.0
    %3006 = vmatpush1.msra.mxu0 0.0
    %3007 = vmatprep.subr.mxu0 0.0
    %3008 = vmatpush1.msra.mxu0 0.0
    %3009 = vmatprep.subr.mxu0 0.0
    %3010 = vmatpush1.msra.mxu0 0.0
    %3011 = vmatprep.subr.mxu0 0.0
    %3012 = vmatpush1.msra.mxu0 0.0
    %3013 = vmatprep.subr.mxu0 0.0
    %3014 = vmatpush1.msra.mxu0 0.0
    %3015 = vmatprep.subr.mxu0 0.0
    %3016 = vmatpush1.msra.mxu0 0.0
    %3017 = vmatprep.subr.mxu0 0.0
    %3018 = vmatpush1.msra.mxu0 0.0
    %3019 = vmatprep.subr.mxu0 0.0
    %3020 = vmatpush1.msra.mxu0 0.0
    %3021 = vmatprep.subr.mxu0 0.0
    %3022 = vmatpush1.msra.mxu0 0.0
    %3023 = vmatprep.subr.mxu0 0.0
    %3024 = vmatpush1.msra.mxu0 0.0
    %3025 = vmatprep.subr.mxu0 0.0
    %3026 = vmatpush1.msra.mxu0 0.0
    %3027 = vmatprep.subr.mxu0 0.0
    %3028 = vmatpush1.msra.mxu0 0.0
    %3029 = vmatprep.subr.mxu0 0.0
    %3030 = vmatpush1.msra.mxu0 0.0
    %3031 = vmatprep.subr.mxu0 0.0
    %3032 = vmatpush1.msra.mxu0 0.0
    %3033 = vmatprep.subr.mxu0 0.0
    %3034 = vmatpush1.msra.mxu0 0.0
    %3035 = vmatprep.subr.mxu0 0.0
    %3036 = vmatpush1.msra.mxu0 0.0
    %3037 = vmatprep.subr.mxu0 0.0
    %3038 = vmatpush1.msra.mxu0 0.0
    %3039 = vmatprep.subr.mxu0 0.0
    %3040 = vmatpush1.msra.mxu0 0.0
    %3041 = vmatprep.subr.mxu0 0.0
    %3042 = vmatpush1.msra.mxu0 0.0
    %3043 = vmatprep.subr.mxu0 0.0
    %3044 = vmatpush1.msra.mxu0 0.0
    %3045 = vmatprep.subr.mxu0 0.0
    %3046 = vmatpush1.msra.mxu0 0.0
    %3047 = vmatprep.subr.mxu0 0.0
    %3048 = vmatpush1.msra.mxu0 0.0
    %3049 = vmatprep.mubr.f32.mxu0 0.0
    %3050 = vmatmul.mubr.f32.gmra.mrb[0].mxu0 %v2974
    %v3051 = vpop.f32.mrb[0].mxu0
    %v3052 = vadd.f32 %v2956, %v3051
    %v3053 = vpop.f32.mrb[0].mxu0
    %3054 = vmatprep.mubr.f32.mxu0 0.0
    %3055 = vmatmul.mubr.f32.gmra.mrb[0].mxu0 %v2977
    %v3056 = vpop.f32.mrb[0].mxu0
    %v3057 = vadd.f32 %v2961, %v3056
    %v3058 = vpop.f32.mrb[0].mxu0
    %3059 = vmatprep.mubr.f32.mxu0 0.0
    %3060 = vmatmul.mubr.f32.gmra.mrb[0].mxu0 %v2980
    %v3061 = vpop.f32.mrb[0].mxu0
    %v3062 = vadd.f32 %v2966, %v3061
    %v3063 = vpop.f32.mrb[0].mxu0
    %3064 = vmatprep.mubr.f32.mxu0 0.0
    %3065 = vmatmul.mubr.f32.gmra.mrb[0].mxu0 %v2983
    %v3066 = vpop.f32.mrb[0].mxu0
    %v3067 = vadd.f32 %v2971, %v3066
    %v3068 = vpop.f32.mrb[0].mxu0
    %3069 = vdwg.mxu0
    %v3070 = vld [vmem:[#allocation3 + $0xa0] sm:$0xff]
    %v3071 = vld [vmem:[#allocation3 + $0xa8] sm:$0xff]
    %v3072 = vld [vmem:[#allocation3 + $0xb0] sm:$0xff]
    %v3073 = vld [vmem:[#allocation3 + $0xb8] sm:$0xff]
    %v3074 = vmul.f32 %v3052, %v3070
    %v3075 = vmul.f32 %v3057, %v3071
    %v3076 = vmul.f32 %v3062, %v3072
    %v3077 = vmul.f32 %v3067, %v3073
    %v3078 = vadd.f32 %v2804, %v3074
    %v3079 = vadd.f32 %v2805, %v3075
    %v3080 = vadd.f32 %v2806, %v3076
    %v3081 = vadd.f32 %v2807, %v3077
    %s3082 = scalar_lea.vmem %s11, 16
    %v3083 = vld [vmem:[%s3082] sm:$0xff]
    %s3084 = scalar_lea.vmem %s12, 16
    %v3085 = vld [vmem:[%s3084] sm:$0xff]
    %3087 = vset.pattern.permute.xlu0 0
    %3088 = vperm.xlu0 %3087, %v3085
    %v3089 = vpop.permute.xlu0 %3088
    %v3092 = vsel %vm1003, %v3083, 0
    %3094 = vmatprep.subr.mxu0 0.0
    %3095 = vmatpush1.msra.mxu0 %v3078
    %3096 = vmatprep.subr.mxu0 0.0
    %3097 = vmatpush1.msra.mxu0 %v3079
    %3098 = vmatprep.subr.mxu0 0.0
    %3099 = vmatpush1.msra.mxu0 %v3080
    %3100 = vmatprep.subr.mxu0 0.0
    %3101 = vmatpush1.msra.mxu0 %v3081
    %3102 = vmatprep.subr.mxu0 0.0
    %3103 = vmatpush1.msra.mxu0 0.0
    %3104 = vmatprep.subr.mxu0 0.0
    %3105 = vmatpush1.msra.mxu0 0.0
    %3106 = vmatprep.subr.mxu0 0.0
    %3107 = vmatpush1.msra.mxu0 0.0
    %3108 = vmatprep.subr.mxu0 0.0
    %3109 = vmatpush1.msra.mxu0 0.0
    %3110 = vmatprep.subr.mxu0 0.0
    %3111 = vmatpush1.msra.mxu0 0.0
    %3112 = vmatprep.subr.mxu0 0.0
    %3113 = vmatpush1.msra.mxu0 0.0
    %3114 = vmatprep.subr.mxu0 0.0
    %3115 = vmatpush1.msra.mxu0 0.0
    %3116 = vmatprep.subr.mxu0 0.0
    %3117 = vmatpush1.msra.mxu0 0.0
    %3118 = vmatprep.subr.mxu0 0.0
    %3119 = vmatpush1.msra.mxu0 0.0
    %3120 = vmatprep.subr.mxu0 0.0
    %3121 = vmatpush1.msra.mxu0 0.0
    %3122 = vmatprep.subr.mxu0 0.0
    %3123 = vmatpush1.msra.mxu0 0.0
    %3124 = vmatprep.subr.mxu0 0.0
    %3125 = vmatpush1.msra.mxu0 0.0
    %3126 = vmatprep.subr.mxu0 0.0
    %3127 = vmatpush1.msra.mxu0 0.0
    %3128 = vmatprep.subr.mxu0 0.0
    %3129 = vmatpush1.msra.mxu0 0.0
    %3130 = vmatprep.subr.mxu0 0.0
    %3131 = vmatpush1.msra.mxu0 0.0
    %3132 = vmatprep.subr.mxu0 0.0
    %3133 = vmatpush1.msra.mxu0 0.0
    %3134 = vmatprep.subr.mxu0 0.0
    %3135 = vmatpush1.msra.mxu0 0.0
    %3136 = vmatprep.subr.mxu0 0.0
    %3137 = vmatpush1.msra.mxu0 0.0
    %3138 = vmatprep.subr.mxu0 0.0
    %3139 = vmatpush1.msra.mxu0 0.0
    %3140 = vmatprep.subr.mxu0 0.0
    %3141 = vmatpush1.msra.mxu0 0.0
    %3142 = vmatprep.subr.mxu0 0.0
    %3143 = vmatpush1.msra.mxu0 0.0
    %3144 = vmatprep.subr.mxu0 0.0
    %3145 = vmatpush1.msra.mxu0 0.0
    %3146 = vmatprep.subr.mxu0 0.0
    %3147 = vmatpush1.msra.mxu0 0.0
    %3148 = vmatprep.subr.mxu0 0.0
    %3149 = vmatpush1.msra.mxu0 0.0
    %3150 = vmatprep.subr.mxu0 0.0
    %3151 = vmatpush1.msra.mxu0 0.0
    %3152 = vmatprep.subr.mxu0 0.0
    %3153 = vmatpush1.msra.mxu0 0.0
    %3154 = vmatprep.subr.mxu0 0.0
    %3155 = vmatpush1.msra.mxu0 0.0
    %3156 = vmatprep.subr.mxu0 0.0
    %3157 = vmatpush1.msra.mxu0 0.0
    %3158 = vmatprep.mubr.f32.mxu0 0.0
    %3159 = vmatmul.mubr.f32.gmra.mrb[0].mxu0 %v3092
    %v3160 = vpop.f32.mrb[0].mxu0
    %v3161 = vadd.f32 %v3089, %v3160
    %v3162 = vpop.f32.mrb[0].mxu0
    %3163 = vdwg.mxu0
    %v3164 = vadd.f32 %v3161, 2.0
    %v3165 = vxor.u32 %v3164, 2147483648
    %v3166 = vmul.f32 %v3165, 1.442695
    %v3167 = vpow.pop %v3166
    %v3168 = vadd.f32 %v3167, 1.0
    %v3169 = vrcp.pop %v3168
    %v3170 = vmul.f32 1.0, %v3169
    %v3171 = vadd.f32 %v3170, 0.001
    %v3172 = vlog2.pop %v3171
    %v3173 = vmul.f32 %v3172, 0.6931472
    %v3174 = vadd.f32 %v2390, %v3173
    %v3175 = vmul.f32 %v3171, %v2395
    %v3177 = vrot.slane %v3161, 4
    %v3179 = vadd.f32 %v3175, %v3177
    %3180 = vst [vmem:[#allocation4] sm:$0xf] %v3179
    %v3181 = vsel %vm854, %v3174, 0.0
    %v3182 = vrot.slane %v3181, 4
    %v3183 = vadd.f32 %v3181, %v3182
    %v3184 = vrot.slane %v3183, 2
    %v3185 = vadd.f32 %v3183, %v3184
    %v3186 = vrot.slane %v3185, 1
    %v3187 = vadd.f32 %v3185, %v3186
    %3188 = vst [vmem:[#allocation6] sm:$0x1] %v3187
    // Predicated region
    $region54: #{tpu_custom_call.1} parent=1 // pred_check
      _
    $region55: #{tpu_custom_call.1} parent=1 // pred_check_branch
      %3190 = sbr.rel (0) target = $region57
    $region56: #{tpu_custom_call.1} parent=1 // pred_region
      %s3192 = ssub.s32 64, 64
      %3193 = vsyncadd [#allocation5], %s3192
      %s3195 = sshll.u32 [#allocation4], 4
      %s3196 = int_to_ptr.vmem [resolvable:$true] %s3195
      %3198 = dma.vmem_to_hbm [thread:$0]  %s3196, 64, %s13, [#allocation5]
    $region57: #{tpu_custom_call.1} parent=1 // pred_fallthru
      _
    // Predicated region
    $region58: #{tpu_custom_call.1} parent=1 // pred_check
      _
    $region59: #{tpu_custom_call.1} parent=1 // pred_check_branch
      %3200 = sbr.rel (0) target = $region61
    $region60: #{tpu_custom_call.1} parent=1 // pred_region
      %s3202 = ssub.s32 16, 16
      %3203 = vsyncadd [#allocation7], %s3202
      %s3205 = sshll.u32 [#allocation6], 4
      %s3206 = int_to_ptr.vmem [resolvable:$true] %s3205
      %3208 = dma.vmem_to_hbm [thread:$0]  %s3206, 16, %s14, [#allocation7]
    $region61: #{tpu_custom_call.1} parent=1 // pred_fallthru
      _
    // Predicated region
    $region62: #{tpu_custom_call.1} parent=1 // pred_check
      _
    $region63: #{tpu_custom_call.1} parent=1 // pred_check_branch
      %3210 = sbr.rel (0) target = $region65
    $region64: #{tpu_custom_call.1} parent=1 // pred_region
      %3211 = dma.done [#allocation5], 64
    $region65: #{tpu_custom_call.1} parent=1 // pred_fallthru
      _
    // Predicated region
    $region66: #{tpu_custom_call.1} parent=1 // pred_check
      _
    $region67: #{tpu_custom_call.1} parent=1 // pred_check_branch
      %3213 = sbr.rel (0) target = $region69
    $region68: #{tpu_custom_call.1} parent=1 // pred_region
      %3214 = dma.done [#allocation7], 16
    $region69: #{tpu_custom_call.1} parent=1 // pred_fallthru
      _
    %3215 = vsyncpa [#allocation5], 1
    %3216 = vsyncpa [#allocation7], 1

</llo_original>
